<compile_context>
chip_gen: v7x
topology: tpu7x:2x2x1
jax: 0.10.0
libtpu: 0.0.40
codegen_flags: <defaults>
</compile_context>

<pallas_src>
import jax
import jax.numpy as jnp
from jax.experimental import pallas as pl
from jax.experimental.pallas import tpu as pltpu

LEAKY_SLOPE = 0.01  # nn.LeakyReLU default


def _leaky_relu(x):
    return jnp.maximum(x, LEAKY_SLOPE * x)


def _mxu(a, b):
    # bf16 x bf16 single MXU pass with f32 accumulation.  Identical rounding
    # to DEFAULT-precision f32 matmul on TPU, but the weight operand is
    # already stored in bf16 (half the HBM/VMEM traffic).
    return jnp.dot(a.astype(jnp.bfloat16), b, preferred_element_type=jnp.float32)


def _dot_hi(a, b):
    # Full-fp32 reference math only (mirrors torch fp32).
    return jnp.dot(a, b, preferred_element_type=jnp.float32,
                   precision=jax.lax.Precision.HIGHEST)


def _round_up(x, m):
    return ((x + m - 1) // m) * m


# ---------------------------------------------------------------------------
# Pallas kernel
# ---------------------------------------------------------------------------
def make_dlrm_kernel(num_cat, n_dense_layers, n_top_layers):
    """Kernel argument order (inputs, then output):
       idx_off, dense_x, emb_wide,
       [Wblk, b] * n_dense_layers        (last layer widened to Fp columns),
       Si, Sj, W0_full, W0_zrep, b0,
       [W, b] * (n_top_layers - 2),
       W_last_T, b_last_T,
       out_ref."""

    def kernel(idx_ref, xd_ref, emb_ref, *rest):
        out_ref = rest[-1]
        it = iter(rest[:-1])
        dense_params = [(next(it), next(it)) for _ in range(n_dense_layers)]
        si_ref, sj_ref = next(it), next(it)
        w0f_ref, w0z_ref, b0_ref = next(it), next(it), next(it)
        mid_params = [(next(it), next(it)) for _ in range(n_top_layers - 2)]
        wlt_ref, blt_ref = next(it), next(it)

        tb = xd_ref.shape[0]
        sum_counts = emb_ref.shape[0]

        # ---- categorical multi-hot: boolean OR, single cast, MXU gather ----
        idx = idx_ref[...]                                    # (TB, num_cat) i32 (pre-offset)
        col = jax.lax.broadcasted_iota(jnp.int32, (tb, sum_counts), 1)
        hot = col == idx[:, 0:1]
        for k in range(1, num_cat):
            hot = jnp.logical_or(hot, col == idx[:, k:k + 1])
        mh = hot.astype(jnp.bfloat16)
        ce = _mxu(mh, emb_ref[...])                           # (TB, Fp): cat cols, rest 0

        # ---- bottom MLPs via block-diagonal weights; last layer widened ----
        h = xd_ref[...]                                       # (TB, num_dense)
        for w_ref, b_ref in dense_params[:-1]:
            h = _leaky_relu(_mxu(h, w_ref[...]) + b_ref[...])
        wl_ref, bl_ref = dense_params[-1]
        # leaky_relu(0) == 0 on the cat / padding columns, so this single add
        # fuses dense embeddings + cat embeddings into one lane-dense buffer.
        feats = _leaky_relu(_mxu(h, wl_ref[...]) + bl_ref[...]) + ce   # (TB, Fp)

        # ---- pairwise dot-product interactions: 2 selection matmuls --------
        a = _mxu(feats, si_ref[...])                          # (TB, P*D)
        b = _mxu(feats, sj_ref[...])                          # (TB, P*D)
        prod = a * b                                          # (TB, P*D), VPU

        # ---- top MLP --------------------------------------------------------
        # First layer consumes feats (dense rows only, lifted host-side into
        # W0_full) and prod; the per-pair sum over D is folded into W0_zrep
        # (pair rows repeated D times, host-side).
        h = _leaky_relu(_mxu(feats, w0f_ref[...]) +
                        _mxu(prod, w0z_ref[...]) + b0_ref[...])
        for w_ref, b_ref in mid_params:
            h = _leaky_relu(_mxu(h, w_ref[...]) + b_ref[...])
        # TODO(synk): nn.Dropout(0.5) before the final Linear is identity at
        # inference; training-mode random dropout is not implemented.
        # Lane-dense (1, TB) result without materializing h.T: contract the
        # last dims of both operands (MXU handles the transposed RHS natively).
        logits = jax.lax.dot_general(
            wlt_ref[...], h.astype(jnp.bfloat16),
            dimension_numbers=(((1,), (1,)), ((), ())),
            preferred_element_type=jnp.float32)               # (1, TB)
        out_ref[...] = jax.nn.sigmoid(logits + blt_ref[...])

    return kernel


# ---------------------------------------------------------------------------
# Wrapper: host-side layout plumbing + pallas_call
# ---------------------------------------------------------------------------
def dlrm_forward(raw_inputs, params, *, counts, denses, emb_dim, batch_tile=256):
    num_cat, num_dense = len(counts), len(denses)
    num_fea = num_cat + num_dense
    D = emb_dim
    B = raw_inputs.shape[0]
    TB = min(batch_tile, B)
    assert B % TB == 0, (B, TB)

    pairs = [(i, j) for i in range(num_fea) for j in range(i)]   # torch order
    P = len(pairs)
    nd_d = num_dense * D
    F = num_fea * D
    Fp = _round_up(F, 128)            # pad fused contraction dim to MXU granularity
    bf16 = jnp.bfloat16

    # ---- split raw inputs; clamp + pre-offset categorical ids ---------------
    offsets = [0]
    for c in counts[:-1]:
        offsets.append(offsets[-1] + c)
    idx_raw = raw_inputs[:, :num_cat].astype(jnp.int32)
    max_ids = jnp.asarray([c - 1 for c in counts], jnp.int32)[None, :]
    idx_off = jnp.clip(idx_raw, 0, max_ids) + \
        jnp.asarray(offsets, jnp.int32)[None, :]                  # (B, num_cat)
    dense_x = raw_inputs[:, num_cat:].astype(jnp.float32)         # (B, num_dense)

    # ---- stacked embedding table, cat block k at cols [nd_d+k*D, nd_d+(k+1)*D)
    # TODO(synk): for realistic vocabularies keep tables in HBM (pl.ANY) and
    # gather rows via scalar-prefetched indices; the stacked multi-hot table
    # only scales to small sum(counts).
    sum_counts = sum(counts)
    emb_wide = jnp.zeros((sum_counts, Fp), jnp.float32)
    for k in range(num_cat):
        emb_wide = emb_wide.at[offsets[k]:offsets[k] + counts[k],
                               nd_d + k * D:nd_d + (k + 1) * D].set(params["emb"][k])
    emb_wide = emb_wide.astype(bf16)

    # ---- block-diagonal bottom-MLP weights; last layer widened to Fp --------
    n_dense_layers = len(params["dense_w"])
    dense_layers = []
    for l, (w, b) in enumerate(zip(params["dense_w"], params["dense_b"])):
        nd_, fi, fo = w.shape
        out_cols = Fp if l == n_dense_layers - 1 else nd_ * fo
        wblk = jnp.zeros((nd_ * fi, out_cols), jnp.float32)
        bias = jnp.zeros((1, out_cols), jnp.float32)
        for i in range(nd_):
            wblk = wblk.at[i * fi:(i + 1) * fi, i * fo:(i + 1) * fo].set(w[i])
            bias = bias.at[0, i * fo:(i + 1) * fo].set(b[i])
        dense_layers.append((wblk.astype(bf16), bias))

    # ---- 0/1 selection matrices over the fused (Fp-wide) feats buffer -------
    si = jnp.zeros((Fp, P * D), jnp.float32)
    sj = jnp.zeros((Fp, P * D), jnp.float32)
    eye = jnp.eye(D, dtype=jnp.float32)
    for p, (i, j) in enumerate(pairs):
        si = si.at[i * D:(i + 1) * D, p * D:(p + 1) * D].set(eye)
        sj = sj.at[j * D:(j + 1) * D, p * D:(p + 1) * D].set(eye)
    si, sj = si.astype(bf16), sj.astype(bf16)

    # ---- first top-MLP layer: dense rows lifted to feats space; pair rows
    #      repeated D times so the per-pair sum over D folds into the matmul --
    w0, b0 = params["top_w"][0], params["top_b"][0]
    w0_full = jnp.zeros((Fp, w0.shape[1]), jnp.float32)
    w0_full = w0_full.at[:nd_d].set(w0[:nd_d]).astype(bf16)      # (Fp, U0)
    w0_zrep = jnp.repeat(w0[nd_d:], D, axis=0).astype(bf16)      # (P*D, U0)

    n_top = len(params["top_w"])
    assert n_top >= 2, "need at least one hidden top-MLP layer"
    mid = [(params["top_w"][l].astype(bf16), params["top_b"][l])
           for l in range(1, n_top - 1)]
    w_last_t = params["top_w"][-1].T.astype(bf16)                # (1, U_prev)
    b_last_t = params["top_b"][-1].reshape(1, 1)

    flat_params = []
    for w, b in dense_layers:
        flat_params += [w, b]
    flat_params += [si, sj, w0_full, w0_zrep, b0]
    for w, b in mid:
        flat_params += [w, b]
    flat_params += [w_last_t, b_last_t]

    kernel = make_dlrm_kernel(num_cat, n_dense_layers, n_top)

    in_specs = [
        pl.BlockSpec((TB, num_cat), lambda i: (i, 0)),
        pl.BlockSpec((TB, num_dense), lambda i: (i, 0)),
        pl.BlockSpec(emb_wide.shape, lambda i: (0, 0)),
    ]
    for p in flat_params:   # small parameters: full-array blocks, resident per tile
        in_specs.append(pl.BlockSpec(p.shape, lambda i: (0, 0)))

    out = pl.pallas_call(
        kernel,
        out_shape=jax.ShapeDtypeStruct((1, B), jnp.float32),   # lane-dense output
        grid=(B // TB,),
        in_specs=in_specs,
        out_specs=pl.BlockSpec((1, TB), lambda i: (0, i)),
        compiler_params=pltpu.CompilerParams(
            dimension_semantics=("parallel",)),
    )(idx_off, dense_x, emb_wide, *flat_params)

    return out.reshape(-1)          # torch.flatten -> (B,)


# ---------------------------------------------------------------------------
# Deterministic parameter init (synthetic; matches module's shapes)
# ---------------------------------------------------------------------------
def init_params(key, counts, denses, dense_mlp_units, emb_dim, top_mlp_units):
    num_cat, num_dense = len(counts), len(denses)
    num_fea = num_cat + num_dense
    keys = iter(jax.random.split(key, 64))

    params = {}
    params["emb"] = [
        jax.random.uniform(next(keys), (c, emb_dim), jnp.float32, -0.05, 0.05)
        for c in counts
    ]

    # bottom MLPs: Linear(d, u0) LReLU ... Linear(u_last, emb_dim) LReLU
    dense_dims = [denses[0]] + list(dense_mlp_units) + [emb_dim]
    dw, db = [], []
    for l in range(len(dense_dims) - 1):
        fi, fo = dense_dims[l], dense_dims[l + 1]
        s = (6.0 / (fi + fo)) ** 0.5
        dw.append(jax.random.uniform(next(keys), (num_dense, fi, fo),
                                     jnp.float32, -s, s))
        db.append(jax.random.uniform(next(keys), (num_dense, fo),
                                     jnp.float32, -0.05, 0.05))
    params["dense_w"], params["dense_b"] = dw, db

    # top MLP: Linear(top_in, u0) LReLU ... Dropout, Linear(prev, 1), Sigmoid
    top_in = emb_dim * num_dense + num_fea * (num_fea - 1) // 2
    top_dims = [top_in] + list(top_mlp_units) + [1]
    tw, tb = [], []
    for l in range(len(top_dims) - 1):
        fi, fo = top_dims[l], top_dims[l + 1]
        s = (6.0 / (fi + fo)) ** 0.5
        tw.append(jax.random.uniform(next(keys), (fi, fo), jnp.float32, -s, s))
        tb.append(jax.random.uniform(next(keys), (1, fo), jnp.float32, -0.05, 0.05))
    params["top_w"], params["top_b"] = tw, tb
    return params


# ---------------------------------------------------------------------------
# Pure-JAX reference (mirrors torch forward exactly, full fp32)
# ---------------------------------------------------------------------------
def dlrm_reference(raw_inputs, params, *, counts, denses, emb_dim):
    num_cat, num_dense = len(counts), len(denses)
    num_fea = num_cat + num_dense
    B = raw_inputs.shape[0]
    idx = raw_inputs[:, :num_cat].astype(jnp.int32)
    dense_x = raw_inputs[:, num_cat:].astype(jnp.float32)

    cat_embs = [jnp.take(params["emb"][i], idx[:, i], axis=0)
                for i in range(num_cat)]
    dense_embs = []
    for i in range(num_dense):
        h = dense_x[:, i:i + 1]
        for w, b in zip(params["dense_w"], params["dense_b"]):
            h = _leaky_relu(_dot_hi(h, w[i]) + b[i:i + 1])
        dense_embs.append(h)

    T = jnp.concatenate(dense_embs + cat_embs, axis=1).reshape(B, num_fea, emb_dim)
    Z = jnp.einsum("bfd,bgd->bfg", T, T, precision=jax.lax.Precision.HIGHEST)
    li = jnp.array([i for i in range(num_fea) for j in range(i)])
    lj = jnp.array([j for i in range(num_fea) for j in range(i)])
    Zflat = Z[:, li, lj]
    R = jnp.concatenate(dense_embs + [Zflat], axis=1)

    h = R
    n_top = len(params["top_w"])
    for l, (w, b) in enumerate(zip(params["top_w"], params["top_b"])):
        h = _dot_hi(h, w) + b
        if l < n_top - 1:
            h = _leaky_relu(h)
    return jax.nn.sigmoid(h).reshape(-1)


# ---------------------------------------------------------------------------
if __name__ == "__main__":
    counts = [50, 60, 70]          # 3 categorical features
    denses = [1, 1]                # 2 scalar dense features
    emb_dim = 32
    dense_mlp_units = [16, 32]
    top_mlp_units = [64, 32]
    B = 512
    batch_tile = 256               # >= 2 grid steps so both v7x TCs get work

    key = jax.random.PRNGKey(0)
    k_param, k_cat, k_dense = jax.random.split(key, 3)
    params = init_params(k_param, counts, denses, dense_mlp_units, emb_dim,
                         top_mlp_units)

    cat_cols = jnp.stack(
        [jax.random.randint(jax.random.fold_in(k_cat, i), (B,), 0, c)
         for i, c in enumerate(counts)], axis=1).astype(jnp.float32)
    dense_cols = jax.random.normal(k_dense, (B, len(denses)), jnp.float32)
    raw_inputs = jnp.concatenate([cat_cols, dense_cols], axis=1)   # (B, 5)

    out = dlrm_forward(raw_inputs, params, counts=counts, denses=denses,
                       emb_dim=emb_dim, batch_tile=batch_tile)
    out = jax.block_until_ready(out)

    ref = dlrm_reference(raw_inputs, params, counts=counts, denses=denses,
                         emb_dim=emb_dim)
    assert out.shape == (B,), out.shape
    # Tolerance is looser than 1e-4 because the kernel uses bf16 MXU passes
    # (same rounding as DEFAULT f32 precision) while the reference is full fp32.
    if not jnp.allclose(out, ref, atol=2e-2, rtol=2e-2):
        raise AssertionError(
            f"kernel/reference mismatch, max abs err = {jnp.max(jnp.abs(out - ref))}")
    print("KERNEL_OK")
</pallas_src>

<mosaic_0001>
module attributes {stable_mosaic.version = 11 : i64} {
  func.func @kernel(%arg0: i32, %arg1: memref<256x3xi32, #tpu.memory_space<vmem>>, %arg2: memref<256x2xf32, #tpu.memory_space<vmem>>, %arg3: memref<180x256xbf16, #tpu.memory_space<vmem>>, %arg4: memref<2x32xbf16, #tpu.memory_space<vmem>>, %arg5: memref<1x32xf32, #tpu.memory_space<vmem>>, %arg6: memref<32x64xbf16, #tpu.memory_space<vmem>>, %arg7: memref<1x64xf32, #tpu.memory_space<vmem>>, %arg8: memref<64x256xbf16, #tpu.memory_space<vmem>>, %arg9: memref<1x256xf32, #tpu.memory_space<vmem>>, %arg10: memref<256x320xbf16, #tpu.memory_space<vmem>>, %arg11: memref<256x320xbf16, #tpu.memory_space<vmem>>, %arg12: memref<256x64xbf16, #tpu.memory_space<vmem>>, %arg13: memref<320x64xbf16, #tpu.memory_space<vmem>>, %arg14: memref<1x64xf32, #tpu.memory_space<vmem>>, %arg15: memref<64x32xbf16, #tpu.memory_space<vmem>>, %arg16: memref<1x32xf32, #tpu.memory_space<vmem>>, %arg17: memref<1x32xbf16, #tpu.memory_space<vmem>>, %arg18: memref<1x1xf32, #tpu.memory_space<vmem>>, %arg19: memref<1x256xf32, #tpu.memory_space<vmem>>) attributes {dimension_semantics = [#tpu.dimension_semantics<parallel>], iteration_bounds = array<i64: 2>, scalar_prefetch = 0 : i64, scratch_operands = 0 : i64, tpu.core_type = #tpu.core_type<tc>, window_params = [{transform_indices = @transform_0, window_bounds = array<i64: 256, 3>}, {transform_indices = @transform_1, window_bounds = array<i64: 256, 2>}, {pipeline_mode = #tpu.pipeline_mode<synchronous>, transform_indices = @transform_2, window_bounds = array<i64: 180, 256>}, {pipeline_mode = #tpu.pipeline_mode<synchronous>, transform_indices = @transform_3, window_bounds = array<i64: 2, 32>}, {pipeline_mode = #tpu.pipeline_mode<synchronous>, transform_indices = @transform_4, window_bounds = array<i64: 1, 32>}, {pipeline_mode = #tpu.pipeline_mode<synchronous>, transform_indices = @transform_5, window_bounds = array<i64: 32, 64>}, {pipeline_mode = #tpu.pipeline_mode<synchronous>, transform_indices = @transform_6, window_bounds = array<i64: 1, 64>}, {pipeline_mode = #tpu.pipeline_mode<synchronous>, transform_indices = @transform_7, window_bounds = array<i64: 64, 256>}, {pipeline_mode = #tpu.pipeline_mode<synchronous>, transform_indices = @transform_8, window_bounds = array<i64: 1, 256>}, {pipeline_mode = #tpu.pipeline_mode<synchronous>, transform_indices = @transform_9, window_bounds = array<i64: 256, 320>}, {pipeline_mode = #tpu.pipeline_mode<synchronous>, transform_indices = @transform_10, window_bounds = array<i64: 256, 320>}, {pipeline_mode = #tpu.pipeline_mode<synchronous>, transform_indices = @transform_11, window_bounds = array<i64: 256, 64>}, {pipeline_mode = #tpu.pipeline_mode<synchronous>, transform_indices = @transform_12, window_bounds = array<i64: 320, 64>}, {pipeline_mode = #tpu.pipeline_mode<synchronous>, transform_indices = @transform_13, window_bounds = array<i64: 1, 64>}, {pipeline_mode = #tpu.pipeline_mode<synchronous>, transform_indices = @transform_14, window_bounds = array<i64: 64, 32>}, {pipeline_mode = #tpu.pipeline_mode<synchronous>, transform_indices = @transform_15, window_bounds = array<i64: 1, 32>}, {pipeline_mode = #tpu.pipeline_mode<synchronous>, transform_indices = @transform_16, window_bounds = array<i64: 1, 32>}, {pipeline_mode = #tpu.pipeline_mode<synchronous>, transform_indices = @transform_17, window_bounds = array<i64: 1, 1>}, {transform_indices = @transform_18, window_bounds = array<i64: 1, 256>}]} {
    %c0 = arith.constant 0 : index
    %c0_0 = arith.constant 0 : index
    %0 = vector.load %arg1[%c0, %c0_0] : memref<256x3xi32, #tpu.memory_space<vmem>>, vector<256x3xi32>
    %1 = tpu.iota {dimensions = array<i32: 1>} : vector<256x180xi32>
    %2 = vector.extract_strided_slice %0 {offsets = [0, 0], sizes = [256, 1], strides = [1, 1]} : vector<256x3xi32> to vector<256x1xi32>
    %3 = vector.broadcast %2 : vector<256x1xi32> to vector<256x180xi32>
    %4 = arith.cmpi eq, %1, %3 : vector<256x180xi32>
    %5 = vector.extract_strided_slice %0 {offsets = [0, 1], sizes = [256, 1], strides = [1, 1]} : vector<256x3xi32> to vector<256x1xi32>
    %6 = vector.broadcast %5 : vector<256x1xi32> to vector<256x180xi32>
    %7 = arith.cmpi eq, %1, %6 : vector<256x180xi32>
    %8 = arith.ori %4, %7 : vector<256x180xi1>
    %9 = vector.extract_strided_slice %0 {offsets = [0, 2], sizes = [256, 1], strides = [1, 1]} : vector<256x3xi32> to vector<256x1xi32>
    %10 = vector.broadcast %9 : vector<256x1xi32> to vector<256x180xi32>
    %11 = arith.cmpi eq, %1, %10 : vector<256x180xi32>
    %12 = arith.ori %8, %11 : vector<256x180xi1>
    %13 = arith.extui %12 : vector<256x180xi1> to vector<256x180xi32>
    %14 = arith.sitofp %13 : vector<256x180xi32> to vector<256x180xf32>
    %15 = arith.truncf %14 : vector<256x180xf32> to vector<256x180xbf16>
    %c0_1 = arith.constant 0 : index
    %c0_2 = arith.constant 0 : index
    %16 = vector.load %arg3[%c0_1, %c0_2] : memref<180x256xbf16, #tpu.memory_space<vmem>>, vector<180x256xbf16>
    %cst = arith.constant dense<0.000000e+00> : vector<256x256xf32>
    %17 = tpu.matmul %15, %16, %cst {dimension_numbers = #tpu.dot_dimension_numbers<[1], [0], [0], [1], [0, 0, 1, 1], [], []>} : vector<256x180xbf16>, vector<180x256xbf16>, vector<256x256xf32> -> vector<256x256xf32>
    %c0_3 = arith.constant 0 : index
    %c0_4 = arith.constant 0 : index
    %18 = vector.load %arg2[%c0_3, %c0_4] : memref<256x2xf32, #tpu.memory_space<vmem>>, vector<256x2xf32>
    %c0_5 = arith.constant 0 : index
    %c0_6 = arith.constant 0 : index
    %19 = vector.load %arg4[%c0_5, %c0_6] : memref<2x32xbf16, #tpu.memory_space<vmem>>, vector<2x32xbf16>
    %20 = arith.truncf %18 : vector<256x2xf32> to vector<256x2xbf16>
    %cst_7 = arith.constant dense<0.000000e+00> : vector<256x32xf32>
    %21 = tpu.matmul %20, %19, %cst_7 {dimension_numbers = #tpu.dot_dimension_numbers<[1], [0], [0], [1], [0, 0, 1, 1], [], []>} : vector<256x2xbf16>, vector<2x32xbf16>, vector<256x32xf32> -> vector<256x32xf32>
    %c0_8 = arith.constant 0 : index
    %c0_9 = arith.constant 0 : index
    %22 = vector.load %arg5[%c0_8, %c0_9] : memref<1x32xf32, #tpu.memory_space<vmem>>, vector<1x32xf32>
    %23 = vector.broadcast %22 : vector<1x32xf32> to vector<256x32xf32>
    %24 = arith.addf %21, %23 : vector<256x32xf32>
    %cst_10 = arith.constant 0.00999999977 : f32
    %25 = vector.broadcast %cst_10 : f32 to vector<256x32xf32>
    %26 = arith.mulf %25, %24 : vector<256x32xf32>
    %27 = arith.maximumf %24, %26 : vector<256x32xf32>
    %c0_11 = arith.constant 0 : index
    %c0_12 = arith.constant 0 : index
    %28 = vector.load %arg6[%c0_11, %c0_12] : memref<32x64xbf16, #tpu.memory_space<vmem>>, vector<32x64xbf16>
    %29 = arith.truncf %27 : vector<256x32xf32> to vector<256x32xbf16>
    %cst_13 = arith.constant dense<0.000000e+00> : vector<256x64xf32>
    %30 = tpu.matmul %29, %28, %cst_13 {dimension_numbers = #tpu.dot_dimension_numbers<[1], [0], [0], [1], [0, 0, 1, 1], [], []>} : vector<256x32xbf16>, vector<32x64xbf16>, vector<256x64xf32> -> vector<256x64xf32>
    %c0_14 = arith.constant 0 : index
    %c0_15 = arith.constant 0 : index
    %31 = vector.load %arg7[%c0_14, %c0_15] : memref<1x64xf32, #tpu.memory_space<vmem>>, vector<1x64xf32>
    %32 = vector.broadcast %31 : vector<1x64xf32> to vector<256x64xf32>
    %33 = arith.addf %30, %32 : vector<256x64xf32>
    %cst_16 = arith.constant 0.00999999977 : f32
    %34 = vector.broadcast %cst_16 : f32 to vector<256x64xf32>
    %35 = arith.mulf %34, %33 : vector<256x64xf32>
    %36 = arith.maximumf %33, %35 : vector<256x64xf32>
    %c0_17 = arith.constant 0 : index
    %c0_18 = arith.constant 0 : index
    %37 = vector.load %arg8[%c0_17, %c0_18] : memref<64x256xbf16, #tpu.memory_space<vmem>>, vector<64x256xbf16>
    %38 = arith.truncf %36 : vector<256x64xf32> to vector<256x64xbf16>
    %cst_19 = arith.constant dense<0.000000e+00> : vector<256x256xf32>
    %39 = tpu.matmul %38, %37, %cst_19 {dimension_numbers = #tpu.dot_dimension_numbers<[1], [0], [0], [1], [0, 0, 1, 1], [], []>} : vector<256x64xbf16>, vector<64x256xbf16>, vector<256x256xf32> -> vector<256x256xf32>
    %c0_20 = arith.constant 0 : index
    %c0_21 = arith.constant 0 : index
    %40 = vector.load %arg9[%c0_20, %c0_21] : memref<1x256xf32, #tpu.memory_space<vmem>>, vector<1x256xf32>
    %41 = vector.broadcast %40 : vector<1x256xf32> to vector<256x256xf32>
    %42 = arith.addf %39, %41 : vector<256x256xf32>
    %cst_22 = arith.constant 0.00999999977 : f32
    %43 = vector.broadcast %cst_22 : f32 to vector<256x256xf32>
    %44 = arith.mulf %43, %42 : vector<256x256xf32>
    %45 = arith.maximumf %42, %44 : vector<256x256xf32>
    %46 = arith.addf %45, %17 : vector<256x256xf32>
    %c0_23 = arith.constant 0 : index
    %c0_24 = arith.constant 0 : index
    %47 = vector.load %arg10[%c0_23, %c0_24] : memref<256x320xbf16, #tpu.memory_space<vmem>>, vector<256x320xbf16>
    %48 = arith.truncf %46 : vector<256x256xf32> to vector<256x256xbf16>
    %cst_25 = arith.constant dense<0.000000e+00> : vector<256x320xf32>
    %49 = tpu.matmul %48, %47, %cst_25 {dimension_numbers = #tpu.dot_dimension_numbers<[1], [0], [0], [1], [0, 0, 1, 1], [], []>} : vector<256x256xbf16>, vector<256x320xbf16>, vector<256x320xf32> -> vector<256x320xf32>
    %c0_26 = arith.constant 0 : index
    %c0_27 = arith.constant 0 : index
    %50 = vector.load %arg11[%c0_26, %c0_27] : memref<256x320xbf16, #tpu.memory_space<vmem>>, vector<256x320xbf16>
    %51 = arith.truncf %46 : vector<256x256xf32> to vector<256x256xbf16>
    %cst_28 = arith.constant dense<0.000000e+00> : vector<256x320xf32>
    %52 = tpu.matmul %51, %50, %cst_28 {dimension_numbers = #tpu.dot_dimension_numbers<[1], [0], [0], [1], [0, 0, 1, 1], [], []>} : vector<256x256xbf16>, vector<256x320xbf16>, vector<256x320xf32> -> vector<256x320xf32>
    %53 = arith.mulf %49, %52 : vector<256x320xf32>
    %c0_29 = arith.constant 0 : index
    %c0_30 = arith.constant 0 : index
    %54 = vector.load %arg12[%c0_29, %c0_30] : memref<256x64xbf16, #tpu.memory_space<vmem>>, vector<256x64xbf16>
    %55 = arith.truncf %46 : vector<256x256xf32> to vector<256x256xbf16>
    %cst_31 = arith.constant dense<0.000000e+00> : vector<256x64xf32>
    %56 = tpu.matmul %55, %54, %cst_31 {dimension_numbers = #tpu.dot_dimension_numbers<[1], [0], [0], [1], [0, 0, 1, 1], [], []>} : vector<256x256xbf16>, vector<256x64xbf16>, vector<256x64xf32> -> vector<256x64xf32>
    %c0_32 = arith.constant 0 : index
    %c0_33 = arith.constant 0 : index
    %57 = vector.load %arg13[%c0_32, %c0_33] : memref<320x64xbf16, #tpu.memory_space<vmem>>, vector<320x64xbf16>
    %58 = arith.truncf %53 : vector<256x320xf32> to vector<256x320xbf16>
    %cst_34 = arith.constant dense<0.000000e+00> : vector<256x64xf32>
    %59 = tpu.matmul %58, %57, %cst_34 {dimension_numbers = #tpu.dot_dimension_numbers<[1], [0], [0], [1], [0, 0, 1, 1], [], []>} : vector<256x320xbf16>, vector<320x64xbf16>, vector<256x64xf32> -> vector<256x64xf32>
    %60 = arith.addf %56, %59 : vector<256x64xf32>
    %c0_35 = arith.constant 0 : index
    %c0_36 = arith.constant 0 : index
    %61 = vector.load %arg14[%c0_35, %c0_36] : memref<1x64xf32, #tpu.memory_space<vmem>>, vector<1x64xf32>
    %62 = vector.broadcast %61 : vector<1x64xf32> to vector<256x64xf32>
    %63 = arith.addf %60, %62 : vector<256x64xf32>
    %cst_37 = arith.constant 0.00999999977 : f32
    %64 = vector.broadcast %cst_37 : f32 to vector<256x64xf32>
    %65 = arith.mulf %64, %63 : vector<256x64xf32>
    %66 = arith.maximumf %63, %65 : vector<256x64xf32>
    %c0_38 = arith.constant 0 : index
    %c0_39 = arith.constant 0 : index
    %67 = vector.load %arg15[%c0_38, %c0_39] : memref<64x32xbf16, #tpu.memory_space<vmem>>, vector<64x32xbf16>
    %68 = arith.truncf %66 : vector<256x64xf32> to vector<256x64xbf16>
    %cst_40 = arith.constant dense<0.000000e+00> : vector<256x32xf32>
    %69 = tpu.matmul %68, %67, %cst_40 {dimension_numbers = #tpu.dot_dimension_numbers<[1], [0], [0], [1], [0, 0, 1, 1], [], []>} : vector<256x64xbf16>, vector<64x32xbf16>, vector<256x32xf32> -> vector<256x32xf32>
    %c0_41 = arith.constant 0 : index
    %c0_42 = arith.constant 0 : index
    %70 = vector.load %arg16[%c0_41, %c0_42] : memref<1x32xf32, #tpu.memory_space<vmem>>, vector<1x32xf32>
    %71 = vector.broadcast %70 : vector<1x32xf32> to vector<256x32xf32>
    %72 = arith.addf %69, %71 : vector<256x32xf32>
    %cst_43 = arith.constant 0.00999999977 : f32
    %73 = vector.broadcast %cst_43 : f32 to vector<256x32xf32>
    %74 = arith.mulf %73, %72 : vector<256x32xf32>
    %75 = arith.maximumf %72, %74 : vector<256x32xf32>
    %c0_44 = arith.constant 0 : index
    %c0_45 = arith.constant 0 : index
    %76 = vector.load %arg17[%c0_44, %c0_45] : memref<1x32xbf16, #tpu.memory_space<vmem>>, vector<1x32xbf16>
    %77 = arith.truncf %75 : vector<256x32xf32> to vector<256x32xbf16>
    %cst_46 = arith.constant dense<0.000000e+00> : vector<1x256xf32>
    %78 = tpu.matmul %76, %77, %cst_46 {dimension_numbers = #tpu.dot_dimension_numbers<[1], [1], [0], [0], [0, 0, 1, 0], [], []>} : vector<1x32xbf16>, vector<256x32xbf16>, vector<1x256xf32> -> vector<1x256xf32>
    %c0_47 = arith.constant 0 : index
    %c0_48 = arith.constant 0 : index
    %79 = vector.load %arg18[%c0_47, %c0_48] : memref<1x1xf32, #tpu.memory_space<vmem>>, vector<1x1xf32>
    %80 = vector.broadcast %79 : vector<1x1xf32> to vector<1x256xf32>
    %81 = arith.addf %78, %80 : vector<1x256xf32>
    %82 = arith.negf %81 : vector<1x256xf32>
    %83 = math.exp %82 : vector<1x256xf32>
    %cst_49 = arith.constant 1.000000e+00 : f32
    %84 = vector.broadcast %cst_49 : f32 to vector<1x256xf32>
    %85 = arith.addf %84, %83 : vector<1x256xf32>
    %86 = arith.divf %84, %85 : vector<1x256xf32>
    %c0_50 = arith.constant 0 : index
    %c0_51 = arith.constant 0 : index
    %87 = vector.load %arg19[%c0_50, %c0_51] : memref<1x256xf32, #tpu.memory_space<vmem>>, vector<1x256xf32>
    tpu.vector_store %arg19[%c0_50, %c0_51], %86 {strides = array<i32>} : memref<1x256xf32, #tpu.memory_space<vmem>>, vector<1x256xf32>,
    return
  }
  func.func @transform_0(%arg0: i32) -> (i32, i32) {
    %c0_i32 = arith.constant 0 : i32
    %c0_i32_0 = arith.constant 0 : i32
    return %arg0, %c0_i32 : i32, i32
  }
  func.func @transform_1(%arg0: i32) -> (i32, i32) {
    %c0_i32 = arith.constant 0 : i32
    %c0_i32_0 = arith.constant 0 : i32
    return %arg0, %c0_i32 : i32, i32
  }
  func.func @transform_2(%arg0: i32) -> (i32, i32) {
    %c0_i32 = arith.constant 0 : i32
    %c0_i32_0 = arith.constant 0 : i32
    %c0_i32_1 = arith.constant 0 : i32
    return %c0_i32, %c0_i32_0 : i32, i32
  }
  func.func @transform_3(%arg0: i32) -> (i32, i32) {
    %c0_i32 = arith.constant 0 : i32
    %c0_i32_0 = arith.constant 0 : i32
    %c0_i32_1 = arith.constant 0 : i32
    return %c0_i32, %c0_i32_0 : i32, i32
  }
  func.func @transform_4(%arg0: i32) -> (i32, i32) {
    %c0_i32 = arith.constant 0 : i32
    %c0_i32_0 = arith.constant 0 : i32
    %c0_i32_1 = arith.constant 0 : i32
    return %c0_i32, %c0_i32_0 : i32, i32
  }
  func.func @transform_5(%arg0: i32) -> (i32, i32) {
    %c0_i32 = arith.constant 0 : i32
    %c0_i32_0 = arith.constant 0 : i32
    %c0_i32_1 = arith.constant 0 : i32
    return %c0_i32, %c0_i32_0 : i32, i32
  }
  func.func @transform_6(%arg0: i32) -> (i32, i32) {
    %c0_i32 = arith.constant 0 : i32
    %c0_i32_0 = arith.constant 0 : i32
    %c0_i32_1 = arith.constant 0 : i32
    return %c0_i32, %c0_i32_0 : i32, i32
  }
  func.func @transform_7(%arg0: i32) -> (i32, i32) {
    %c0_i32 = arith.constant 0 : i32
    %c0_i32_0 = arith.constant 0 : i32
    %c0_i32_1 = arith.constant 0 : i32
    return %c0_i32, %c0_i32_0 : i32, i32
  }
  func.func @transform_8(%arg0: i32) -> (i32, i32) {
    %c0_i32 = arith.constant 0 : i32
    %c0_i32_0 = arith.constant 0 : i32
    %c0_i32_1 = arith.constant 0 : i32
    return %c0_i32, %c0_i32_0 : i32, i32
  }
  func.func @transform_9(%arg0: i32) -> (i32, i32) {
    %c0_i32 = arith.constant 0 : i32
    %c0_i32_0 = arith.constant 0 : i32
    %c0_i32_1 = arith.constant 0 : i32
    return %c0_i32, %c0_i32_0 : i32, i32
  }
  func.func @transform_10(%arg0: i32) -> (i32, i32) {
    %c0_i32 = arith.constant 0 : i32
    %c0_i32_0 = arith.constant 0 : i32
    %c0_i32_1 = arith.constant 0 : i32
    return %c0_i32, %c0_i32_0 : i32, i32
  }
  func.func @transform_11(%arg0: i32) -> (i32, i32) {
    %c0_i32 = arith.constant 0 : i32
    %c0_i32_0 = arith.constant 0 : i32
    %c0_i32_1 = arith.constant 0 : i32
    return %c0_i32, %c0_i32_0 : i32, i32
  }
  func.func @transform_12(%arg0: i32) -> (i32, i32) {
    %c0_i32 = arith.constant 0 : i32
    %c0_i32_0 = arith.constant 0 : i32
    %c0_i32_1 = arith.constant 0 : i32
    return %c0_i32, %c0_i32_0 : i32, i32
  }
  func.func @transform_13(%arg0: i32) -> (i32, i32) {
    %c0_i32 = arith.constant 0 : i32
    %c0_i32_0 = arith.constant 0 : i32
    %c0_i32_1 = arith.constant 0 : i32
    return %c0_i32, %c0_i32_0 : i32, i32
  }
  func.func @transform_14(%arg0: i32) -> (i32, i32) {
    %c0_i32 = arith.constant 0 : i32
    %c0_i32_0 = arith.constant 0 : i32
    %c0_i32_1 = arith.constant 0 : i32
    return %c0_i32, %c0_i32_0 : i32, i32
  }
  func.func @transform_15(%arg0: i32) -> (i32, i32) {
    %c0_i32 = arith.constant 0 : i32
    %c0_i32_0 = arith.constant 0 : i32
    %c0_i32_1 = arith.constant 0 : i32
    return %c0_i32, %c0_i32_0 : i32, i32
  }
  func.func @transform_16(%arg0: i32) -> (i32, i32) {
    %c0_i32 = arith.constant 0 : i32
    %c0_i32_0 = arith.constant 0 : i32
    %c0_i32_1 = arith.constant 0 : i32
    return %c0_i32, %c0_i32_0 : i32, i32
  }
  func.func @transform_17(%arg0: i32) -> (i32, i32) {
    %c0_i32 = arith.constant 0 : i32
    %c0_i32_0 = arith.constant 0 : i32
    %c0_i32_1 = arith.constant 0 : i32
    return %c0_i32, %c0_i32_0 : i32, i32
  }
  func.func @transform_18(%arg0: i32) -> (i32, i32) {
    %c0_i32 = arith.constant 0 : i32
    %c0_i32_0 = arith.constant 0 : i32
    return %c0_i32, %arg0 : i32, i32
  }
}

</mosaic_0001>

<llo_original>
// kernel: tpu_custom_call.1
$region0: #{tpu_custom_call.1}
  #allocation0 [shape = 'u32[]', space=smem, size = 0x4, offset = 0x4, fixed_abs, tag = 'smem constant byte address 0x4 - core index']
  #allocation1 [shape = 'u32[144,128]{1,0:T(1,128)}', space=vmem, size = 0x12000, scoped, tag = 'internal scratch']
  #allocation2 [shape = 'f32[1,1]{1,0:T(1,128)S(1)}', space=vmem, size = 0x200, scoped, tag = 'scoped memory for tpu_custom_call.1']
  %s0 = inlined_call_operand.vmem [shape: s32[512,3], index: 0, kind: input, shape index: {}]
  %s1 = inlined_call_operand.vmem [shape: f32[512,2], index: 1, kind: input, shape index: {}]
  %s2 = inlined_call_operand.vmem [shape: bf16[180,256], index: 2, kind: input, shape index: {}]
  %s3 = inlined_call_operand.vmem [shape: bf16[2,32], index: 3, kind: input, shape index: {}]
  %s4 = inlined_call_operand.vmem [shape: f32[1,32], index: 4, kind: input, shape index: {}]
  %s5 = inlined_call_operand.vmem [shape: bf16[32,64], index: 5, kind: input, shape index: {}]
  %s6 = inlined_call_operand.vmem [shape: f32[1,64], index: 6, kind: input, shape index: {}]
  %s7 = inlined_call_operand.vmem [shape: bf16[64,256], index: 7, kind: input, shape index: {}]
  %s8 = inlined_call_operand.vmem [shape: f32[1,256], index: 8, kind: input, shape index: {}]
  %s9 = inlined_call_operand.vmem [shape: bf16[256,320], index: 9, kind: input, shape index: {}]
  %s10 = inlined_call_operand.vmem [shape: bf16[256,320], index: 10, kind: input, shape index: {}]
  %s11 = inlined_call_operand.vmem [shape: bf16[256,64], index: 11, kind: input, shape index: {}]
  %s12 = inlined_call_operand.vmem [shape: bf16[320,64], index: 12, kind: input, shape index: {}]
  %s13 = inlined_call_operand.vmem [shape: f32[1,64], index: 13, kind: input, shape index: {}]
  %s14 = inlined_call_operand.vmem [shape: bf16[64,32], index: 14, kind: input, shape index: {}]
  %s15 = inlined_call_operand.vmem [shape: f32[1,32], index: 15, kind: input, shape index: {}]
  %s16 = inlined_call_operand.vmem [shape: bf16[1,32], index: 16, kind: input, shape index: {}]
  %s17 = inlined_call_operand.<no memory space> [shape: f32[1,1], index: 17, kind: input, shape index: {}]
  %s18 = inlined_call_operand.hbm [shape: f32[1,512], index: 18, kind: output, shape index: {}]
  %s19 = sld [smem:[#allocation0]]
  $region105: #{tpu_custom_call.1} parent=0
    _
  %s21 = ssub.s32 1, %s19
  %s22 = scalar_select 0, %s21, %s19
  %v23 = vstv %s17
  %24 = vst [vmem:[#allocation2] sm:$0x1] %v23
  $region1: #{tpu_custom_call.1} parent=0
    #allocation3 [shape = 'u8[2048]{0}', space=vmem, size = 0x800, scoped, tag = 'output window, operand 0']
    #allocation4 [shape = 's32[2]{0}', space=sflag, size = 0x8, scoped, tag = 'scoped memory for tpu_custom_call.1']
    %25 = vsyncpa [#allocation4], 0
    %s26 = scalar_lea.sflag [#allocation4], 1
    %27 = vsyncpa %s26, 0
    loop: start=0, step=1, limit=4
    $region2: #{tpu_custom_call.1} parent=1 // loop_pre_header
      _
    $region3: #{tpu_custom_call.1} parent=1 // loop_header
      %s29 = sphi 0, %s33
      %p30 = scmp.ge.s32.totalorder %s29, 4
      %s39 = sphi 0, %s41
      %s42 = sphi 0, %s39
      %s43 = sphi 0, %s42
      %s59 = sphi 0, %s43
      %s65 = sphi 0, %s67
      %s68 = sphi 0, %s65
      %s69 = sphi 0, %s68
      %s85 = sphi 0, %s69
      %s89 = sphi 0, %s89
      %s91 = sphi 0, %s89
      %s92 = sphi 0, %s91
      %s106 = sphi 0, %s92
      %s110 = sphi 0, %s110
      %s112 = sphi 0, %s110
      %s113 = sphi 0, %s112
      %s127 = sphi 0, %s113
      %s131 = sphi 0, %s131
      %s133 = sphi 0, %s131
      %s134 = sphi 0, %s133
      %s148 = sphi 0, %s134
      %s152 = sphi 0, %s152
      %s154 = sphi 0, %s152
      %s155 = sphi 0, %s154
      %s169 = sphi 0, %s155
      %s173 = sphi 0, %s173
      %s175 = sphi 0, %s173
      %s176 = sphi 0, %s175
      %s190 = sphi 0, %s176
      %s194 = sphi 0, %s194
      %s196 = sphi 0, %s194
      %s197 = sphi 0, %s196
      %s211 = sphi 0, %s197
      %s215 = sphi 0, %s215
      %s217 = sphi 0, %s215
      %s218 = sphi 0, %s217
      %s232 = sphi 0, %s218
      %s236 = sphi 0, %s236
      %s238 = sphi 0, %s236
      %s239 = sphi 0, %s238
      %s253 = sphi 0, %s239
      %s257 = sphi 0, %s257
      %s259 = sphi 0, %s257
      %s260 = sphi 0, %s259
      %s274 = sphi 0, %s260
      %s278 = sphi 0, %s278
      %s280 = sphi 0, %s278
      %s281 = sphi 0, %s280
      %s295 = sphi 0, %s281
      %s299 = sphi 0, %s299
      %s301 = sphi 0, %s299
      %s302 = sphi 0, %s301
      %s316 = sphi 0, %s302
      %s320 = sphi 0, %s320
      %s322 = sphi 0, %s320
      %s323 = sphi 0, %s322
      %s337 = sphi 0, %s323
      %s341 = sphi 0, %s341
      %s343 = sphi 0, %s341
      %s344 = sphi 0, %s343
      %s358 = sphi 0, %s344
      %s362 = sphi 0, %s362
      %s364 = sphi 0, %s362
      %s365 = sphi 0, %s364
      %s379 = sphi 0, %s365
      %s383 = sphi 0, %s383
      %s385 = sphi 0, %s383
      %s386 = sphi 0, %s385
      %s400 = sphi 0, %s386
      %s404 = sphi 0, %s404
      %s406 = sphi 0, %s404
      %s407 = sphi 0, %s406
      %s421 = sphi 0, %s407
      %s427 = sphi 0, %s429
      %s430 = sphi 0, %s427
      %s431 = sphi 0, %s430
      %s447 = sphi 0, %s431
    $region4: #{tpu_custom_call.1} parent=1 // loop_header_branch
      %32 = sbr.rel (%p30) target = $region8
    $region5: #{tpu_custom_call.1} parent=1 // loop_body
      %s34 = ssub.s32 %s29, 1
      %s35 = ssub.s32 %s29, 2
      %s36 = sadd.s32 %s29, 1
      %s37 = ssub.s32 %s29, %s36
      %p38 = scmp.eq.s32.totalorder %s37, 0
      %s40 = sadd.s32 %s39, 1
      %s41 = scalar_select %p38, %s39, %s40
      %p44 = pneg %p38
      %p45 = scmp.eq.s32.totalorder %s29, 1
      %p46 = por %p44, %p45
      %p47 = scmp.ne.s32.totalorder %s39, %s42
      %p48 = scmp.eq.s32.totalorder %s29, 0
      %p49 = por %p47, %p48
      %p50 = scmp.ne.s32.totalorder %s39, %s42
      %p51 = scmp.eq.s32.totalorder %s34, 1
      %p52 = por %p50, %p51
      %p53 = scmp.ne.s32.totalorder %s42, %s43
      %p54 = scmp.eq.s32.totalorder %s34, 0
      %p55 = por %p53, %p54
      %p56 = scmp.ne.s32.totalorder %s42, %s43
      %p57 = scmp.eq.s32.totalorder %s35, 1
      %p58 = por %p56, %p57
      %p60 = scmp.ne.s32.totalorder %s43, %s59
      %p61 = scmp.eq.s32.totalorder %s35, 0
      %p62 = por %p60, %p61
      %s63 = ssub.s32 %s29, %s36
      %p64 = scmp.eq.s32.totalorder %s63, 0
      %s66 = sadd.s32 %s65, 1
      %s67 = scalar_select %p64, %s65, %s66
      %p70 = pneg %p64
      %p71 = scmp.eq.s32.totalorder %s29, 1
      %p72 = por %p70, %p71
      %p73 = scmp.ne.s32.totalorder %s65, %s68
      %p74 = scmp.eq.s32.totalorder %s29, 0
      %p75 = por %p73, %p74
      %p76 = scmp.ne.s32.totalorder %s65, %s68
      %p77 = scmp.eq.s32.totalorder %s34, 1
      %p78 = por %p76, %p77
      %p79 = scmp.ne.s32.totalorder %s68, %s69
      %p80 = scmp.eq.s32.totalorder %s34, 0
      %p81 = por %p79, %p80
      %p82 = scmp.ne.s32.totalorder %s68, %s69
      %p83 = scmp.eq.s32.totalorder %s35, 1
      %p84 = por %p82, %p83
      %p86 = scmp.ne.s32.totalorder %s69, %s85
      %p87 = scmp.eq.s32.totalorder %s35, 0
      %p88 = por %p86, %p87
      %s90 = sadd.s32 %s89, 1
      %p93 = scmp.eq.s32.totalorder %s29, 1
      %p94 = scmp.ne.s32.totalorder %s89, %s91
      %p95 = scmp.eq.s32.totalorder %s29, 0
      %p96 = por %p94, %p95
      %p97 = scmp.ne.s32.totalorder %s89, %s91
      %p98 = scmp.eq.s32.totalorder %s34, 1
      %p99 = por %p97, %p98
      %p100 = scmp.ne.s32.totalorder %s91, %s92
      %p101 = scmp.eq.s32.totalorder %s34, 0
      %p102 = por %p100, %p101
      %p103 = scmp.ne.s32.totalorder %s91, %s92
      %p104 = scmp.eq.s32.totalorder %s35, 1
      %p105 = por %p103, %p104
      %p107 = scmp.ne.s32.totalorder %s92, %s106
      %p108 = scmp.eq.s32.totalorder %s35, 0
      %p109 = por %p107, %p108
      %s111 = sadd.s32 %s110, 1
      %p114 = scmp.eq.s32.totalorder %s29, 1
      %p115 = scmp.ne.s32.totalorder %s110, %s112
      %p116 = scmp.eq.s32.totalorder %s29, 0
      %p117 = por %p115, %p116
      %p118 = scmp.ne.s32.totalorder %s110, %s112
      %p119 = scmp.eq.s32.totalorder %s34, 1
      %p120 = por %p118, %p119
      %p121 = scmp.ne.s32.totalorder %s112, %s113
      %p122 = scmp.eq.s32.totalorder %s34, 0
      %p123 = por %p121, %p122
      %p124 = scmp.ne.s32.totalorder %s112, %s113
      %p125 = scmp.eq.s32.totalorder %s35, 1
      %p126 = por %p124, %p125
      %p128 = scmp.ne.s32.totalorder %s113, %s127
      %p129 = scmp.eq.s32.totalorder %s35, 0
      %p130 = por %p128, %p129
      %s132 = sadd.s32 %s131, 1
      %p135 = scmp.eq.s32.totalorder %s29, 1
      %p136 = scmp.ne.s32.totalorder %s131, %s133
      %p137 = scmp.eq.s32.totalorder %s29, 0
      %p138 = por %p136, %p137
      %p139 = scmp.ne.s32.totalorder %s131, %s133
      %p140 = scmp.eq.s32.totalorder %s34, 1
      %p141 = por %p139, %p140
      %p142 = scmp.ne.s32.totalorder %s133, %s134
      %p143 = scmp.eq.s32.totalorder %s34, 0
      %p144 = por %p142, %p143
      %p145 = scmp.ne.s32.totalorder %s133, %s134
      %p146 = scmp.eq.s32.totalorder %s35, 1
      %p147 = por %p145, %p146
      %p149 = scmp.ne.s32.totalorder %s134, %s148
      %p150 = scmp.eq.s32.totalorder %s35, 0
      %p151 = por %p149, %p150
      %s153 = sadd.s32 %s152, 1
      %p156 = scmp.eq.s32.totalorder %s29, 1
      %p157 = scmp.ne.s32.totalorder %s152, %s154
      %p158 = scmp.eq.s32.totalorder %s29, 0
      %p159 = por %p157, %p158
      %p160 = scmp.ne.s32.totalorder %s152, %s154
      %p161 = scmp.eq.s32.totalorder %s34, 1
      %p162 = por %p160, %p161
      %p163 = scmp.ne.s32.totalorder %s154, %s155
      %p164 = scmp.eq.s32.totalorder %s34, 0
      %p165 = por %p163, %p164
      %p166 = scmp.ne.s32.totalorder %s154, %s155
      %p167 = scmp.eq.s32.totalorder %s35, 1
      %p168 = por %p166, %p167
      %p170 = scmp.ne.s32.totalorder %s155, %s169
      %p171 = scmp.eq.s32.totalorder %s35, 0
      %p172 = por %p170, %p171
      %s174 = sadd.s32 %s173, 1
      %p177 = scmp.eq.s32.totalorder %s29, 1
      %p178 = scmp.ne.s32.totalorder %s173, %s175
      %p179 = scmp.eq.s32.totalorder %s29, 0
      %p180 = por %p178, %p179
      %p181 = scmp.ne.s32.totalorder %s173, %s175
      %p182 = scmp.eq.s32.totalorder %s34, 1
      %p183 = por %p181, %p182
      %p184 = scmp.ne.s32.totalorder %s175, %s176
      %p185 = scmp.eq.s32.totalorder %s34, 0
      %p186 = por %p184, %p185
      %p187 = scmp.ne.s32.totalorder %s175, %s176
      %p188 = scmp.eq.s32.totalorder %s35, 1
      %p189 = por %p187, %p188
      %p191 = scmp.ne.s32.totalorder %s176, %s190
      %p192 = scmp.eq.s32.totalorder %s35, 0
      %p193 = por %p191, %p192
      %s195 = sadd.s32 %s194, 1
      %p198 = scmp.eq.s32.totalorder %s29, 1
      %p199 = scmp.ne.s32.totalorder %s194, %s196
      %p200 = scmp.eq.s32.totalorder %s29, 0
      %p201 = por %p199, %p200
      %p202 = scmp.ne.s32.totalorder %s194, %s196
      %p203 = scmp.eq.s32.totalorder %s34, 1
      %p204 = por %p202, %p203
      %p205 = scmp.ne.s32.totalorder %s196, %s197
      %p206 = scmp.eq.s32.totalorder %s34, 0
      %p207 = por %p205, %p206
      %p208 = scmp.ne.s32.totalorder %s196, %s197
      %p209 = scmp.eq.s32.totalorder %s35, 1
      %p210 = por %p208, %p209
      %p212 = scmp.ne.s32.totalorder %s197, %s211
      %p213 = scmp.eq.s32.totalorder %s35, 0
      %p214 = por %p212, %p213
      %s216 = sadd.s32 %s215, 1
      %p219 = scmp.eq.s32.totalorder %s29, 1
      %p220 = scmp.ne.s32.totalorder %s215, %s217
      %p221 = scmp.eq.s32.totalorder %s29, 0
      %p222 = por %p220, %p221
      %p223 = scmp.ne.s32.totalorder %s215, %s217
      %p224 = scmp.eq.s32.totalorder %s34, 1
      %p225 = por %p223, %p224
      %p226 = scmp.ne.s32.totalorder %s217, %s218
      %p227 = scmp.eq.s32.totalorder %s34, 0
      %p228 = por %p226, %p227
      %p229 = scmp.ne.s32.totalorder %s217, %s218
      %p230 = scmp.eq.s32.totalorder %s35, 1
      %p231 = por %p229, %p230
      %p233 = scmp.ne.s32.totalorder %s218, %s232
      %p234 = scmp.eq.s32.totalorder %s35, 0
      %p235 = por %p233, %p234
      %s237 = sadd.s32 %s236, 1
      %p240 = scmp.eq.s32.totalorder %s29, 1
      %p241 = scmp.ne.s32.totalorder %s236, %s238
      %p242 = scmp.eq.s32.totalorder %s29, 0
      %p243 = por %p241, %p242
      %p244 = scmp.ne.s32.totalorder %s236, %s238
      %p245 = scmp.eq.s32.totalorder %s34, 1
      %p246 = por %p244, %p245
      %p247 = scmp.ne.s32.totalorder %s238, %s239
      %p248 = scmp.eq.s32.totalorder %s34, 0
      %p249 = por %p247, %p248
      %p250 = scmp.ne.s32.totalorder %s238, %s239
      %p251 = scmp.eq.s32.totalorder %s35, 1
      %p252 = por %p250, %p251
      %p254 = scmp.ne.s32.totalorder %s239, %s253
      %p255 = scmp.eq.s32.totalorder %s35, 0
      %p256 = por %p254, %p255
      %s258 = sadd.s32 %s257, 1
      %p261 = scmp.eq.s32.totalorder %s29, 1
      %p262 = scmp.ne.s32.totalorder %s257, %s259
      %p263 = scmp.eq.s32.totalorder %s29, 0
      %p264 = por %p262, %p263
      %p265 = scmp.ne.s32.totalorder %s257, %s259
      %p266 = scmp.eq.s32.totalorder %s34, 1
      %p267 = por %p265, %p266
      %p268 = scmp.ne.s32.totalorder %s259, %s260
      %p269 = scmp.eq.s32.totalorder %s34, 0
      %p270 = por %p268, %p269
      %p271 = scmp.ne.s32.totalorder %s259, %s260
      %p272 = scmp.eq.s32.totalorder %s35, 1
      %p273 = por %p271, %p272
      %p275 = scmp.ne.s32.totalorder %s260, %s274
      %p276 = scmp.eq.s32.totalorder %s35, 0
      %p277 = por %p275, %p276
      %s279 = sadd.s32 %s278, 1
      %p282 = scmp.eq.s32.totalorder %s29, 1
      %p283 = scmp.ne.s32.totalorder %s278, %s280
      %p284 = scmp.eq.s32.totalorder %s29, 0
      %p285 = por %p283, %p284
      %p286 = scmp.ne.s32.totalorder %s278, %s280
      %p287 = scmp.eq.s32.totalorder %s34, 1
      %p288 = por %p286, %p287
      %p289 = scmp.ne.s32.totalorder %s280, %s281
      %p290 = scmp.eq.s32.totalorder %s34, 0
      %p291 = por %p289, %p290
      %p292 = scmp.ne.s32.totalorder %s280, %s281
      %p293 = scmp.eq.s32.totalorder %s35, 1
      %p294 = por %p292, %p293
      %p296 = scmp.ne.s32.totalorder %s281, %s295
      %p297 = scmp.eq.s32.totalorder %s35, 0
      %p298 = por %p296, %p297
      %s300 = sadd.s32 %s299, 1
      %p303 = scmp.eq.s32.totalorder %s29, 1
      %p304 = scmp.ne.s32.totalorder %s299, %s301
      %p305 = scmp.eq.s32.totalorder %s29, 0
      %p306 = por %p304, %p305
      %p307 = scmp.ne.s32.totalorder %s299, %s301
      %p308 = scmp.eq.s32.totalorder %s34, 1
      %p309 = por %p307, %p308
      %p310 = scmp.ne.s32.totalorder %s301, %s302
      %p311 = scmp.eq.s32.totalorder %s34, 0
      %p312 = por %p310, %p311
      %p313 = scmp.ne.s32.totalorder %s301, %s302
      %p314 = scmp.eq.s32.totalorder %s35, 1
      %p315 = por %p313, %p314
      %p317 = scmp.ne.s32.totalorder %s302, %s316
      %p318 = scmp.eq.s32.totalorder %s35, 0
      %p319 = por %p317, %p318
      %s321 = sadd.s32 %s320, 1
      %p324 = scmp.eq.s32.totalorder %s29, 1
      %p325 = scmp.ne.s32.totalorder %s320, %s322
      %p326 = scmp.eq.s32.totalorder %s29, 0
      %p327 = por %p325, %p326
      %p328 = scmp.ne.s32.totalorder %s320, %s322
      %p329 = scmp.eq.s32.totalorder %s34, 1
      %p330 = por %p328, %p329
      %p331 = scmp.ne.s32.totalorder %s322, %s323
      %p332 = scmp.eq.s32.totalorder %s34, 0
      %p333 = por %p331, %p332
      %p334 = scmp.ne.s32.totalorder %s322, %s323
      %p335 = scmp.eq.s32.totalorder %s35, 1
      %p336 = por %p334, %p335
      %p338 = scmp.ne.s32.totalorder %s323, %s337
      %p339 = scmp.eq.s32.totalorder %s35, 0
      %p340 = por %p338, %p339
      %s342 = sadd.s32 %s341, 1
      %p345 = scmp.eq.s32.totalorder %s29, 1
      %p346 = scmp.ne.s32.totalorder %s341, %s343
      %p347 = scmp.eq.s32.totalorder %s29, 0
      %p348 = por %p346, %p347
      %p349 = scmp.ne.s32.totalorder %s341, %s343
      %p350 = scmp.eq.s32.totalorder %s34, 1
      %p351 = por %p349, %p350
      %p352 = scmp.ne.s32.totalorder %s343, %s344
      %p353 = scmp.eq.s32.totalorder %s34, 0
      %p354 = por %p352, %p353
      %p355 = scmp.ne.s32.totalorder %s343, %s344
      %p356 = scmp.eq.s32.totalorder %s35, 1
      %p357 = por %p355, %p356
      %p359 = scmp.ne.s32.totalorder %s344, %s358
      %p360 = scmp.eq.s32.totalorder %s35, 0
      %p361 = por %p359, %p360
      %s363 = sadd.s32 %s362, 1
      %p366 = scmp.eq.s32.totalorder %s29, 1
      %p367 = scmp.ne.s32.totalorder %s362, %s364
      %p368 = scmp.eq.s32.totalorder %s29, 0
      %p369 = por %p367, %p368
      %p370 = scmp.ne.s32.totalorder %s362, %s364
      %p371 = scmp.eq.s32.totalorder %s34, 1
      %p372 = por %p370, %p371
      %p373 = scmp.ne.s32.totalorder %s364, %s365
      %p374 = scmp.eq.s32.totalorder %s34, 0
      %p375 = por %p373, %p374
      %p376 = scmp.ne.s32.totalorder %s364, %s365
      %p377 = scmp.eq.s32.totalorder %s35, 1
      %p378 = por %p376, %p377
      %p380 = scmp.ne.s32.totalorder %s365, %s379
      %p381 = scmp.eq.s32.totalorder %s35, 0
      %p382 = por %p380, %p381
      %s384 = sadd.s32 %s383, 1
      %p387 = scmp.eq.s32.totalorder %s29, 1
      %p388 = scmp.ne.s32.totalorder %s383, %s385
      %p389 = scmp.eq.s32.totalorder %s29, 0
      %p390 = por %p388, %p389
      %p391 = scmp.ne.s32.totalorder %s383, %s385
      %p392 = scmp.eq.s32.totalorder %s34, 1
      %p393 = por %p391, %p392
      %p394 = scmp.ne.s32.totalorder %s385, %s386
      %p395 = scmp.eq.s32.totalorder %s34, 0
      %p396 = por %p394, %p395
      %p397 = scmp.ne.s32.totalorder %s385, %s386
      %p398 = scmp.eq.s32.totalorder %s35, 1
      %p399 = por %p397, %p398
      %p401 = scmp.ne.s32.totalorder %s386, %s400
      %p402 = scmp.eq.s32.totalorder %s35, 0
      %p403 = por %p401, %p402
      %s405 = sadd.s32 %s404, 1
      %p408 = scmp.eq.s32.totalorder %s29, 1
      %p409 = scmp.ne.s32.totalorder %s404, %s406
      %p410 = scmp.eq.s32.totalorder %s29, 0
      %p411 = por %p409, %p410
      %p412 = scmp.ne.s32.totalorder %s404, %s406
      %p413 = scmp.eq.s32.totalorder %s34, 1
      %p414 = por %p412, %p413
      %p415 = scmp.ne.s32.totalorder %s406, %s407
      %p416 = scmp.eq.s32.totalorder %s34, 0
      %p417 = por %p415, %p416
      %p418 = scmp.ne.s32.totalorder %s406, %s407
      %p419 = scmp.eq.s32.totalorder %s35, 1
      %p420 = por %p418, %p419
      %p422 = scmp.ne.s32.totalorder %s407, %s421
      %p423 = scmp.eq.s32.totalorder %s35, 0
      %p424 = por %p422, %p423
      %s425 = ssub.s32 %s29, %s36
      %p426 = scmp.eq.s32.totalorder %s425, 0
      %s428 = sadd.s32 %s427, 1
      %s429 = scalar_select %p426, %s427, %s428
      %p432 = pneg %p426
      %p433 = scmp.eq.s32.totalorder %s29, 1
      %p434 = por %p432, %p433
      %p435 = scmp.ne.s32.totalorder %s427, %s430
      %p436 = scmp.eq.s32.totalorder %s29, 0
      %p437 = por %p435, %p436
      %p438 = scmp.ne.s32.totalorder %s427, %s430
      %p439 = scmp.eq.s32.totalorder %s34, 1
      %p440 = por %p438, %p439
      %p441 = scmp.ne.s32.totalorder %s430, %s431
      %p442 = scmp.eq.s32.totalorder %s34, 0
      %p443 = por %p441, %p442
      %p444 = scmp.ne.s32.totalorder %s430, %s431
      %p445 = scmp.eq.s32.totalorder %s35, 1
      %p446 = por %p444, %p445
      %p448 = scmp.ne.s32.totalorder %s431, %s447
      %p449 = scmp.eq.s32.totalorder %s35, 0
      %p450 = por %p448, %p449
      %p451 = scmp.le.s32.totalorder 1, %s29
      %p452 = scmp.lt.s32.totalorder %s29, 3
      %p453 = pnand %p451, %p452
      %p454 = pneg %p453
      // Predicated region
      $region9: #{tpu_custom_call.1} parent=5 // pred_check
        _
      $region10: #{tpu_custom_call.1} parent=5 // pred_check_branch
        %456 = sbr.rel (%p453) target = $region12
      $region11: #{tpu_custom_call.1} parent=5 // pred_region
        %s457 = ssub.s32 %s29, 1
        // Predicated region
        $region13: #{tpu_custom_call.1} parent=11 // pred_check
          %p458 = pneg %p102
        $region14: #{tpu_custom_call.1} parent=11 // pred_check_branch
          %460 = sbr.rel (%p458) target = $region16
        $region15: #{tpu_custom_call.1} parent=11 // pred_region
          _
        $region16: #{tpu_custom_call.1} parent=11 // pred_fallthru
          _
        // Predicated region
        $region17: #{tpu_custom_call.1} parent=11 // pred_check
          %p461 = pneg %p123
        $region18: #{tpu_custom_call.1} parent=11 // pred_check_branch
          %463 = sbr.rel (%p461) target = $region20
        $region19: #{tpu_custom_call.1} parent=11 // pred_region
          _
        $region20: #{tpu_custom_call.1} parent=11 // pred_fallthru
          _
        // Predicated region
        $region21: #{tpu_custom_call.1} parent=11 // pred_check
          %p464 = pneg %p144
        $region22: #{tpu_custom_call.1} parent=11 // pred_check_branch
          %466 = sbr.rel (%p464) target = $region24
        $region23: #{tpu_custom_call.1} parent=11 // pred_region
          _
        $region24: #{tpu_custom_call.1} parent=11 // pred_fallthru
          _
        // Predicated region
        $region25: #{tpu_custom_call.1} parent=11 // pred_check
          %p467 = pneg %p165
        $region26: #{tpu_custom_call.1} parent=11 // pred_check_branch
          %469 = sbr.rel (%p467) target = $region28
        $region27: #{tpu_custom_call.1} parent=11 // pred_region
          _
        $region28: #{tpu_custom_call.1} parent=11 // pred_fallthru
          _
        // Predicated region
        $region29: #{tpu_custom_call.1} parent=11 // pred_check
          %p470 = pneg %p186
        $region30: #{tpu_custom_call.1} parent=11 // pred_check_branch
          %472 = sbr.rel (%p470) target = $region32
        $region31: #{tpu_custom_call.1} parent=11 // pred_region
          _
        $region32: #{tpu_custom_call.1} parent=11 // pred_fallthru
          _
        // Predicated region
        $region33: #{tpu_custom_call.1} parent=11 // pred_check
          %p473 = pneg %p207
        $region34: #{tpu_custom_call.1} parent=11 // pred_check_branch
          %475 = sbr.rel (%p473) target = $region36
        $region35: #{tpu_custom_call.1} parent=11 // pred_region
          _
        $region36: #{tpu_custom_call.1} parent=11 // pred_fallthru
          _
        // Predicated region
        $region37: #{tpu_custom_call.1} parent=11 // pred_check
          %p476 = pneg %p228
        $region38: #{tpu_custom_call.1} parent=11 // pred_check_branch
          %478 = sbr.rel (%p476) target = $region40
        $region39: #{tpu_custom_call.1} parent=11 // pred_region
          _
        $region40: #{tpu_custom_call.1} parent=11 // pred_fallthru
          _
        // Predicated region
        $region41: #{tpu_custom_call.1} parent=11 // pred_check
          %p479 = pneg %p249
        $region42: #{tpu_custom_call.1} parent=11 // pred_check_branch
          %481 = sbr.rel (%p479) target = $region44
        $region43: #{tpu_custom_call.1} parent=11 // pred_region
          _
        $region44: #{tpu_custom_call.1} parent=11 // pred_fallthru
          _
        // Predicated region
        $region45: #{tpu_custom_call.1} parent=11 // pred_check
          %p482 = pneg %p270
        $region46: #{tpu_custom_call.1} parent=11 // pred_check_branch
          %484 = sbr.rel (%p482) target = $region48
        $region47: #{tpu_custom_call.1} parent=11 // pred_region
          _
        $region48: #{tpu_custom_call.1} parent=11 // pred_fallthru
          _
        // Predicated region
        $region49: #{tpu_custom_call.1} parent=11 // pred_check
          %p485 = pneg %p291
        $region50: #{tpu_custom_call.1} parent=11 // pred_check_branch
          %487 = sbr.rel (%p485) target = $region52
        $region51: #{tpu_custom_call.1} parent=11 // pred_region
          _
        $region52: #{tpu_custom_call.1} parent=11 // pred_fallthru
          _
        // Predicated region
        $region53: #{tpu_custom_call.1} parent=11 // pred_check
          %p488 = pneg %p312
        $region54: #{tpu_custom_call.1} parent=11 // pred_check_branch
          %490 = sbr.rel (%p488) target = $region56
        $region55: #{tpu_custom_call.1} parent=11 // pred_region
          _
        $region56: #{tpu_custom_call.1} parent=11 // pred_fallthru
          _
        // Predicated region
        $region57: #{tpu_custom_call.1} parent=11 // pred_check
          %p491 = pneg %p333
        $region58: #{tpu_custom_call.1} parent=11 // pred_check_branch
          %493 = sbr.rel (%p491) target = $region60
        $region59: #{tpu_custom_call.1} parent=11 // pred_region
          _
        $region60: #{tpu_custom_call.1} parent=11 // pred_fallthru
          _
        // Predicated region
        $region61: #{tpu_custom_call.1} parent=11 // pred_check
          %p494 = pneg %p354
        $region62: #{tpu_custom_call.1} parent=11 // pred_check_branch
          %496 = sbr.rel (%p494) target = $region64
        $region63: #{tpu_custom_call.1} parent=11 // pred_region
          _
        $region64: #{tpu_custom_call.1} parent=11 // pred_fallthru
          _
        // Predicated region
        $region65: #{tpu_custom_call.1} parent=11 // pred_check
          %p497 = pneg %p375
        $region66: #{tpu_custom_call.1} parent=11 // pred_check_branch
          %499 = sbr.rel (%p497) target = $region68
        $region67: #{tpu_custom_call.1} parent=11 // pred_region
          _
        $region68: #{tpu_custom_call.1} parent=11 // pred_fallthru
          _
        // Predicated region
        $region69: #{tpu_custom_call.1} parent=11 // pred_check
          %p500 = pneg %p396
        $region70: #{tpu_custom_call.1} parent=11 // pred_check_branch
          %502 = sbr.rel (%p500) target = $region72
        $region71: #{tpu_custom_call.1} parent=11 // pred_region
          _
        $region72: #{tpu_custom_call.1} parent=11 // pred_fallthru
          _
        // Predicated region
        $region73: #{tpu_custom_call.1} parent=11 // pred_check
          %p503 = pneg %p417
        $region74: #{tpu_custom_call.1} parent=11 // pred_check_branch
          %505 = sbr.rel (%p503) target = $region76
        $region75: #{tpu_custom_call.1} parent=11 // pred_region
          _
        $region76: #{tpu_custom_call.1} parent=11 // pred_fallthru
          _
      $region12: #{tpu_custom_call.1} parent=5 // pred_fallthru
        _
      %p506 = scmp.lt.s32.totalorder %s29, 2
      // Predicated region
      $region77: #{tpu_custom_call.1} parent=5 // pred_check
        %p507 = pneg %p506
      $region78: #{tpu_custom_call.1} parent=5 // pred_check_branch
        %509 = sbr.rel (%p507) target = $region80
      $region79: #{tpu_custom_call.1} parent=5 // pred_region
        // Predicated region
        $region81: #{tpu_custom_call.1} parent=79 // pred_check
          %p510 = pneg %p49
        $region82: #{tpu_custom_call.1} parent=79 // pred_check_branch
          %512 = sbr.rel (%p510) target = $region84
        $region83: #{tpu_custom_call.1} parent=79 // pred_region
          %s513 = smul.u32 32, %s29
          %p514 = scmp.lt.s32.totalorder %s513, 63
          %s515 = scalar_select %p514, %s513, 63
          %s516 = smul.addr %s515, 8
          %s517 = scalar_lea.vmem %s0, %s516
          %s518 = smul.u32 32, %s29
        $region84: #{tpu_custom_call.1} parent=79 // pred_fallthru
          _
        // Predicated region
        $region85: #{tpu_custom_call.1} parent=79 // pred_check
          %p519 = pneg %p75
        $region86: #{tpu_custom_call.1} parent=79 // pred_check_branch
          %521 = sbr.rel (%p519) target = $region88
        $region87: #{tpu_custom_call.1} parent=79 // pred_region
          %s522 = smul.u32 32, %s29
          %p523 = scmp.lt.s32.totalorder %s522, 63
          %s524 = scalar_select %p523, %s522, 63
          %s525 = smul.addr %s524, 8
          %s526 = scalar_lea.vmem %s1, %s525
          %s527 = smul.u32 32, %s29
        $region88: #{tpu_custom_call.1} parent=79 // pred_fallthru
          _
      $region80: #{tpu_custom_call.1} parent=5 // pred_fallthru
        _
      %p528 = scmp.le.s32.totalorder 1, %s29
      %p529 = scmp.lt.s32.totalorder %s29, 3
      %p530 = pnand %p528, %p529
      %p531 = pneg %p530
      // Predicated region
      $region89: #{tpu_custom_call.1} parent=5 // pred_check
        _
      $region90: #{tpu_custom_call.1} parent=5 // pred_check_branch
        %533 = sbr.rel (%p530) target = $region92
      $region91: #{tpu_custom_call.1} parent=5 // pred_region
        %s534 = ssub.s32 %s29, 1
        %s535 = smul.u32 32, %s34
        %p536 = scmp.lt.s32.totalorder %s535, 63
        %s537 = scalar_select %p536, %s535, 63
        %s538 = smul.addr %s537, 8
        %s539 = scalar_lea.vmem %s0, %s538
        %p540 = pneg %p55
        %p541 = pneg %p52
        %s542 = smul.u32 32, %s34
        %p543 = scmp.lt.s32.totalorder %s542, 63
        %s544 = scalar_select %p543, %s542, 63
        %s545 = smul.addr %s544, 8
        %s546 = scalar_lea.vmem %s1, %s545
        %p547 = pneg %p81
        %p548 = pneg %p78
        %p549 = pneg %p102
        %p550 = pneg %p99
        %p551 = pneg %p123
        %p552 = pneg %p120
        %p553 = pneg %p144
        %p554 = pneg %p141
        %p555 = pneg %p165
        %p556 = pneg %p162
        %p557 = pneg %p186
        %p558 = pneg %p183
        %p559 = pneg %p207
        %p560 = pneg %p204
        %p561 = pneg %p228
        %p562 = pneg %p225
        %p563 = pneg %p249
        %p564 = pneg %p246
        %p565 = pneg %p270
        %p566 = pneg %p267
        %p567 = pneg %p291
        %p568 = pneg %p288
        %p569 = pneg %p312
        %p570 = pneg %p309
        %p571 = pneg %p333
        %p572 = pneg %p330
        %p573 = pneg %p354
        %p574 = pneg %p351
        %p575 = pneg %p375
        %p576 = pneg %p372
        %p577 = pneg %p396
        %p578 = pneg %p393
        %p579 = pneg %p417
        %p580 = pneg %p414
        %p581 = pneg %p443
        %p582 = pneg %p440
        %s583 = sand.u32 %s430, 1
        %s584 = scalar_lea.sflag [#allocation4], %s583
        %s585 = sand.u32 %s430, 1
        %s586 = smul.addr %s585, 2
        %s587 = scalar_lea.vmem [#allocation3], %s586
        %s588 = smul.u32 32, %s34
        %p589 = scmp.lt.s32.totalorder %s588, 63
        %s590 = scalar_select %p589, %s588, 63
        %s591 = smul.addr %s590, 8
        %s592 = scalar_lea.vmem %s0, %s591
        %s593 = smul.u32 32, %s34
        %s594 = smul.u32 32, %s34
        %p595 = scmp.lt.s32.totalorder %s594, 63
        %s596 = scalar_select %p595, %s594, 63
        %s597 = smul.addr %s596, 8
        %s598 = scalar_lea.vmem %s1, %s597
        %s599 = smul.u32 32, %s34
        %s600 = smul.u32 2, %s34
        %v602 = vld [vmem:[%s592] sm:$0xff]
        %v603 = vld [vmem:[%s592 + $0x8] sm:$0xff]
        %v604 = vld [vmem:[%s592 + $0x10] sm:$0xff]
        %v605 = vld [vmem:[%s592 + $0x18] sm:$0xff]
        %v606 = vld [vmem:[%s592 + $0x20] sm:$0xff]
        %v607 = vld [vmem:[%s592 + $0x28] sm:$0xff]
        %v608 = vld [vmem:[%s592 + $0x30] sm:$0xff]
        %v609 = vld [vmem:[%s592 + $0x38] sm:$0xff]
        %v610 = vld [vmem:[%s592 + $0x40] sm:$0xff]
        %v611 = vld [vmem:[%s592 + $0x48] sm:$0xff]
        %v612 = vld [vmem:[%s592 + $0x50] sm:$0xff]
        %v613 = vld [vmem:[%s592 + $0x58] sm:$0xff]
        %v614 = vld [vmem:[%s592 + $0x60] sm:$0xff]
        %v615 = vld [vmem:[%s592 + $0x68] sm:$0xff]
        %v616 = vld [vmem:[%s592 + $0x70] sm:$0xff]
        %v617 = vld [vmem:[%s592 + $0x78] sm:$0xff]
        %v618 = vld [vmem:[%s592 + $0x80] sm:$0xff]
        %v619 = vld [vmem:[%s592 + $0x88] sm:$0xff]
        %v620 = vld [vmem:[%s592 + $0x90] sm:$0xff]
        %v621 = vld [vmem:[%s592 + $0x98] sm:$0xff]
        %v622 = vld [vmem:[%s592 + $0xa0] sm:$0xff]
        %v623 = vld [vmem:[%s592 + $0xa8] sm:$0xff]
        %v624 = vld [vmem:[%s592 + $0xb0] sm:$0xff]
        %v625 = vld [vmem:[%s592 + $0xb8] sm:$0xff]
        %v626 = vld [vmem:[%s592 + $0xc0] sm:$0xff]
        %v627 = vld [vmem:[%s592 + $0xc8] sm:$0xff]
        %v628 = vld [vmem:[%s592 + $0xd0] sm:$0xff]
        %v629 = vld [vmem:[%s592 + $0xd8] sm:$0xff]
        %v630 = vld [vmem:[%s592 + $0xe0] sm:$0xff]
        %v631 = vld [vmem:[%s592 + $0xe8] sm:$0xff]
        %v632 = vld [vmem:[%s592 + $0xf0] sm:$0xff]
        %v633 = vld [vmem:[%s592 + $0xf8] sm:$0xff]
        %v634 = vlaneseq
        %v635 = vand.u32 %v634, 127
        %v636 = vadd.s32 %v635, 128
        %637 = vset.pattern.permute.xlu0 0
        %638 = vperm.xlu0 %637, %v602
        %v639 = vpop.permute.xlu0 %638
        %640 = vset.pattern.permute.xlu0 0
        %641 = vperm.xlu0 %640, %v603
        %v642 = vpop.permute.xlu0 %641
        %643 = vset.pattern.permute.xlu0 0
        %644 = vperm.xlu0 %643, %v604
        %v645 = vpop.permute.xlu0 %644
        %646 = vset.pattern.permute.xlu0 0
        %647 = vperm.xlu0 %646, %v605
        %v648 = vpop.permute.xlu0 %647
        %649 = vset.pattern.permute.xlu0 0
        %650 = vperm.xlu0 %649, %v606
        %v651 = vpop.permute.xlu0 %650
        %652 = vset.pattern.permute.xlu0 0
        %653 = vperm.xlu0 %652, %v607
        %v654 = vpop.permute.xlu0 %653
        %655 = vset.pattern.permute.xlu0 0
        %656 = vperm.xlu0 %655, %v608
        %v657 = vpop.permute.xlu0 %656
        %658 = vset.pattern.permute.xlu0 0
        %659 = vperm.xlu0 %658, %v609
        %v660 = vpop.permute.xlu0 %659
        %661 = vset.pattern.permute.xlu0 0
        %662 = vperm.xlu0 %661, %v610
        %v663 = vpop.permute.xlu0 %662
        %664 = vset.pattern.permute.xlu0 0
        %665 = vperm.xlu0 %664, %v611
        %v666 = vpop.permute.xlu0 %665
        %667 = vset.pattern.permute.xlu0 0
        %668 = vperm.xlu0 %667, %v612
        %v669 = vpop.permute.xlu0 %668
        %670 = vset.pattern.permute.xlu0 0
        %671 = vperm.xlu0 %670, %v613
        %v672 = vpop.permute.xlu0 %671
        %673 = vset.pattern.permute.xlu0 0
        %674 = vperm.xlu0 %673, %v614
        %v675 = vpop.permute.xlu0 %674
        %676 = vset.pattern.permute.xlu0 0
        %677 = vperm.xlu0 %676, %v615
        %v678 = vpop.permute.xlu0 %677
        %679 = vset.pattern.permute.xlu0 0
        %680 = vperm.xlu0 %679, %v616
        %v681 = vpop.permute.xlu0 %680
        %682 = vset.pattern.permute.xlu0 0
        %683 = vperm.xlu0 %682, %v617
        %v684 = vpop.permute.xlu0 %683
        %685 = vset.pattern.permute.xlu0 0
        %686 = vperm.xlu0 %685, %v618
        %v687 = vpop.permute.xlu0 %686
        %688 = vset.pattern.permute.xlu0 0
        %689 = vperm.xlu0 %688, %v619
        %v690 = vpop.permute.xlu0 %689
        %691 = vset.pattern.permute.xlu0 0
        %692 = vperm.xlu0 %691, %v620
        %v693 = vpop.permute.xlu0 %692
        %694 = vset.pattern.permute.xlu0 0
        %695 = vperm.xlu0 %694, %v621
        %v696 = vpop.permute.xlu0 %695
        %697 = vset.pattern.permute.xlu0 0
        %698 = vperm.xlu0 %697, %v622
        %v699 = vpop.permute.xlu0 %698
        %700 = vset.pattern.permute.xlu0 0
        %701 = vperm.xlu0 %700, %v623
        %v702 = vpop.permute.xlu0 %701
        %703 = vset.pattern.permute.xlu0 0
        %704 = vperm.xlu0 %703, %v624
        %v705 = vpop.permute.xlu0 %704
        %706 = vset.pattern.permute.xlu0 0
        %707 = vperm.xlu0 %706, %v625
        %v708 = vpop.permute.xlu0 %707
        %709 = vset.pattern.permute.xlu0 0
        %710 = vperm.xlu0 %709, %v626
        %v711 = vpop.permute.xlu0 %710
        %712 = vset.pattern.permute.xlu0 0
        %713 = vperm.xlu0 %712, %v627
        %v714 = vpop.permute.xlu0 %713
        %715 = vset.pattern.permute.xlu0 0
        %716 = vperm.xlu0 %715, %v628
        %v717 = vpop.permute.xlu0 %716
        %718 = vset.pattern.permute.xlu0 0
        %719 = vperm.xlu0 %718, %v629
        %v720 = vpop.permute.xlu0 %719
        %721 = vset.pattern.permute.xlu0 0
        %722 = vperm.xlu0 %721, %v630
        %v723 = vpop.permute.xlu0 %722
        %724 = vset.pattern.permute.xlu0 0
        %725 = vperm.xlu0 %724, %v631
        %v726 = vpop.permute.xlu0 %725
        %727 = vset.pattern.permute.xlu0 0
        %728 = vperm.xlu0 %727, %v632
        %v729 = vpop.permute.xlu0 %728
        %730 = vset.pattern.permute.xlu0 0
        %731 = vperm.xlu0 %730, %v633
        %v732 = vpop.permute.xlu0 %731
        %vm733 = vcmp.eq.s32.totalorder %v635, %v639
        %vm734 = vcmp.eq.s32.totalorder %v636, %v639
        %vm735 = vcmp.eq.s32.totalorder %v635, %v642
        %vm736 = vcmp.eq.s32.totalorder %v636, %v642
        %vm737 = vcmp.eq.s32.totalorder %v635, %v645
        %vm738 = vcmp.eq.s32.totalorder %v636, %v645
        %vm739 = vcmp.eq.s32.totalorder %v635, %v648
        %vm740 = vcmp.eq.s32.totalorder %v636, %v648
        %vm741 = vcmp.eq.s32.totalorder %v635, %v651
        %vm742 = vcmp.eq.s32.totalorder %v636, %v651
        %vm743 = vcmp.eq.s32.totalorder %v635, %v654
        %vm744 = vcmp.eq.s32.totalorder %v636, %v654
        %vm745 = vcmp.eq.s32.totalorder %v635, %v657
        %vm746 = vcmp.eq.s32.totalorder %v636, %v657
        %vm747 = vcmp.eq.s32.totalorder %v635, %v660
        %vm748 = vcmp.eq.s32.totalorder %v636, %v660
        %vm749 = vcmp.eq.s32.totalorder %v635, %v663
        %vm750 = vcmp.eq.s32.totalorder %v636, %v663
        %vm751 = vcmp.eq.s32.totalorder %v635, %v666
        %vm752 = vcmp.eq.s32.totalorder %v636, %v666
        %vm753 = vcmp.eq.s32.totalorder %v635, %v669
        %vm754 = vcmp.eq.s32.totalorder %v636, %v669
        %vm755 = vcmp.eq.s32.totalorder %v635, %v672
        %vm756 = vcmp.eq.s32.totalorder %v636, %v672
        %vm757 = vcmp.eq.s32.totalorder %v635, %v675
        %vm758 = vcmp.eq.s32.totalorder %v636, %v675
        %vm759 = vcmp.eq.s32.totalorder %v635, %v678
        %vm760 = vcmp.eq.s32.totalorder %v636, %v678
        %vm761 = vcmp.eq.s32.totalorder %v635, %v681
        %vm762 = vcmp.eq.s32.totalorder %v636, %v681
        %vm763 = vcmp.eq.s32.totalorder %v635, %v684
        %vm764 = vcmp.eq.s32.totalorder %v636, %v684
        %vm765 = vcmp.eq.s32.totalorder %v635, %v687
        %vm766 = vcmp.eq.s32.totalorder %v636, %v687
        %vm767 = vcmp.eq.s32.totalorder %v635, %v690
        %vm768 = vcmp.eq.s32.totalorder %v636, %v690
        %vm769 = vcmp.eq.s32.totalorder %v635, %v693
        %vm770 = vcmp.eq.s32.totalorder %v636, %v693
        %vm771 = vcmp.eq.s32.totalorder %v635, %v696
        %vm772 = vcmp.eq.s32.totalorder %v636, %v696
        %vm773 = vcmp.eq.s32.totalorder %v635, %v699
        %vm774 = vcmp.eq.s32.totalorder %v636, %v699
        %vm775 = vcmp.eq.s32.totalorder %v635, %v702
        %vm776 = vcmp.eq.s32.totalorder %v636, %v702
        %vm777 = vcmp.eq.s32.totalorder %v635, %v705
        %vm778 = vcmp.eq.s32.totalorder %v636, %v705
        %vm779 = vcmp.eq.s32.totalorder %v635, %v708
        %vm780 = vcmp.eq.s32.totalorder %v636, %v708
        %vm781 = vcmp.eq.s32.totalorder %v635, %v711
        %vm782 = vcmp.eq.s32.totalorder %v636, %v711
        %vm783 = vcmp.eq.s32.totalorder %v635, %v714
        %vm784 = vcmp.eq.s32.totalorder %v636, %v714
        %vm785 = vcmp.eq.s32.totalorder %v635, %v717
        %vm786 = vcmp.eq.s32.totalorder %v636, %v717
        %vm787 = vcmp.eq.s32.totalorder %v635, %v720
        %vm788 = vcmp.eq.s32.totalorder %v636, %v720
        %vm789 = vcmp.eq.s32.totalorder %v635, %v723
        %vm790 = vcmp.eq.s32.totalorder %v636, %v723
        %vm791 = vcmp.eq.s32.totalorder %v635, %v726
        %vm792 = vcmp.eq.s32.totalorder %v636, %v726
        %vm793 = vcmp.eq.s32.totalorder %v635, %v729
        %vm794 = vcmp.eq.s32.totalorder %v636, %v729
        %vm795 = vcmp.eq.s32.totalorder %v635, %v732
        %vm796 = vcmp.eq.s32.totalorder %v636, %v732
        %797 = vset.pattern.permute.xlu0 1
        %798 = vperm.xlu0 %797, %v602
        %v799 = vpop.permute.xlu0 %798
        %800 = vset.pattern.permute.xlu0 1
        %801 = vperm.xlu0 %800, %v603
        %v802 = vpop.permute.xlu0 %801
        %803 = vset.pattern.permute.xlu0 1
        %804 = vperm.xlu0 %803, %v604
        %v805 = vpop.permute.xlu0 %804
        %806 = vset.pattern.permute.xlu0 1
        %807 = vperm.xlu0 %806, %v605
        %v808 = vpop.permute.xlu0 %807
        %809 = vset.pattern.permute.xlu0 1
        %810 = vperm.xlu0 %809, %v606
        %v811 = vpop.permute.xlu0 %810
        %812 = vset.pattern.permute.xlu0 1
        %813 = vperm.xlu0 %812, %v607
        %v814 = vpop.permute.xlu0 %813
        %815 = vset.pattern.permute.xlu0 1
        %816 = vperm.xlu0 %815, %v608
        %v817 = vpop.permute.xlu0 %816
        %818 = vset.pattern.permute.xlu0 1
        %819 = vperm.xlu0 %818, %v609
        %v820 = vpop.permute.xlu0 %819
        %821 = vset.pattern.permute.xlu0 1
        %822 = vperm.xlu0 %821, %v610
        %v823 = vpop.permute.xlu0 %822
        %824 = vset.pattern.permute.xlu0 1
        %825 = vperm.xlu0 %824, %v611
        %v826 = vpop.permute.xlu0 %825
        %827 = vset.pattern.permute.xlu0 1
        %828 = vperm.xlu0 %827, %v612
        %v829 = vpop.permute.xlu0 %828
        %830 = vset.pattern.permute.xlu0 1
        %831 = vperm.xlu0 %830, %v613
        %v832 = vpop.permute.xlu0 %831
        %833 = vset.pattern.permute.xlu0 1
        %834 = vperm.xlu0 %833, %v614
        %v835 = vpop.permute.xlu0 %834
        %836 = vset.pattern.permute.xlu0 1
        %837 = vperm.xlu0 %836, %v615
        %v838 = vpop.permute.xlu0 %837
        %839 = vset.pattern.permute.xlu0 1
        %840 = vperm.xlu0 %839, %v616
        %v841 = vpop.permute.xlu0 %840
        %842 = vset.pattern.permute.xlu0 1
        %843 = vperm.xlu0 %842, %v617
        %v844 = vpop.permute.xlu0 %843
        %845 = vset.pattern.permute.xlu0 1
        %846 = vperm.xlu0 %845, %v618
        %v847 = vpop.permute.xlu0 %846
        %848 = vset.pattern.permute.xlu0 1
        %849 = vperm.xlu0 %848, %v619
        %v850 = vpop.permute.xlu0 %849
        %851 = vset.pattern.permute.xlu0 1
        %852 = vperm.xlu0 %851, %v620
        %v853 = vpop.permute.xlu0 %852
        %854 = vset.pattern.permute.xlu0 1
        %855 = vperm.xlu0 %854, %v621
        %v856 = vpop.permute.xlu0 %855
        %857 = vset.pattern.permute.xlu0 1
        %858 = vperm.xlu0 %857, %v622
        %v859 = vpop.permute.xlu0 %858
        %860 = vset.pattern.permute.xlu0 1
        %861 = vperm.xlu0 %860, %v623
        %v862 = vpop.permute.xlu0 %861
        %863 = vset.pattern.permute.xlu0 1
        %864 = vperm.xlu0 %863, %v624
        %v865 = vpop.permute.xlu0 %864
        %866 = vset.pattern.permute.xlu0 1
        %867 = vperm.xlu0 %866, %v625
        %v868 = vpop.permute.xlu0 %867
        %869 = vset.pattern.permute.xlu0 1
        %870 = vperm.xlu0 %869, %v626
        %v871 = vpop.permute.xlu0 %870
        %872 = vset.pattern.permute.xlu0 1
        %873 = vperm.xlu0 %872, %v627
        %v874 = vpop.permute.xlu0 %873
        %875 = vset.pattern.permute.xlu0 1
        %876 = vperm.xlu0 %875, %v628
        %v877 = vpop.permute.xlu0 %876
        %878 = vset.pattern.permute.xlu0 1
        %879 = vperm.xlu0 %878, %v629
        %v880 = vpop.permute.xlu0 %879
        %881 = vset.pattern.permute.xlu0 1
        %882 = vperm.xlu0 %881, %v630
        %v883 = vpop.permute.xlu0 %882
        %884 = vset.pattern.permute.xlu0 1
        %885 = vperm.xlu0 %884, %v631
        %v886 = vpop.permute.xlu0 %885
        %887 = vset.pattern.permute.xlu0 1
        %888 = vperm.xlu0 %887, %v632
        %v889 = vpop.permute.xlu0 %888
        %890 = vset.pattern.permute.xlu0 1
        %891 = vperm.xlu0 %890, %v633
        %v892 = vpop.permute.xlu0 %891
        %vm893 = vcmp.eq.s32.totalorder %v635, %v799
        %vm894 = vcmp.eq.s32.totalorder %v636, %v799
        %vm895 = vcmp.eq.s32.totalorder %v635, %v802
        %vm896 = vcmp.eq.s32.totalorder %v636, %v802
        %vm897 = vcmp.eq.s32.totalorder %v635, %v805
        %vm898 = vcmp.eq.s32.totalorder %v636, %v805
        %vm899 = vcmp.eq.s32.totalorder %v635, %v808
        %vm900 = vcmp.eq.s32.totalorder %v636, %v808
        %vm901 = vcmp.eq.s32.totalorder %v635, %v811
        %vm902 = vcmp.eq.s32.totalorder %v636, %v811
        %vm903 = vcmp.eq.s32.totalorder %v635, %v814
        %vm904 = vcmp.eq.s32.totalorder %v636, %v814
        %vm905 = vcmp.eq.s32.totalorder %v635, %v817
        %vm906 = vcmp.eq.s32.totalorder %v636, %v817
        %vm907 = vcmp.eq.s32.totalorder %v635, %v820
        %vm908 = vcmp.eq.s32.totalorder %v636, %v820
        %vm909 = vcmp.eq.s32.totalorder %v635, %v823
        %vm910 = vcmp.eq.s32.totalorder %v636, %v823
        %vm911 = vcmp.eq.s32.totalorder %v635, %v826
        %vm912 = vcmp.eq.s32.totalorder %v636, %v826
        %vm913 = vcmp.eq.s32.totalorder %v635, %v829
        %vm914 = vcmp.eq.s32.totalorder %v636, %v829
        %vm915 = vcmp.eq.s32.totalorder %v635, %v832
        %vm916 = vcmp.eq.s32.totalorder %v636, %v832
        %vm917 = vcmp.eq.s32.totalorder %v635, %v835
        %vm918 = vcmp.eq.s32.totalorder %v636, %v835
        %vm919 = vcmp.eq.s32.totalorder %v635, %v838
        %vm920 = vcmp.eq.s32.totalorder %v636, %v838
        %vm921 = vcmp.eq.s32.totalorder %v635, %v841
        %vm922 = vcmp.eq.s32.totalorder %v636, %v841
        %vm923 = vcmp.eq.s32.totalorder %v635, %v844
        %vm924 = vcmp.eq.s32.totalorder %v636, %v844
        %vm925 = vcmp.eq.s32.totalorder %v635, %v847
        %vm926 = vcmp.eq.s32.totalorder %v636, %v847
        %vm927 = vcmp.eq.s32.totalorder %v635, %v850
        %vm928 = vcmp.eq.s32.totalorder %v636, %v850
        %vm929 = vcmp.eq.s32.totalorder %v635, %v853
        %vm930 = vcmp.eq.s32.totalorder %v636, %v853
        %vm931 = vcmp.eq.s32.totalorder %v635, %v856
        %vm932 = vcmp.eq.s32.totalorder %v636, %v856
        %vm933 = vcmp.eq.s32.totalorder %v635, %v859
        %vm934 = vcmp.eq.s32.totalorder %v636, %v859
        %vm935 = vcmp.eq.s32.totalorder %v635, %v862
        %vm936 = vcmp.eq.s32.totalorder %v636, %v862
        %vm937 = vcmp.eq.s32.totalorder %v635, %v865
        %vm938 = vcmp.eq.s32.totalorder %v636, %v865
        %vm939 = vcmp.eq.s32.totalorder %v635, %v868
        %vm940 = vcmp.eq.s32.totalorder %v636, %v868
        %vm941 = vcmp.eq.s32.totalorder %v635, %v871
        %vm942 = vcmp.eq.s32.totalorder %v636, %v871
        %vm943 = vcmp.eq.s32.totalorder %v635, %v874
        %vm944 = vcmp.eq.s32.totalorder %v636, %v874
        %vm945 = vcmp.eq.s32.totalorder %v635, %v877
        %vm946 = vcmp.eq.s32.totalorder %v636, %v877
        %vm947 = vcmp.eq.s32.totalorder %v635, %v880
        %vm948 = vcmp.eq.s32.totalorder %v636, %v880
        %vm949 = vcmp.eq.s32.totalorder %v635, %v883
        %vm950 = vcmp.eq.s32.totalorder %v636, %v883
        %vm951 = vcmp.eq.s32.totalorder %v635, %v886
        %vm952 = vcmp.eq.s32.totalorder %v636, %v886
        %vm953 = vcmp.eq.s32.totalorder %v635, %v889
        %vm954 = vcmp.eq.s32.totalorder %v636, %v889
        %vm955 = vcmp.eq.s32.totalorder %v635, %v892
        %vm956 = vcmp.eq.s32.totalorder %v636, %v892
        %vm957 = vmor %vm733, %vm893
        %vm958 = vmor %vm734, %vm894
        %vm959 = vmor %vm735, %vm895
        %vm960 = vmor %vm736, %vm896
        %vm961 = vmor %vm737, %vm897
        %vm962 = vmor %vm738, %vm898
        %vm963 = vmor %vm739, %vm899
        %vm964 = vmor %vm740, %vm900
        %vm965 = vmor %vm741, %vm901
        %vm966 = vmor %vm742, %vm902
        %vm967 = vmor %vm743, %vm903
        %vm968 = vmor %vm744, %vm904
        %vm969 = vmor %vm745, %vm905
        %vm970 = vmor %vm746, %vm906
        %vm971 = vmor %vm747, %vm907
        %vm972 = vmor %vm748, %vm908
        %vm973 = vmor %vm749, %vm909
        %vm974 = vmor %vm750, %vm910
        %vm975 = vmor %vm751, %vm911
        %vm976 = vmor %vm752, %vm912
        %vm977 = vmor %vm753, %vm913
        %vm978 = vmor %vm754, %vm914
        %vm979 = vmor %vm755, %vm915
        %vm980 = vmor %vm756, %vm916
        %vm981 = vmor %vm757, %vm917
        %vm982 = vmor %vm758, %vm918
        %vm983 = vmor %vm759, %vm919
        %vm984 = vmor %vm760, %vm920
        %vm985 = vmor %vm761, %vm921
        %vm986 = vmor %vm762, %vm922
        %vm987 = vmor %vm763, %vm923
        %vm988 = vmor %vm764, %vm924
        %vm989 = vmor %vm765, %vm925
        %vm990 = vmor %vm766, %vm926
        %vm991 = vmor %vm767, %vm927
        %vm992 = vmor %vm768, %vm928
        %vm993 = vmor %vm769, %vm929
        %vm994 = vmor %vm770, %vm930
        %vm995 = vmor %vm771, %vm931
        %vm996 = vmor %vm772, %vm932
        %vm997 = vmor %vm773, %vm933
        %vm998 = vmor %vm774, %vm934
        %vm999 = vmor %vm775, %vm935
        %vm1000 = vmor %vm776, %vm936
        %vm1001 = vmor %vm777, %vm937
        %vm1002 = vmor %vm778, %vm938
        %vm1003 = vmor %vm779, %vm939
        %vm1004 = vmor %vm780, %vm940
        %vm1005 = vmor %vm781, %vm941
        %vm1006 = vmor %vm782, %vm942
        %vm1007 = vmor %vm783, %vm943
        %vm1008 = vmor %vm784, %vm944
        %vm1009 = vmor %vm785, %vm945
        %vm1010 = vmor %vm786, %vm946
        %vm1011 = vmor %vm787, %vm947
        %vm1012 = vmor %vm788, %vm948
        %vm1013 = vmor %vm789, %vm949
        %vm1014 = vmor %vm790, %vm950
        %vm1015 = vmor %vm791, %vm951
        %vm1016 = vmor %vm792, %vm952
        %vm1017 = vmor %vm793, %vm953
        %vm1018 = vmor %vm794, %vm954
        %vm1019 = vmor %vm795, %vm955
        %vm1020 = vmor %vm796, %vm956
        %1021 = vset.pattern.permute.xlu0 2
        %1022 = vperm.xlu0 %1021, %v602
        %v1023 = vpop.permute.xlu0 %1022
        %1024 = vset.pattern.permute.xlu0 2
        %1025 = vperm.xlu0 %1024, %v603
        %v1026 = vpop.permute.xlu0 %1025
        %1027 = vset.pattern.permute.xlu0 2
        %1028 = vperm.xlu0 %1027, %v604
        %v1029 = vpop.permute.xlu0 %1028
        %1030 = vset.pattern.permute.xlu0 2
        %1031 = vperm.xlu0 %1030, %v605
        %v1032 = vpop.permute.xlu0 %1031
        %1033 = vset.pattern.permute.xlu0 2
        %1034 = vperm.xlu0 %1033, %v606
        %v1035 = vpop.permute.xlu0 %1034
        %1036 = vset.pattern.permute.xlu0 2
        %1037 = vperm.xlu0 %1036, %v607
        %v1038 = vpop.permute.xlu0 %1037
        %1039 = vset.pattern.permute.xlu0 2
        %1040 = vperm.xlu0 %1039, %v608
        %v1041 = vpop.permute.xlu0 %1040
        %1042 = vset.pattern.permute.xlu0 2
        %1043 = vperm.xlu0 %1042, %v609
        %v1044 = vpop.permute.xlu0 %1043
        %1045 = vset.pattern.permute.xlu0 2
        %1046 = vperm.xlu0 %1045, %v610
        %v1047 = vpop.permute.xlu0 %1046
        %1048 = vset.pattern.permute.xlu0 2
        %1049 = vperm.xlu0 %1048, %v611
        %v1050 = vpop.permute.xlu0 %1049
        %1051 = vset.pattern.permute.xlu0 2
        %1052 = vperm.xlu0 %1051, %v612
        %v1053 = vpop.permute.xlu0 %1052
        %1054 = vset.pattern.permute.xlu0 2
        %1055 = vperm.xlu0 %1054, %v613
        %v1056 = vpop.permute.xlu0 %1055
        %1057 = vset.pattern.permute.xlu0 2
        %1058 = vperm.xlu0 %1057, %v614
        %v1059 = vpop.permute.xlu0 %1058
        %1060 = vset.pattern.permute.xlu0 2
        %1061 = vperm.xlu0 %1060, %v615
        %v1062 = vpop.permute.xlu0 %1061
        %1063 = vset.pattern.permute.xlu0 2
        %1064 = vperm.xlu0 %1063, %v616
        %v1065 = vpop.permute.xlu0 %1064
        %1066 = vset.pattern.permute.xlu0 2
        %1067 = vperm.xlu0 %1066, %v617
        %v1068 = vpop.permute.xlu0 %1067
        %1069 = vset.pattern.permute.xlu0 2
        %1070 = vperm.xlu0 %1069, %v618
        %v1071 = vpop.permute.xlu0 %1070
        %1072 = vset.pattern.permute.xlu0 2
        %1073 = vperm.xlu0 %1072, %v619
        %v1074 = vpop.permute.xlu0 %1073
        %1075 = vset.pattern.permute.xlu0 2
        %1076 = vperm.xlu0 %1075, %v620
        %v1077 = vpop.permute.xlu0 %1076
        %1078 = vset.pattern.permute.xlu0 2
        %1079 = vperm.xlu0 %1078, %v621
        %v1080 = vpop.permute.xlu0 %1079
        %1081 = vset.pattern.permute.xlu0 2
        %1082 = vperm.xlu0 %1081, %v622
        %v1083 = vpop.permute.xlu0 %1082
        %1084 = vset.pattern.permute.xlu0 2
        %1085 = vperm.xlu0 %1084, %v623
        %v1086 = vpop.permute.xlu0 %1085
        %1087 = vset.pattern.permute.xlu0 2
        %1088 = vperm.xlu0 %1087, %v624
        %v1089 = vpop.permute.xlu0 %1088
        %1090 = vset.pattern.permute.xlu0 2
        %1091 = vperm.xlu0 %1090, %v625
        %v1092 = vpop.permute.xlu0 %1091
        %1093 = vset.pattern.permute.xlu0 2
        %1094 = vperm.xlu0 %1093, %v626
        %v1095 = vpop.permute.xlu0 %1094
        %1096 = vset.pattern.permute.xlu0 2
        %1097 = vperm.xlu0 %1096, %v627
        %v1098 = vpop.permute.xlu0 %1097
        %1099 = vset.pattern.permute.xlu0 2
        %1100 = vperm.xlu0 %1099, %v628
        %v1101 = vpop.permute.xlu0 %1100
        %1102 = vset.pattern.permute.xlu0 2
        %1103 = vperm.xlu0 %1102, %v629
        %v1104 = vpop.permute.xlu0 %1103
        %1105 = vset.pattern.permute.xlu0 2
        %1106 = vperm.xlu0 %1105, %v630
        %v1107 = vpop.permute.xlu0 %1106
        %1108 = vset.pattern.permute.xlu0 2
        %1109 = vperm.xlu0 %1108, %v631
        %v1110 = vpop.permute.xlu0 %1109
        %1111 = vset.pattern.permute.xlu0 2
        %1112 = vperm.xlu0 %1111, %v632
        %v1113 = vpop.permute.xlu0 %1112
        %1114 = vset.pattern.permute.xlu0 2
        %1115 = vperm.xlu0 %1114, %v633
        %v1116 = vpop.permute.xlu0 %1115
        %vm1117 = vcmp.eq.s32.totalorder %v635, %v1023
        %vm1118 = vcmp.eq.s32.totalorder %v636, %v1023
        %vm1119 = vcmp.eq.s32.totalorder %v635, %v1026
        %vm1120 = vcmp.eq.s32.totalorder %v636, %v1026
        %vm1121 = vcmp.eq.s32.totalorder %v635, %v1029
        %vm1122 = vcmp.eq.s32.totalorder %v636, %v1029
        %vm1123 = vcmp.eq.s32.totalorder %v635, %v1032
        %vm1124 = vcmp.eq.s32.totalorder %v636, %v1032
        %vm1125 = vcmp.eq.s32.totalorder %v635, %v1035
        %vm1126 = vcmp.eq.s32.totalorder %v636, %v1035
        %vm1127 = vcmp.eq.s32.totalorder %v635, %v1038
        %vm1128 = vcmp.eq.s32.totalorder %v636, %v1038
        %vm1129 = vcmp.eq.s32.totalorder %v635, %v1041
        %vm1130 = vcmp.eq.s32.totalorder %v636, %v1041
        %vm1131 = vcmp.eq.s32.totalorder %v635, %v1044
        %vm1132 = vcmp.eq.s32.totalorder %v636, %v1044
        %vm1133 = vcmp.eq.s32.totalorder %v635, %v1047
        %vm1134 = vcmp.eq.s32.totalorder %v636, %v1047
        %vm1135 = vcmp.eq.s32.totalorder %v635, %v1050
        %vm1136 = vcmp.eq.s32.totalorder %v636, %v1050
        %vm1137 = vcmp.eq.s32.totalorder %v635, %v1053
        %vm1138 = vcmp.eq.s32.totalorder %v636, %v1053
        %vm1139 = vcmp.eq.s32.totalorder %v635, %v1056
        %vm1140 = vcmp.eq.s32.totalorder %v636, %v1056
        %vm1141 = vcmp.eq.s32.totalorder %v635, %v1059
        %vm1142 = vcmp.eq.s32.totalorder %v636, %v1059
        %vm1143 = vcmp.eq.s32.totalorder %v635, %v1062
        %vm1144 = vcmp.eq.s32.totalorder %v636, %v1062
        %vm1145 = vcmp.eq.s32.totalorder %v635, %v1065
        %vm1146 = vcmp.eq.s32.totalorder %v636, %v1065
        %vm1147 = vcmp.eq.s32.totalorder %v635, %v1068
        %vm1148 = vcmp.eq.s32.totalorder %v636, %v1068
        %vm1149 = vcmp.eq.s32.totalorder %v635, %v1071
        %vm1150 = vcmp.eq.s32.totalorder %v636, %v1071
        %vm1151 = vcmp.eq.s32.totalorder %v635, %v1074
        %vm1152 = vcmp.eq.s32.totalorder %v636, %v1074
        %vm1153 = vcmp.eq.s32.totalorder %v635, %v1077
        %vm1154 = vcmp.eq.s32.totalorder %v636, %v1077
        %vm1155 = vcmp.eq.s32.totalorder %v635, %v1080
        %vm1156 = vcmp.eq.s32.totalorder %v636, %v1080
        %vm1157 = vcmp.eq.s32.totalorder %v635, %v1083
        %vm1158 = vcmp.eq.s32.totalorder %v636, %v1083
        %vm1159 = vcmp.eq.s32.totalorder %v635, %v1086
        %vm1160 = vcmp.eq.s32.totalorder %v636, %v1086
        %vm1161 = vcmp.eq.s32.totalorder %v635, %v1089
        %vm1162 = vcmp.eq.s32.totalorder %v636, %v1089
        %vm1163 = vcmp.eq.s32.totalorder %v635, %v1092
        %vm1164 = vcmp.eq.s32.totalorder %v636, %v1092
        %vm1165 = vcmp.eq.s32.totalorder %v635, %v1095
        %vm1166 = vcmp.eq.s32.totalorder %v636, %v1095
        %vm1167 = vcmp.eq.s32.totalorder %v635, %v1098
        %vm1168 = vcmp.eq.s32.totalorder %v636, %v1098
        %vm1169 = vcmp.eq.s32.totalorder %v635, %v1101
        %vm1170 = vcmp.eq.s32.totalorder %v636, %v1101
        %vm1171 = vcmp.eq.s32.totalorder %v635, %v1104
        %vm1172 = vcmp.eq.s32.totalorder %v636, %v1104
        %vm1173 = vcmp.eq.s32.totalorder %v635, %v1107
        %vm1174 = vcmp.eq.s32.totalorder %v636, %v1107
        %vm1175 = vcmp.eq.s32.totalorder %v635, %v1110
        %vm1176 = vcmp.eq.s32.totalorder %v636, %v1110
        %vm1177 = vcmp.eq.s32.totalorder %v635, %v1113
        %vm1178 = vcmp.eq.s32.totalorder %v636, %v1113
        %vm1179 = vcmp.eq.s32.totalorder %v635, %v1116
        %vm1180 = vcmp.eq.s32.totalorder %v636, %v1116
        %vm1181 = vmor %vm957, %vm1117
        %vm1182 = vmor %vm958, %vm1118
        %vm1183 = vmor %vm959, %vm1119
        %vm1184 = vmor %vm960, %vm1120
        %vm1185 = vmor %vm961, %vm1121
        %vm1186 = vmor %vm962, %vm1122
        %vm1187 = vmor %vm963, %vm1123
        %vm1188 = vmor %vm964, %vm1124
        %vm1189 = vmor %vm965, %vm1125
        %vm1190 = vmor %vm966, %vm1126
        %vm1191 = vmor %vm967, %vm1127
        %vm1192 = vmor %vm968, %vm1128
        %vm1193 = vmor %vm969, %vm1129
        %vm1194 = vmor %vm970, %vm1130
        %vm1195 = vmor %vm971, %vm1131
        %vm1196 = vmor %vm972, %vm1132
        %vm1197 = vmor %vm973, %vm1133
        %vm1198 = vmor %vm974, %vm1134
        %vm1199 = vmor %vm975, %vm1135
        %vm1200 = vmor %vm976, %vm1136
        %vm1201 = vmor %vm977, %vm1137
        %vm1202 = vmor %vm978, %vm1138
        %vm1203 = vmor %vm979, %vm1139
        %vm1204 = vmor %vm980, %vm1140
        %vm1205 = vmor %vm981, %vm1141
        %vm1206 = vmor %vm982, %vm1142
        %vm1207 = vmor %vm983, %vm1143
        %vm1208 = vmor %vm984, %vm1144
        %vm1209 = vmor %vm985, %vm1145
        %vm1210 = vmor %vm986, %vm1146
        %vm1211 = vmor %vm987, %vm1147
        %vm1212 = vmor %vm988, %vm1148
        %vm1213 = vmor %vm989, %vm1149
        %vm1214 = vmor %vm990, %vm1150
        %vm1215 = vmor %vm991, %vm1151
        %vm1216 = vmor %vm992, %vm1152
        %vm1217 = vmor %vm993, %vm1153
        %vm1218 = vmor %vm994, %vm1154
        %vm1219 = vmor %vm995, %vm1155
        %vm1220 = vmor %vm996, %vm1156
        %vm1221 = vmor %vm997, %vm1157
        %vm1222 = vmor %vm998, %vm1158
        %vm1223 = vmor %vm999, %vm1159
        %vm1224 = vmor %vm1000, %vm1160
        %vm1225 = vmor %vm1001, %vm1161
        %vm1226 = vmor %vm1002, %vm1162
        %vm1227 = vmor %vm1003, %vm1163
        %vm1228 = vmor %vm1004, %vm1164
        %vm1229 = vmor %vm1005, %vm1165
        %vm1230 = vmor %vm1006, %vm1166
        %vm1231 = vmor %vm1007, %vm1167
        %vm1232 = vmor %vm1008, %vm1168
        %vm1233 = vmor %vm1009, %vm1169
        %vm1234 = vmor %vm1010, %vm1170
        %vm1235 = vmor %vm1011, %vm1171
        %vm1236 = vmor %vm1012, %vm1172
        %vm1237 = vmor %vm1013, %vm1173
        %vm1238 = vmor %vm1014, %vm1174
        %vm1239 = vmor %vm1015, %vm1175
        %vm1240 = vmor %vm1016, %vm1176
        %vm1241 = vmor %vm1017, %vm1177
        %vm1242 = vmor %vm1018, %vm1178
        %vm1243 = vmor %vm1019, %vm1179
        %vm1244 = vmor %vm1020, %vm1180
        %v1245 = vsel %vm1181, 1, 0
        %v1246 = vsel %vm1182, 1, 0
        %v1247 = vsel %vm1183, 1, 0
        %v1248 = vsel %vm1184, 1, 0
        %v1249 = vsel %vm1185, 1, 0
        %v1250 = vsel %vm1186, 1, 0
        %v1251 = vsel %vm1187, 1, 0
        %v1252 = vsel %vm1188, 1, 0
        %v1253 = vsel %vm1189, 1, 0
        %v1254 = vsel %vm1190, 1, 0
        %v1255 = vsel %vm1191, 1, 0
        %v1256 = vsel %vm1192, 1, 0
        %v1257 = vsel %vm1193, 1, 0
        %v1258 = vsel %vm1194, 1, 0
        %v1259 = vsel %vm1195, 1, 0
        %v1260 = vsel %vm1196, 1, 0
        %v1261 = vsel %vm1197, 1, 0
        %v1262 = vsel %vm1198, 1, 0
        %v1263 = vsel %vm1199, 1, 0
        %v1264 = vsel %vm1200, 1, 0
        %v1265 = vsel %vm1201, 1, 0
        %v1266 = vsel %vm1202, 1, 0
        %v1267 = vsel %vm1203, 1, 0
        %v1268 = vsel %vm1204, 1, 0
        %v1269 = vsel %vm1205, 1, 0
        %v1270 = vsel %vm1206, 1, 0
        %v1271 = vsel %vm1207, 1, 0
        %v1272 = vsel %vm1208, 1, 0
        %v1273 = vsel %vm1209, 1, 0
        %v1274 = vsel %vm1210, 1, 0
        %v1275 = vsel %vm1211, 1, 0
        %v1276 = vsel %vm1212, 1, 0
        %v1277 = vsel %vm1213, 1, 0
        %v1278 = vsel %vm1214, 1, 0
        %v1279 = vsel %vm1215, 1, 0
        %v1280 = vsel %vm1216, 1, 0
        %v1281 = vsel %vm1217, 1, 0
        %v1282 = vsel %vm1218, 1, 0
        %v1283 = vsel %vm1219, 1, 0
        %v1284 = vsel %vm1220, 1, 0
        %v1285 = vsel %vm1221, 1, 0
        %v1286 = vsel %vm1222, 1, 0
        %v1287 = vsel %vm1223, 1, 0
        %v1288 = vsel %vm1224, 1, 0
        %v1289 = vsel %vm1225, 1, 0
        %v1290 = vsel %vm1226, 1, 0
        %v1291 = vsel %vm1227, 1, 0
        %v1292 = vsel %vm1228, 1, 0
        %v1293 = vsel %vm1229, 1, 0
        %v1294 = vsel %vm1230, 1, 0
        %v1295 = vsel %vm1231, 1, 0
        %v1296 = vsel %vm1232, 1, 0
        %v1297 = vsel %vm1233, 1, 0
        %v1298 = vsel %vm1234, 1, 0
        %v1299 = vsel %vm1235, 1, 0
        %v1300 = vsel %vm1236, 1, 0
        %v1301 = vsel %vm1237, 1, 0
        %v1302 = vsel %vm1238, 1, 0
        %v1303 = vsel %vm1239, 1, 0
        %v1304 = vsel %vm1240, 1, 0
        %v1305 = vsel %vm1241, 1, 0
        %v1306 = vsel %vm1242, 1, 0
        %v1307 = vsel %vm1243, 1, 0
        %v1308 = vsel %vm1244, 1, 0
        %v1309 = vcvt.s32.f32 %v1245
        %v1310 = vcvt.s32.f32 %v1246
        %v1311 = vcvt.s32.f32 %v1247
        %v1312 = vcvt.s32.f32 %v1248
        %v1313 = vcvt.s32.f32 %v1249
        %v1314 = vcvt.s32.f32 %v1250
        %v1315 = vcvt.s32.f32 %v1251
        %v1316 = vcvt.s32.f32 %v1252
        %v1317 = vcvt.s32.f32 %v1253
        %v1318 = vcvt.s32.f32 %v1254
        %v1319 = vcvt.s32.f32 %v1255
        %v1320 = vcvt.s32.f32 %v1256
        %v1321 = vcvt.s32.f32 %v1257
        %v1322 = vcvt.s32.f32 %v1258
        %v1323 = vcvt.s32.f32 %v1259
        %v1324 = vcvt.s32.f32 %v1260
        %v1325 = vcvt.s32.f32 %v1261
        %v1326 = vcvt.s32.f32 %v1262
        %v1327 = vcvt.s32.f32 %v1263
        %v1328 = vcvt.s32.f32 %v1264
        %v1329 = vcvt.s32.f32 %v1265
        %v1330 = vcvt.s32.f32 %v1266
        %v1331 = vcvt.s32.f32 %v1267
        %v1332 = vcvt.s32.f32 %v1268
        %v1333 = vcvt.s32.f32 %v1269
        %v1334 = vcvt.s32.f32 %v1270
        %v1335 = vcvt.s32.f32 %v1271
        %v1336 = vcvt.s32.f32 %v1272
        %v1337 = vcvt.s32.f32 %v1273
        %v1338 = vcvt.s32.f32 %v1274
        %v1339 = vcvt.s32.f32 %v1275
        %v1340 = vcvt.s32.f32 %v1276
        %v1341 = vcvt.s32.f32 %v1277
        %v1342 = vcvt.s32.f32 %v1278
        %v1343 = vcvt.s32.f32 %v1279
        %v1344 = vcvt.s32.f32 %v1280
        %v1345 = vcvt.s32.f32 %v1281
        %v1346 = vcvt.s32.f32 %v1282
        %v1347 = vcvt.s32.f32 %v1283
        %v1348 = vcvt.s32.f32 %v1284
        %v1349 = vcvt.s32.f32 %v1285
        %v1350 = vcvt.s32.f32 %v1286
        %v1351 = vcvt.s32.f32 %v1287
        %v1352 = vcvt.s32.f32 %v1288
        %v1353 = vcvt.s32.f32 %v1289
        %v1354 = vcvt.s32.f32 %v1290
        %v1355 = vcvt.s32.f32 %v1291
        %v1356 = vcvt.s32.f32 %v1292
        %v1357 = vcvt.s32.f32 %v1293
        %v1358 = vcvt.s32.f32 %v1294
        %v1359 = vcvt.s32.f32 %v1295
        %v1360 = vcvt.s32.f32 %v1296
        %v1361 = vcvt.s32.f32 %v1297
        %v1362 = vcvt.s32.f32 %v1298
        %v1363 = vcvt.s32.f32 %v1299
        %v1364 = vcvt.s32.f32 %v1300
        %v1365 = vcvt.s32.f32 %v1301
        %v1366 = vcvt.s32.f32 %v1302
        %v1367 = vcvt.s32.f32 %v1303
        %v1368 = vcvt.s32.f32 %v1304
        %v1369 = vcvt.s32.f32 %v1305
        %v1370 = vcvt.s32.f32 %v1306
        %v1371 = vcvt.s32.f32 %v1307
        %v1372 = vcvt.s32.f32 %v1308
        %v1373 = vpack.c.bf16 %v1311, %v1309
        %v1374 = vpack.c.bf16 %v1312, %v1310
        %v1375 = vpack.c.bf16 %v1315, %v1313
        %v1376 = vpack.c.bf16 %v1316, %v1314
        %v1377 = vpack.c.bf16 %v1319, %v1317
        %v1378 = vpack.c.bf16 %v1320, %v1318
        %v1379 = vpack.c.bf16 %v1323, %v1321
        %v1380 = vpack.c.bf16 %v1324, %v1322
        %v1381 = vpack.c.bf16 %v1327, %v1325
        %v1382 = vpack.c.bf16 %v1328, %v1326
        %v1383 = vpack.c.bf16 %v1331, %v1329
        %v1384 = vpack.c.bf16 %v1332, %v1330
        %v1385 = vpack.c.bf16 %v1335, %v1333
        %v1386 = vpack.c.bf16 %v1336, %v1334
        %v1387 = vpack.c.bf16 %v1339, %v1337
        %v1388 = vpack.c.bf16 %v1340, %v1338
        %v1389 = vpack.c.bf16 %v1343, %v1341
        %v1390 = vpack.c.bf16 %v1344, %v1342
        %v1391 = vpack.c.bf16 %v1347, %v1345
        %v1392 = vpack.c.bf16 %v1348, %v1346
        %v1393 = vpack.c.bf16 %v1351, %v1349
        %v1394 = vpack.c.bf16 %v1352, %v1350
        %v1395 = vpack.c.bf16 %v1355, %v1353
        %v1396 = vpack.c.bf16 %v1356, %v1354
        %v1397 = vpack.c.bf16 %v1359, %v1357
        %v1398 = vpack.c.bf16 %v1360, %v1358
        %v1399 = vpack.c.bf16 %v1363, %v1361
        %v1400 = vpack.c.bf16 %v1364, %v1362
        %v1401 = vpack.c.bf16 %v1367, %v1365
        %v1402 = vpack.c.bf16 %v1368, %v1366
        %v1403 = vpack.c.bf16 %v1371, %v1369
        %v1404 = vpack.c.bf16 %v1372, %v1370
        %v1405 = vld [vmem:[%s2] sm:$0xff]
        %v1406 = vld [vmem:[%s2 + $0x8] sm:$0xff]
        %v1407 = vld [vmem:[%s2 + $0x10] sm:$0xff]
        %v1408 = vld [vmem:[%s2 + $0x18] sm:$0xff]
        %v1409 = vld [vmem:[%s2 + $0x20] sm:$0xff]
        %v1410 = vld [vmem:[%s2 + $0x28] sm:$0xff]
        %v1411 = vld [vmem:[%s2 + $0x30] sm:$0xff]
        %v1412 = vld [vmem:[%s2 + $0x38] sm:$0xff]
        %v1413 = vld [vmem:[%s2 + $0x40] sm:$0xff]
        %v1414 = vld [vmem:[%s2 + $0x48] sm:$0xff]
        %v1415 = vld [vmem:[%s2 + $0x50] sm:$0xff]
        %v1416 = vld [vmem:[%s2 + $0x58] sm:$0xff]
        %v1417 = vld [vmem:[%s2 + $0x60] sm:$0xff]
        %v1418 = vld [vmem:[%s2 + $0x68] sm:$0xff]
        %v1419 = vld [vmem:[%s2 + $0x70] sm:$0xff]
        %v1420 = vld [vmem:[%s2 + $0x78] sm:$0xff]
        %v1421 = vld [vmem:[%s2 + $0x80] sm:$0xff]
        %v1422 = vld [vmem:[%s2 + $0x88] sm:$0xff]
        %v1423 = vld [vmem:[%s2 + $0x90] sm:$0xff]
        %v1424 = vld [vmem:[%s2 + $0x98] sm:$0xff]
        %v1425 = vld [vmem:[%s2 + $0xa0] sm:$0xff]
        %v1426 = vld [vmem:[%s2 + $0xa8] sm:$0xff]
        %v1427 = vld [vmem:[%s2 + $0xb0] sm:$0x33]
        %v1451 = vunpack.c.l.b16 %v1405
        %v1452 = vunpack.c.h.b16 %v1405
        %v1453 = vunpack.c.l.b16 %v1406
        %v1454 = vunpack.c.h.b16 %v1406
        %v1455 = vunpack.c.l.b16 %v1407
        %v1456 = vunpack.c.h.b16 %v1407
        %v1457 = vunpack.c.l.b16 %v1408
        %v1458 = vunpack.c.h.b16 %v1408
        %v1459 = vunpack.c.l.b16 %v1409
        %v1460 = vunpack.c.h.b16 %v1409
        %v1461 = vunpack.c.l.b16 %v1410
        %v1462 = vunpack.c.h.b16 %v1410
        %v1463 = vunpack.c.l.b16 %v1411
        %v1464 = vunpack.c.h.b16 %v1411
        %v1465 = vunpack.c.l.b16 %v1412
        %v1466 = vunpack.c.h.b16 %v1412
        %v1467 = vunpack.c.l.b16 %v1413
        %v1468 = vunpack.c.h.b16 %v1413
        %v1469 = vunpack.c.l.b16 %v1414
        %v1470 = vunpack.c.h.b16 %v1414
        %v1471 = vunpack.c.l.b16 %v1415
        %v1472 = vunpack.c.h.b16 %v1415
        %v1473 = vunpack.c.l.b16 %v1416
        %v1474 = vunpack.c.h.b16 %v1416
        %v1475 = vunpack.c.l.b16 %v1417
        %v1476 = vunpack.c.h.b16 %v1417
        %v1477 = vunpack.c.l.b16 %v1418
        %v1478 = vunpack.c.h.b16 %v1418
        %v1479 = vunpack.c.l.b16 %v1419
        %v1480 = vunpack.c.h.b16 %v1419
        %v1481 = vunpack.c.l.b16 %v1420
        %v1482 = vunpack.c.h.b16 %v1420
        %v1483 = vunpack.c.l.b16 %v1421
        %v1484 = vunpack.c.h.b16 %v1421
        %v1485 = vunpack.c.l.b16 %v1422
        %v1486 = vunpack.c.h.b16 %v1422
        %v1487 = vunpack.c.l.b16 %v1423
        %v1488 = vunpack.c.h.b16 %v1423
        %v1489 = vunpack.c.l.b16 %v1424
        %v1490 = vunpack.c.h.b16 %v1424
        %v1491 = vunpack.c.l.b16 %v1425
        %v1492 = vunpack.c.h.b16 %v1425
        %v1493 = vunpack.c.l.b16 %v1426
        %v1494 = vunpack.c.h.b16 %v1426
        %v1495 = vunpack.c.l.b16 %v1427
        %v1496 = vunpack.c.h.b16 %v1427
        %v1497 = vpack.c.b16 %v1453, %v1451
        %v1498 = vpack.c.b16 %v1454, %v1452
        %v1499 = vpack.c.b16 %v1457, %v1455
        %v1500 = vpack.c.b16 %v1458, %v1456
        %v1501 = vpack.c.b16 %v1461, %v1459
        %v1502 = vpack.c.b16 %v1462, %v1460
        %v1503 = vpack.c.b16 %v1465, %v1463
        %v1504 = vpack.c.b16 %v1466, %v1464
        %v1505 = vpack.c.b16 %v1469, %v1467
        %v1506 = vpack.c.b16 %v1470, %v1468
        %v1507 = vpack.c.b16 %v1473, %v1471
        %v1508 = vpack.c.b16 %v1474, %v1472
        %v1509 = vpack.c.b16 %v1477, %v1475
        %v1510 = vpack.c.b16 %v1478, %v1476
        %v1511 = vpack.c.b16 %v1481, %v1479
        %v1512 = vpack.c.b16 %v1482, %v1480
        %v1513 = vpack.c.b16 %v1485, %v1483
        %v1514 = vpack.c.b16 %v1486, %v1484
        %v1515 = vpack.c.b16 %v1489, %v1487
        %v1516 = vpack.c.b16 %v1490, %v1488
        %v1517 = vpack.c.b16 %v1493, %v1491
        %v1518 = vpack.c.b16 %v1494, %v1492
        %v1519 = vpack.c.b16 %v1495, %v1495
        %v1520 = vpack.c.b16 %v1496, %v1496
        %vm1543 = vcmask 424960
        %v1545 = vsel %vm1543, %v1374, 0
        %v1548 = vsel %vm1543, %v1376, 0
        %v1551 = vsel %vm1543, %v1378, 0
        %v1554 = vsel %vm1543, %v1380, 0
        %v1557 = vsel %vm1543, %v1382, 0
        %v1560 = vsel %vm1543, %v1384, 0
        %v1563 = vsel %vm1543, %v1386, 0
        %v1566 = vsel %vm1543, %v1388, 0
        %v1569 = vsel %vm1543, %v1390, 0
        %v1572 = vsel %vm1543, %v1392, 0
        %v1575 = vsel %vm1543, %v1394, 0
        %v1578 = vsel %vm1543, %v1396, 0
        %v1581 = vsel %vm1543, %v1398, 0
        %v1584 = vsel %vm1543, %v1400, 0
        %v1587 = vsel %vm1543, %v1402, 0
        %v1590 = vsel %vm1543, %v1404, 0
        %vm1592 = vcmask 1041408
        %v1594 = vsel %vm1592, %v1519, 0
        %v1597 = vsel %vm1592, %v1520, 0
        %1599 = vmatprep.subr.bf16.mxu0 %v1498
        %1600 = vmatpush1.bf16.msra.mxu0 %v1497
        %1601 = vmatprep.subr.bf16.mxu0 %v1500
        %1602 = vmatpush1.bf16.msra.mxu0 %v1499
        %1603 = vmatprep.subr.bf16.mxu0 %v1502
        %1604 = vmatpush1.bf16.msra.mxu0 %v1501
        %1605 = vmatprep.subr.bf16.mxu0 %v1504
        %1606 = vmatpush1.bf16.msra.mxu0 %v1503
        %1607 = vmatprep.subr.bf16.mxu0 %v1506
        %1608 = vmatpush1.bf16.msra.mxu0 %v1505
        %1609 = vmatprep.subr.bf16.mxu0 %v1508
        %1610 = vmatpush1.bf16.msra.mxu0 %v1507
        %1611 = vmatprep.subr.bf16.mxu0 %v1510
        %1612 = vmatpush1.bf16.msra.mxu0 %v1509
        %1613 = vmatprep.subr.bf16.mxu0 %v1512
        %1614 = vmatpush1.bf16.msra.mxu0 %v1511
        %1615 = vmatprep.subr.bf16.mxu0 %v1514
        %1616 = vmatpush1.bf16.msra.mxu0 %v1513
        %1617 = vmatprep.subr.bf16.mxu0 %v1516
        %1618 = vmatpush1.bf16.msra.mxu0 %v1515
        %1619 = vmatprep.subr.bf16.mxu0 %v1518
        %1620 = vmatpush1.bf16.msra.mxu0 %v1517
        %1621 = vmatprep.subr.bf16.mxu0 %v1597
        %1622 = vmatpush1.bf16.msra.mxu0 %v1594
        %1623 = vmatprep.subr.bf16.mxu0 0
        %1624 = vmatpush1.bf16.msra.mxu0 0
        %1625 = vmatprep.subr.bf16.mxu0 0
        %1626 = vmatpush1.bf16.msra.mxu0 0
        %1627 = vmatprep.subr.bf16.mxu0 0
        %1628 = vmatpush1.bf16.msra.mxu0 0
        %1629 = vmatprep.subr.bf16.mxu0 0
        %1630 = vmatpush1.bf16.msra.mxu0 0
        %1631 = vmatprep.mubr.bf16.mxu0 %v1545
        %1632 = vmatmul.mubr.bf16.gmra.mrb[0].mxu0 %v1373
        %v1633 = vpop.f32.mrb[0].mxu0
        %v1634 = vadd.f32 0.0, %v1633
        %v1635 = vpop.f32.mrb[0].mxu0
        %v1636 = vadd.f32 0.0, %v1635
        %v1637 = vpop.f32.mrb[0].mxu0
        %v1638 = vadd.f32 0.0, %v1637
        %v1639 = vpop.f32.mrb[0].mxu0
        %v1640 = vadd.f32 0.0, %v1639
        %1641 = vmatprep.mubr.bf16.mxu0 %v1548
        %1642 = vmatmul.mubr.bf16.gmra.mrb[0].mxu0 %v1375
        %v1643 = vpop.f32.mrb[0].mxu0
        %v1644 = vadd.f32 0.0, %v1643
        %v1645 = vpop.f32.mrb[0].mxu0
        %v1646 = vadd.f32 0.0, %v1645
        %v1647 = vpop.f32.mrb[0].mxu0
        %v1648 = vadd.f32 0.0, %v1647
        %v1649 = vpop.f32.mrb[0].mxu0
        %v1650 = vadd.f32 0.0, %v1649
        %1651 = vmatprep.mubr.bf16.mxu0 %v1551
        %1652 = vmatmul.mubr.bf16.gmra.mrb[0].mxu0 %v1377
        %v1653 = vpop.f32.mrb[0].mxu0
        %v1654 = vadd.f32 0.0, %v1653
        %v1655 = vpop.f32.mrb[0].mxu0
        %v1656 = vadd.f32 0.0, %v1655
        %v1657 = vpop.f32.mrb[0].mxu0
        %v1658 = vadd.f32 0.0, %v1657
        %v1659 = vpop.f32.mrb[0].mxu0
        %v1660 = vadd.f32 0.0, %v1659
        %1661 = vmatprep.mubr.bf16.mxu0 %v1554
        %1662 = vmatmul.mubr.bf16.gmra.mrb[0].mxu0 %v1379
        %v1663 = vpop.f32.mrb[0].mxu0
        %v1664 = vadd.f32 0.0, %v1663
        %v1665 = vpop.f32.mrb[0].mxu0
        %v1666 = vadd.f32 0.0, %v1665
        %v1667 = vpop.f32.mrb[0].mxu0
        %v1668 = vadd.f32 0.0, %v1667
        %v1669 = vpop.f32.mrb[0].mxu0
        %v1670 = vadd.f32 0.0, %v1669
        %1671 = vmatprep.mubr.bf16.mxu0 %v1557
        %1672 = vmatmul.mubr.bf16.gmra.mrb[0].mxu0 %v1381
        %v1673 = vpop.f32.mrb[0].mxu0
        %v1674 = vadd.f32 0.0, %v1673
        %v1675 = vpop.f32.mrb[0].mxu0
        %v1676 = vadd.f32 0.0, %v1675
        %v1677 = vpop.f32.mrb[0].mxu0
        %v1678 = vadd.f32 0.0, %v1677
        %v1679 = vpop.f32.mrb[0].mxu0
        %v1680 = vadd.f32 0.0, %v1679
        %1681 = vmatprep.mubr.bf16.mxu0 %v1560
        %1682 = vmatmul.mubr.bf16.gmra.mrb[0].mxu0 %v1383
        %v1683 = vpop.f32.mrb[0].mxu0
        %v1684 = vadd.f32 0.0, %v1683
        %v1685 = vpop.f32.mrb[0].mxu0
        %v1686 = vadd.f32 0.0, %v1685
        %v1687 = vpop.f32.mrb[0].mxu0
        %v1688 = vadd.f32 0.0, %v1687
        %v1689 = vpop.f32.mrb[0].mxu0
        %v1690 = vadd.f32 0.0, %v1689
        %1691 = vmatprep.mubr.bf16.mxu0 %v1563
        %1692 = vmatmul.mubr.bf16.gmra.mrb[0].mxu0 %v1385
        %v1693 = vpop.f32.mrb[0].mxu0
        %v1694 = vadd.f32 0.0, %v1693
        %v1695 = vpop.f32.mrb[0].mxu0
        %v1696 = vadd.f32 0.0, %v1695
        %v1697 = vpop.f32.mrb[0].mxu0
        %v1698 = vadd.f32 0.0, %v1697
        %v1699 = vpop.f32.mrb[0].mxu0
        %v1700 = vadd.f32 0.0, %v1699
        %1701 = vmatprep.mubr.bf16.mxu0 %v1566
        %1702 = vmatmul.mubr.bf16.gmra.mrb[0].mxu0 %v1387
        %v1703 = vpop.f32.mrb[0].mxu0
        %v1704 = vadd.f32 0.0, %v1703
        %v1705 = vpop.f32.mrb[0].mxu0
        %v1706 = vadd.f32 0.0, %v1705
        %v1707 = vpop.f32.mrb[0].mxu0
        %v1708 = vadd.f32 0.0, %v1707
        %v1709 = vpop.f32.mrb[0].mxu0
        %v1710 = vadd.f32 0.0, %v1709
        %1711 = vmatprep.mubr.bf16.mxu0 %v1569
        %1712 = vmatmul.mubr.bf16.gmra.mrb[0].mxu0 %v1389
        %v1713 = vpop.f32.mrb[0].mxu0
        %v1714 = vadd.f32 0.0, %v1713
        %v1715 = vpop.f32.mrb[0].mxu0
        %v1716 = vadd.f32 0.0, %v1715
        %v1717 = vpop.f32.mrb[0].mxu0
        %v1718 = vadd.f32 0.0, %v1717
        %v1719 = vpop.f32.mrb[0].mxu0
        %v1720 = vadd.f32 0.0, %v1719
        %1721 = vmatprep.mubr.bf16.mxu0 %v1572
        %1722 = vmatmul.mubr.bf16.gmra.mrb[0].mxu0 %v1391
        %v1723 = vpop.f32.mrb[0].mxu0
        %v1724 = vadd.f32 0.0, %v1723
        %v1725 = vpop.f32.mrb[0].mxu0
        %v1726 = vadd.f32 0.0, %v1725
        %v1727 = vpop.f32.mrb[0].mxu0
        %v1728 = vadd.f32 0.0, %v1727
        %v1729 = vpop.f32.mrb[0].mxu0
        %v1730 = vadd.f32 0.0, %v1729
        %1731 = vmatprep.mubr.bf16.mxu0 %v1575
        %1732 = vmatmul.mubr.bf16.gmra.mrb[0].mxu0 %v1393
        %v1733 = vpop.f32.mrb[0].mxu0
        %v1734 = vadd.f32 0.0, %v1733
        %v1735 = vpop.f32.mrb[0].mxu0
        %v1736 = vadd.f32 0.0, %v1735
        %v1737 = vpop.f32.mrb[0].mxu0
        %v1738 = vadd.f32 0.0, %v1737
        %v1739 = vpop.f32.mrb[0].mxu0
        %v1740 = vadd.f32 0.0, %v1739
        %1741 = vmatprep.mubr.bf16.mxu0 %v1578
        %1742 = vmatmul.mubr.bf16.gmra.mrb[0].mxu0 %v1395
        %v1743 = vpop.f32.mrb[0].mxu0
        %v1744 = vadd.f32 0.0, %v1743
        %v1745 = vpop.f32.mrb[0].mxu0
        %v1746 = vadd.f32 0.0, %v1745
        %v1747 = vpop.f32.mrb[0].mxu0
        %v1748 = vadd.f32 0.0, %v1747
        %v1749 = vpop.f32.mrb[0].mxu0
        %v1750 = vadd.f32 0.0, %v1749
        %1751 = vmatprep.mubr.bf16.mxu0 %v1581
        %1752 = vmatmul.mubr.bf16.gmra.mrb[0].mxu0 %v1397
        %v1753 = vpop.f32.mrb[0].mxu0
        %v1754 = vadd.f32 0.0, %v1753
        %v1755 = vpop.f32.mrb[0].mxu0
        %v1756 = vadd.f32 0.0, %v1755
        %v1757 = vpop.f32.mrb[0].mxu0
        %v1758 = vadd.f32 0.0, %v1757
        %v1759 = vpop.f32.mrb[0].mxu0
        %v1760 = vadd.f32 0.0, %v1759
        %1761 = vmatprep.mubr.bf16.mxu0 %v1584
        %1762 = vmatmul.mubr.bf16.gmra.mrb[0].mxu0 %v1399
        %v1763 = vpop.f32.mrb[0].mxu0
        %v1764 = vadd.f32 0.0, %v1763
        %v1765 = vpop.f32.mrb[0].mxu0
        %v1766 = vadd.f32 0.0, %v1765
        %v1767 = vpop.f32.mrb[0].mxu0
        %v1768 = vadd.f32 0.0, %v1767
        %v1769 = vpop.f32.mrb[0].mxu0
        %v1770 = vadd.f32 0.0, %v1769
        %1771 = vmatprep.mubr.bf16.mxu0 %v1587
        %1772 = vmatmul.mubr.bf16.gmra.mrb[0].mxu0 %v1401
        %v1773 = vpop.f32.mrb[0].mxu0
        %v1774 = vadd.f32 0.0, %v1773
        %v1775 = vpop.f32.mrb[0].mxu0
        %v1776 = vadd.f32 0.0, %v1775
        %v1777 = vpop.f32.mrb[0].mxu0
        %v1778 = vadd.f32 0.0, %v1777
        %v1779 = vpop.f32.mrb[0].mxu0
        %v1780 = vadd.f32 0.0, %v1779
        %1781 = vmatprep.mubr.bf16.mxu0 %v1590
        %1782 = vmatmul.mubr.bf16.gmra.mrb[0].mxu0 %v1403
        %v1783 = vpop.f32.mrb[0].mxu0
        %v1784 = vadd.f32 0.0, %v1783
        %v1785 = vpop.f32.mrb[0].mxu0
        %v1786 = vadd.f32 0.0, %v1785
        %v1787 = vpop.f32.mrb[0].mxu0
        %v1788 = vadd.f32 0.0, %v1787
        %v1789 = vpop.f32.mrb[0].mxu0
        %v1790 = vadd.f32 0.0, %v1789
        %1791 = vdwg.mxu0
        %v1792 = vld [vmem:[%s598] sm:$0xff]
        %v1793 = vld [vmem:[%s598 + $0x8] sm:$0xff]
        %v1794 = vld [vmem:[%s598 + $0x10] sm:$0xff]
        %v1795 = vld [vmem:[%s598 + $0x18] sm:$0xff]
        %v1796 = vld [vmem:[%s598 + $0x20] sm:$0xff]
        %v1797 = vld [vmem:[%s598 + $0x28] sm:$0xff]
        %v1798 = vld [vmem:[%s598 + $0x30] sm:$0xff]
        %v1799 = vld [vmem:[%s598 + $0x38] sm:$0xff]
        %v1800 = vld [vmem:[%s598 + $0x40] sm:$0xff]
        %v1801 = vld [vmem:[%s598 + $0x48] sm:$0xff]
        %v1802 = vld [vmem:[%s598 + $0x50] sm:$0xff]
        %v1803 = vld [vmem:[%s598 + $0x58] sm:$0xff]
        %v1804 = vld [vmem:[%s598 + $0x60] sm:$0xff]
        %v1805 = vld [vmem:[%s598 + $0x68] sm:$0xff]
        %v1806 = vld [vmem:[%s598 + $0x70] sm:$0xff]
        %v1807 = vld [vmem:[%s598 + $0x78] sm:$0xff]
        %v1808 = vld [vmem:[%s598 + $0x80] sm:$0xff]
        %v1809 = vld [vmem:[%s598 + $0x88] sm:$0xff]
        %v1810 = vld [vmem:[%s598 + $0x90] sm:$0xff]
        %v1811 = vld [vmem:[%s598 + $0x98] sm:$0xff]
        %v1812 = vld [vmem:[%s598 + $0xa0] sm:$0xff]
        %v1813 = vld [vmem:[%s598 + $0xa8] sm:$0xff]
        %v1814 = vld [vmem:[%s598 + $0xb0] sm:$0xff]
        %v1815 = vld [vmem:[%s598 + $0xb8] sm:$0xff]
        %v1816 = vld [vmem:[%s598 + $0xc0] sm:$0xff]
        %v1817 = vld [vmem:[%s598 + $0xc8] sm:$0xff]
        %v1818 = vld [vmem:[%s598 + $0xd0] sm:$0xff]
        %v1819 = vld [vmem:[%s598 + $0xd8] sm:$0xff]
        %v1820 = vld [vmem:[%s598 + $0xe0] sm:$0xff]
        %v1821 = vld [vmem:[%s598 + $0xe8] sm:$0xff]
        %v1822 = vld [vmem:[%s598 + $0xf0] sm:$0xff]
        %v1823 = vld [vmem:[%s598 + $0xf8] sm:$0xff]
        %v1824 = vld [vmem:[%s3] sm:$0x1]
        %v1825 = vpack.c.bf16 %v1793, %v1792
        %v1826 = vpack.c.bf16 %v1795, %v1794
        %v1827 = vpack.c.bf16 %v1797, %v1796
        %v1828 = vpack.c.bf16 %v1799, %v1798
        %v1829 = vpack.c.bf16 %v1801, %v1800
        %v1830 = vpack.c.bf16 %v1803, %v1802
        %v1831 = vpack.c.bf16 %v1805, %v1804
        %v1832 = vpack.c.bf16 %v1807, %v1806
        %v1833 = vpack.c.bf16 %v1809, %v1808
        %v1834 = vpack.c.bf16 %v1811, %v1810
        %v1835 = vpack.c.bf16 %v1813, %v1812
        %v1836 = vpack.c.bf16 %v1815, %v1814
        %v1837 = vpack.c.bf16 %v1817, %v1816
        %v1838 = vpack.c.bf16 %v1819, %v1818
        %v1839 = vpack.c.bf16 %v1821, %v1820
        %v1840 = vpack.c.bf16 %v1823, %v1822
        %v1841 = vld [vmem:[%s4] sm:$0x1]
        %v1843 = vlaneseq
        %v1844 = vshrl.u32 %v1843, 7
        %v1845 = vsub.s32 0, %v1844
        %v1846 = vrot.slane %v1841, %v1845
        %vm1848 = vcmask 15360
        %v1850 = vsel %vm1848, %v1825, 0
        %v1853 = vsel %vm1848, %v1826, 0
        %v1856 = vsel %vm1848, %v1827, 0
        %v1859 = vsel %vm1848, %v1828, 0
        %v1862 = vsel %vm1848, %v1829, 0
        %v1865 = vsel %vm1848, %v1830, 0
        %v1868 = vsel %vm1848, %v1831, 0
        %v1871 = vsel %vm1848, %v1832, 0
        %v1874 = vsel %vm1848, %v1833, 0
        %v1877 = vsel %vm1848, %v1834, 0
        %v1880 = vsel %vm1848, %v1835, 0
        %v1883 = vsel %vm1848, %v1836, 0
        %v1886 = vsel %vm1848, %v1837, 0
        %v1889 = vsel %vm1848, %v1838, 0
        %v1892 = vsel %vm1848, %v1839, 0
        %v1895 = vsel %vm1848, %v1840, 0
        %vm1897 = vcmask 1040384
        %v1899 = vsel %vm1897, %v1824, 0
        %1901 = vmatprep.subr.bf16.mxu0 0
        %1902 = vmatpush1.bf16.msra.mxu0 %v1899
        %1903 = vmatprep.subr.bf16.mxu0 0
        %1904 = vmatpush1.bf16.msra.mxu0 0
        %1905 = vmatprep.subr.bf16.mxu0 0
        %1906 = vmatpush1.bf16.msra.mxu0 0
        %1907 = vmatprep.subr.bf16.mxu0 0
        %1908 = vmatpush1.bf16.msra.mxu0 0
        %1909 = vmatprep.subr.bf16.mxu0 0
        %1910 = vmatpush1.bf16.msra.mxu0 0
        %1911 = vmatprep.subr.bf16.mxu0 0
        %1912 = vmatpush1.bf16.msra.mxu0 0
        %1913 = vmatprep.subr.bf16.mxu0 0
        %1914 = vmatpush1.bf16.msra.mxu0 0
        %1915 = vmatprep.subr.bf16.mxu0 0
        %1916 = vmatpush1.bf16.msra.mxu0 0
        %1917 = vmatprep.subr.bf16.mxu0 0
        %1918 = vmatpush1.bf16.msra.mxu0 0
        %1919 = vmatprep.subr.bf16.mxu0 0
        %1920 = vmatpush1.bf16.msra.mxu0 0
        %1921 = vmatprep.subr.bf16.mxu0 0
        %1922 = vmatpush1.bf16.msra.mxu0 0
        %1923 = vmatprep.subr.bf16.mxu0 0
        %1924 = vmatpush1.bf16.msra.mxu0 0
        %1925 = vmatprep.subr.bf16.mxu0 0
        %1926 = vmatpush1.bf16.msra.mxu0 0
        %1927 = vmatprep.subr.bf16.mxu0 0
        %1928 = vmatpush1.bf16.msra.mxu0 0
        %1929 = vmatprep.subr.bf16.mxu0 0
        %1930 = vmatpush1.bf16.msra.mxu0 0
        %1931 = vmatprep.subr.bf16.mxu0 0
        %1932 = vmatpush1.bf16.msra.mxu0 0
        %1933 = vmatprep.mubr.bf16.mxu0 0
        %1934 = vmatmul.mubr.bf16.gmra.mrb[0].mxu0 %v1850
        %v1935 = vpop.f32.mrb[0].mxu0
        %v1936 = vadd.f32 %v1846, %v1935
        %v1937 = vpop.f32.mrb[0].mxu0
        %v1938 = vpop.f32.mrb[0].mxu0
        %v1939 = vadd.f32 %v1846, %v1938
        %v1940 = vpop.f32.mrb[0].mxu0
        %1941 = vmatprep.mubr.bf16.mxu0 0
        %1942 = vmatmul.mubr.bf16.gmra.mrb[0].mxu0 %v1853
        %v1943 = vpop.f32.mrb[0].mxu0
        %v1944 = vadd.f32 %v1846, %v1943
        %v1945 = vpop.f32.mrb[0].mxu0
        %v1946 = vpop.f32.mrb[0].mxu0
        %v1947 = vadd.f32 %v1846, %v1946
        %v1948 = vpop.f32.mrb[0].mxu0
        %1949 = vmatprep.mubr.bf16.mxu0 0
        %1950 = vmatmul.mubr.bf16.gmra.mrb[0].mxu0 %v1856
        %v1951 = vpop.f32.mrb[0].mxu0
        %v1952 = vadd.f32 %v1846, %v1951
        %v1953 = vpop.f32.mrb[0].mxu0
        %v1954 = vpop.f32.mrb[0].mxu0
        %v1955 = vadd.f32 %v1846, %v1954
        %v1956 = vpop.f32.mrb[0].mxu0
        %1957 = vmatprep.mubr.bf16.mxu0 0
        %1958 = vmatmul.mubr.bf16.gmra.mrb[0].mxu0 %v1859
        %v1959 = vpop.f32.mrb[0].mxu0
        %v1960 = vadd.f32 %v1846, %v1959
        %v1961 = vpop.f32.mrb[0].mxu0
        %v1962 = vpop.f32.mrb[0].mxu0
        %v1963 = vadd.f32 %v1846, %v1962
        %v1964 = vpop.f32.mrb[0].mxu0
        %1965 = vmatprep.mubr.bf16.mxu0 0
        %1966 = vmatmul.mubr.bf16.gmra.mrb[0].mxu0 %v1862
        %v1967 = vpop.f32.mrb[0].mxu0
        %v1968 = vadd.f32 %v1846, %v1967
        %v1969 = vpop.f32.mrb[0].mxu0
        %v1970 = vpop.f32.mrb[0].mxu0
        %v1971 = vadd.f32 %v1846, %v1970
        %v1972 = vpop.f32.mrb[0].mxu0
        %1973 = vmatprep.mubr.bf16.mxu0 0
        %1974 = vmatmul.mubr.bf16.gmra.mrb[0].mxu0 %v1865
        %v1975 = vpop.f32.mrb[0].mxu0
        %v1976 = vadd.f32 %v1846, %v1975
        %v1977 = vpop.f32.mrb[0].mxu0
        %v1978 = vpop.f32.mrb[0].mxu0
        %v1979 = vadd.f32 %v1846, %v1978
        %v1980 = vpop.f32.mrb[0].mxu0
        %1981 = vmatprep.mubr.bf16.mxu0 0
        %1982 = vmatmul.mubr.bf16.gmra.mrb[0].mxu0 %v1868
        %v1983 = vpop.f32.mrb[0].mxu0
        %v1984 = vadd.f32 %v1846, %v1983
        %v1985 = vpop.f32.mrb[0].mxu0
        %v1986 = vpop.f32.mrb[0].mxu0
        %v1987 = vadd.f32 %v1846, %v1986
        %v1988 = vpop.f32.mrb[0].mxu0
        %1989 = vmatprep.mubr.bf16.mxu0 0
        %1990 = vmatmul.mubr.bf16.gmra.mrb[0].mxu0 %v1871
        %v1991 = vpop.f32.mrb[0].mxu0
        %v1992 = vadd.f32 %v1846, %v1991
        %v1993 = vpop.f32.mrb[0].mxu0
        %v1994 = vpop.f32.mrb[0].mxu0
        %v1995 = vadd.f32 %v1846, %v1994
        %v1996 = vpop.f32.mrb[0].mxu0
        %1997 = vmatprep.mubr.bf16.mxu0 0
        %1998 = vmatmul.mubr.bf16.gmra.mrb[0].mxu0 %v1874
        %v1999 = vpop.f32.mrb[0].mxu0
        %v2000 = vadd.f32 %v1846, %v1999
        %v2001 = vpop.f32.mrb[0].mxu0
        %v2002 = vpop.f32.mrb[0].mxu0
        %v2003 = vadd.f32 %v1846, %v2002
        %v2004 = vpop.f32.mrb[0].mxu0
        %2005 = vmatprep.mubr.bf16.mxu0 0
        %2006 = vmatmul.mubr.bf16.gmra.mrb[0].mxu0 %v1877
        %v2007 = vpop.f32.mrb[0].mxu0
        %v2008 = vadd.f32 %v1846, %v2007
        %v2009 = vpop.f32.mrb[0].mxu0
        %v2010 = vpop.f32.mrb[0].mxu0
        %v2011 = vadd.f32 %v1846, %v2010
        %v2012 = vpop.f32.mrb[0].mxu0
        %2013 = vmatprep.mubr.bf16.mxu0 0
        %2014 = vmatmul.mubr.bf16.gmra.mrb[0].mxu0 %v1880
        %v2015 = vpop.f32.mrb[0].mxu0
        %v2016 = vadd.f32 %v1846, %v2015
        %v2017 = vpop.f32.mrb[0].mxu0
        %v2018 = vpop.f32.mrb[0].mxu0
        %v2019 = vadd.f32 %v1846, %v2018
        %v2020 = vpop.f32.mrb[0].mxu0
        %2021 = vmatprep.mubr.bf16.mxu0 0
        %2022 = vmatmul.mubr.bf16.gmra.mrb[0].mxu0 %v1883
        %v2023 = vpop.f32.mrb[0].mxu0
        %v2024 = vadd.f32 %v1846, %v2023
        %v2025 = vpop.f32.mrb[0].mxu0
        %v2026 = vpop.f32.mrb[0].mxu0
        %v2027 = vadd.f32 %v1846, %v2026
        %v2028 = vpop.f32.mrb[0].mxu0
        %2029 = vmatprep.mubr.bf16.mxu0 0
        %2030 = vmatmul.mubr.bf16.gmra.mrb[0].mxu0 %v1886
        %v2031 = vpop.f32.mrb[0].mxu0
        %v2032 = vadd.f32 %v1846, %v2031
        %v2033 = vpop.f32.mrb[0].mxu0
        %v2034 = vpop.f32.mrb[0].mxu0
        %v2035 = vadd.f32 %v1846, %v2034
        %v2036 = vpop.f32.mrb[0].mxu0
        %2037 = vmatprep.mubr.bf16.mxu0 0
        %2038 = vmatmul.mubr.bf16.gmra.mrb[0].mxu0 %v1889
        %v2039 = vpop.f32.mrb[0].mxu0
        %v2040 = vadd.f32 %v1846, %v2039
        %v2041 = vpop.f32.mrb[0].mxu0
        %v2042 = vpop.f32.mrb[0].mxu0
        %v2043 = vadd.f32 %v1846, %v2042
        %v2044 = vpop.f32.mrb[0].mxu0
        %2045 = vmatprep.mubr.bf16.mxu0 0
        %2046 = vmatmul.mubr.bf16.gmra.mrb[0].mxu0 %v1892
        %v2047 = vpop.f32.mrb[0].mxu0
        %v2048 = vadd.f32 %v1846, %v2047
        %v2049 = vpop.f32.mrb[0].mxu0
        %v2050 = vpop.f32.mrb[0].mxu0
        %v2051 = vadd.f32 %v1846, %v2050
        %v2052 = vpop.f32.mrb[0].mxu0
        %2053 = vmatprep.mubr.bf16.mxu0 0
        %2054 = vmatmul.mubr.bf16.gmra.mrb[0].mxu0 %v1895
        %v2055 = vpop.f32.mrb[0].mxu0
        %v2056 = vadd.f32 %v1846, %v2055
        %v2057 = vpop.f32.mrb[0].mxu0
        %v2058 = vpop.f32.mrb[0].mxu0
        %v2059 = vadd.f32 %v1846, %v2058
        %v2060 = vpop.f32.mrb[0].mxu0
        %2061 = vdwg.mxu0
        %v2062 = vmul.f32 %v1936, 0.01
        %v2063 = vmul.f32 %v1939, 0.01
        %v2064 = vmul.f32 %v1944, 0.01
        %v2065 = vmul.f32 %v1947, 0.01
        %v2066 = vmul.f32 %v1952, 0.01
        %v2067 = vmul.f32 %v1955, 0.01
        %v2068 = vmul.f32 %v1960, 0.01
        %v2069 = vmul.f32 %v1963, 0.01
        %v2070 = vmul.f32 %v1968, 0.01
        %v2071 = vmul.f32 %v1971, 0.01
        %v2072 = vmul.f32 %v1976, 0.01
        %v2073 = vmul.f32 %v1979, 0.01
        %v2074 = vmul.f32 %v1984, 0.01
        %v2075 = vmul.f32 %v1987, 0.01
        %v2076 = vmul.f32 %v1992, 0.01
        %v2077 = vmul.f32 %v1995, 0.01
        %v2078 = vmul.f32 %v2000, 0.01
        %v2079 = vmul.f32 %v2003, 0.01
        %v2080 = vmul.f32 %v2008, 0.01
        %v2081 = vmul.f32 %v2011, 0.01
        %v2082 = vmul.f32 %v2016, 0.01
        %v2083 = vmul.f32 %v2019, 0.01
        %v2084 = vmul.f32 %v2024, 0.01
        %v2085 = vmul.f32 %v2027, 0.01
        %v2086 = vmul.f32 %v2032, 0.01
        %v2087 = vmul.f32 %v2035, 0.01
        %v2088 = vmul.f32 %v2040, 0.01
        %v2089 = vmul.f32 %v2043, 0.01
        %v2090 = vmul.f32 %v2048, 0.01
        %v2091 = vmul.f32 %v2051, 0.01
        %v2092 = vmul.f32 %v2056, 0.01
        %v2093 = vmul.f32 %v2059, 0.01
        %v2094 = vmax.f32 %v1936, %v2062
        %v2095 = vmax.f32 %v1939, %v2063
        %v2096 = vmax.f32 %v1944, %v2064
        %v2097 = vmax.f32 %v1947, %v2065
        %v2098 = vmax.f32 %v1952, %v2066
        %v2099 = vmax.f32 %v1955, %v2067
        %v2100 = vmax.f32 %v1960, %v2068
        %v2101 = vmax.f32 %v1963, %v2069
        %v2102 = vmax.f32 %v1968, %v2070
        %v2103 = vmax.f32 %v1971, %v2071
        %v2104 = vmax.f32 %v1976, %v2072
        %v2105 = vmax.f32 %v1979, %v2073
        %v2106 = vmax.f32 %v1984, %v2074
        %v2107 = vmax.f32 %v1987, %v2075
        %v2108 = vmax.f32 %v1992, %v2076
        %v2109 = vmax.f32 %v1995, %v2077
        %v2110 = vmax.f32 %v2000, %v2078
        %v2111 = vmax.f32 %v2003, %v2079
        %v2112 = vmax.f32 %v2008, %v2080
        %v2113 = vmax.f32 %v2011, %v2081
        %v2114 = vmax.f32 %v2016, %v2082
        %v2115 = vmax.f32 %v2019, %v2083
        %v2116 = vmax.f32 %v2024, %v2084
        %v2117 = vmax.f32 %v2027, %v2085
        %v2118 = vmax.f32 %v2032, %v2086
        %v2119 = vmax.f32 %v2035, %v2087
        %v2120 = vmax.f32 %v2040, %v2088
        %v2121 = vmax.f32 %v2043, %v2089
        %v2122 = vmax.f32 %v2048, %v2090
        %v2123 = vmax.f32 %v2051, %v2091
        %v2124 = vmax.f32 %v2056, %v2092
        %v2125 = vmax.f32 %v2059, %v2093
        %v2126 = vld [vmem:[%s5] sm:$0xf]
        %v2127 = vld [vmem:[%s5 + $0x4] sm:$0xf]
        %v2128 = vld [vmem:[%s5 + $0x8] sm:$0xf]
        %v2129 = vld [vmem:[%s5 + $0xc] sm:$0xf]
        %v2130 = vpack.c.bf16 %v2095, %v2094
        %v2131 = vpack.c.bf16 %v2097, %v2096
        %v2132 = vpack.c.bf16 %v2099, %v2098
        %v2133 = vpack.c.bf16 %v2101, %v2100
        %v2134 = vpack.c.bf16 %v2103, %v2102
        %v2135 = vpack.c.bf16 %v2105, %v2104
        %v2136 = vpack.c.bf16 %v2107, %v2106
        %v2137 = vpack.c.bf16 %v2109, %v2108
        %v2138 = vpack.c.bf16 %v2111, %v2110
        %v2139 = vpack.c.bf16 %v2113, %v2112
        %v2140 = vpack.c.bf16 %v2115, %v2114
        %v2141 = vpack.c.bf16 %v2117, %v2116
        %v2142 = vpack.c.bf16 %v2119, %v2118
        %v2143 = vpack.c.bf16 %v2121, %v2120
        %v2144 = vpack.c.bf16 %v2123, %v2122
        %v2145 = vpack.c.bf16 %v2125, %v2124
        %v2146 = vld [vmem:[%s6] sm:$0x1]
        %v2148 = vlaneseq
        %v2149 = vshrl.u32 %v2148, 7
        %v2150 = vsub.s32 0, %v2149
        %v2151 = vrot.slane %v2146, %v2150
        %v2157 = vunpack.c.l.b16 %v2126
        %v2158 = vunpack.c.l.b16 %v2127
        %v2159 = vunpack.c.l.b16 %v2128
        %v2160 = vunpack.c.l.b16 %v2129
        %v2161 = vpack.c.b16 %v2158, %v2157
        %v2162 = vpack.c.b16 %v2160, %v2159
        %vm2165 = vcmask 261120
        %v2167 = vsel %vm2165, %v2130, 0
        %v2170 = vsel %vm2165, %v2131, 0
        %v2173 = vsel %vm2165, %v2132, 0
        %v2176 = vsel %vm2165, %v2133, 0
        %v2179 = vsel %vm2165, %v2134, 0
        %v2182 = vsel %vm2165, %v2135, 0
        %v2185 = vsel %vm2165, %v2136, 0
        %v2188 = vsel %vm2165, %v2137, 0
        %v2191 = vsel %vm2165, %v2138, 0
        %v2194 = vsel %vm2165, %v2139, 0
        %v2197 = vsel %vm2165, %v2140, 0
        %v2200 = vsel %vm2165, %v2141, 0
        %v2203 = vsel %vm2165, %v2142, 0
        %v2206 = vsel %vm2165, %v2143, 0
        %v2209 = vsel %vm2165, %v2144, 0
        %v2212 = vsel %vm2165, %v2145, 0
        %2214 = vmatprep.subr.bf16.mxu0 0
        %2215 = vmatpush1.bf16.msra.mxu0 %v2161
        %2216 = vmatprep.subr.bf16.mxu0 0
        %2217 = vmatpush1.bf16.msra.mxu0 %v2162
        %2218 = vmatprep.subr.bf16.mxu0 0
        %2219 = vmatpush1.bf16.msra.mxu0 0
        %2220 = vmatprep.subr.bf16.mxu0 0
        %2221 = vmatpush1.bf16.msra.mxu0 0
        %2222 = vmatprep.subr.bf16.mxu0 0
        %2223 = vmatpush1.bf16.msra.mxu0 0
        %2224 = vmatprep.subr.bf16.mxu0 0
        %2225 = vmatpush1.bf16.msra.mxu0 0
        %2226 = vmatprep.subr.bf16.mxu0 0
        %2227 = vmatpush1.bf16.msra.mxu0 0
        %2228 = vmatprep.subr.bf16.mxu0 0
        %2229 = vmatpush1.bf16.msra.mxu0 0
        %2230 = vmatprep.subr.bf16.mxu0 0
        %2231 = vmatpush1.bf16.msra.mxu0 0
        %2232 = vmatprep.subr.bf16.mxu0 0
        %2233 = vmatpush1.bf16.msra.mxu0 0
        %2234 = vmatprep.subr.bf16.mxu0 0
        %2235 = vmatpush1.bf16.msra.mxu0 0
        %2236 = vmatprep.subr.bf16.mxu0 0
        %2237 = vmatpush1.bf16.msra.mxu0 0
        %2238 = vmatprep.subr.bf16.mxu0 0
        %2239 = vmatpush1.bf16.msra.mxu0 0
        %2240 = vmatprep.subr.bf16.mxu0 0
        %2241 = vmatpush1.bf16.msra.mxu0 0
        %2242 = vmatprep.subr.bf16.mxu0 0
        %2243 = vmatpush1.bf16.msra.mxu0 0
        %2244 = vmatprep.subr.bf16.mxu0 0
        %2245 = vmatpush1.bf16.msra.mxu0 0
        %2246 = vmatprep.mubr.bf16.mxu0 0
        %2247 = vmatmul.mubr.bf16.gmra.mrb[0].mxu0 %v2167
        %v2248 = vpop.f32.mrb[0].mxu0
        %v2249 = vadd.f32 %v2151, %v2248
        %v2250 = vpop.f32.mrb[0].mxu0
        %v2251 = vpop.f32.mrb[0].mxu0
        %v2252 = vadd.f32 %v2151, %v2251
        %v2253 = vpop.f32.mrb[0].mxu0
        %2254 = vmatprep.mubr.bf16.mxu0 0
        %2255 = vmatmul.mubr.bf16.gmra.mrb[0].mxu0 %v2170
        %v2256 = vpop.f32.mrb[0].mxu0
        %v2257 = vadd.f32 %v2151, %v2256
        %v2258 = vpop.f32.mrb[0].mxu0
        %v2259 = vpop.f32.mrb[0].mxu0
        %v2260 = vadd.f32 %v2151, %v2259
        %v2261 = vpop.f32.mrb[0].mxu0
        %2262 = vmatprep.mubr.bf16.mxu0 0
        %2263 = vmatmul.mubr.bf16.gmra.mrb[0].mxu0 %v2173
        %v2264 = vpop.f32.mrb[0].mxu0
        %v2265 = vadd.f32 %v2151, %v2264
        %v2266 = vpop.f32.mrb[0].mxu0
        %v2267 = vpop.f32.mrb[0].mxu0
        %v2268 = vadd.f32 %v2151, %v2267
        %v2269 = vpop.f32.mrb[0].mxu0
        %2270 = vmatprep.mubr.bf16.mxu0 0
        %2271 = vmatmul.mubr.bf16.gmra.mrb[0].mxu0 %v2176
        %v2272 = vpop.f32.mrb[0].mxu0
        %v2273 = vadd.f32 %v2151, %v2272
        %v2274 = vpop.f32.mrb[0].mxu0
        %v2275 = vpop.f32.mrb[0].mxu0
        %v2276 = vadd.f32 %v2151, %v2275
        %v2277 = vpop.f32.mrb[0].mxu0
        %2278 = vmatprep.mubr.bf16.mxu0 0
        %2279 = vmatmul.mubr.bf16.gmra.mrb[0].mxu0 %v2179
        %v2280 = vpop.f32.mrb[0].mxu0
        %v2281 = vadd.f32 %v2151, %v2280
        %v2282 = vpop.f32.mrb[0].mxu0
        %v2283 = vpop.f32.mrb[0].mxu0
        %v2284 = vadd.f32 %v2151, %v2283
        %v2285 = vpop.f32.mrb[0].mxu0
        %2286 = vmatprep.mubr.bf16.mxu0 0
        %2287 = vmatmul.mubr.bf16.gmra.mrb[0].mxu0 %v2182
        %v2288 = vpop.f32.mrb[0].mxu0
        %v2289 = vadd.f32 %v2151, %v2288
        %v2290 = vpop.f32.mrb[0].mxu0
        %v2291 = vpop.f32.mrb[0].mxu0
        %v2292 = vadd.f32 %v2151, %v2291
        %v2293 = vpop.f32.mrb[0].mxu0
        %2294 = vmatprep.mubr.bf16.mxu0 0
        %2295 = vmatmul.mubr.bf16.gmra.mrb[0].mxu0 %v2185
        %v2296 = vpop.f32.mrb[0].mxu0
        %v2297 = vadd.f32 %v2151, %v2296
        %v2298 = vpop.f32.mrb[0].mxu0
        %v2299 = vpop.f32.mrb[0].mxu0
        %v2300 = vadd.f32 %v2151, %v2299
        %v2301 = vpop.f32.mrb[0].mxu0
        %2302 = vmatprep.mubr.bf16.mxu0 0
        %2303 = vmatmul.mubr.bf16.gmra.mrb[0].mxu0 %v2188
        %v2304 = vpop.f32.mrb[0].mxu0
        %v2305 = vadd.f32 %v2151, %v2304
        %v2306 = vpop.f32.mrb[0].mxu0
        %v2307 = vpop.f32.mrb[0].mxu0
        %v2308 = vadd.f32 %v2151, %v2307
        %v2309 = vpop.f32.mrb[0].mxu0
        %2310 = vmatprep.mubr.bf16.mxu0 0
        %2311 = vmatmul.mubr.bf16.gmra.mrb[0].mxu0 %v2191
        %v2312 = vpop.f32.mrb[0].mxu0
        %v2313 = vadd.f32 %v2151, %v2312
        %v2314 = vpop.f32.mrb[0].mxu0
        %v2315 = vpop.f32.mrb[0].mxu0
        %v2316 = vadd.f32 %v2151, %v2315
        %v2317 = vpop.f32.mrb[0].mxu0
        %2318 = vmatprep.mubr.bf16.mxu0 0
        %2319 = vmatmul.mubr.bf16.gmra.mrb[0].mxu0 %v2194
        %v2320 = vpop.f32.mrb[0].mxu0
        %v2321 = vadd.f32 %v2151, %v2320
        %v2322 = vpop.f32.mrb[0].mxu0
        %v2323 = vpop.f32.mrb[0].mxu0
        %v2324 = vadd.f32 %v2151, %v2323
        %v2325 = vpop.f32.mrb[0].mxu0
        %2326 = vmatprep.mubr.bf16.mxu0 0
        %2327 = vmatmul.mubr.bf16.gmra.mrb[0].mxu0 %v2197
        %v2328 = vpop.f32.mrb[0].mxu0
        %v2329 = vadd.f32 %v2151, %v2328
        %v2330 = vpop.f32.mrb[0].mxu0
        %v2331 = vpop.f32.mrb[0].mxu0
        %v2332 = vadd.f32 %v2151, %v2331
        %v2333 = vpop.f32.mrb[0].mxu0
        %2334 = vmatprep.mubr.bf16.mxu0 0
        %2335 = vmatmul.mubr.bf16.gmra.mrb[0].mxu0 %v2200
        %v2336 = vpop.f32.mrb[0].mxu0
        %v2337 = vadd.f32 %v2151, %v2336
        %v2338 = vpop.f32.mrb[0].mxu0
        %v2339 = vpop.f32.mrb[0].mxu0
        %v2340 = vadd.f32 %v2151, %v2339
        %v2341 = vpop.f32.mrb[0].mxu0
        %2342 = vmatprep.mubr.bf16.mxu0 0
        %2343 = vmatmul.mubr.bf16.gmra.mrb[0].mxu0 %v2203
        %v2344 = vpop.f32.mrb[0].mxu0
        %v2345 = vadd.f32 %v2151, %v2344
        %v2346 = vpop.f32.mrb[0].mxu0
        %v2347 = vpop.f32.mrb[0].mxu0
        %v2348 = vadd.f32 %v2151, %v2347
        %v2349 = vpop.f32.mrb[0].mxu0
        %2350 = vmatprep.mubr.bf16.mxu0 0
        %2351 = vmatmul.mubr.bf16.gmra.mrb[0].mxu0 %v2206
        %v2352 = vpop.f32.mrb[0].mxu0
        %v2353 = vadd.f32 %v2151, %v2352
        %v2354 = vpop.f32.mrb[0].mxu0
        %v2355 = vpop.f32.mrb[0].mxu0
        %v2356 = vadd.f32 %v2151, %v2355
        %v2357 = vpop.f32.mrb[0].mxu0
        %2358 = vmatprep.mubr.bf16.mxu0 0
        %2359 = vmatmul.mubr.bf16.gmra.mrb[0].mxu0 %v2209
        %v2360 = vpop.f32.mrb[0].mxu0
        %v2361 = vadd.f32 %v2151, %v2360
        %v2362 = vpop.f32.mrb[0].mxu0
        %v2363 = vpop.f32.mrb[0].mxu0
        %v2364 = vadd.f32 %v2151, %v2363
        %v2365 = vpop.f32.mrb[0].mxu0
        %2366 = vmatprep.mubr.bf16.mxu0 0
        %2367 = vmatmul.mubr.bf16.gmra.mrb[0].mxu0 %v2212
        %v2368 = vpop.f32.mrb[0].mxu0
        %v2369 = vadd.f32 %v2151, %v2368
        %v2370 = vpop.f32.mrb[0].mxu0
        %v2371 = vpop.f32.mrb[0].mxu0
        %v2372 = vadd.f32 %v2151, %v2371
        %v2373 = vpop.f32.mrb[0].mxu0
        %2374 = vdwg.mxu0
        %v2375 = vmul.f32 %v2249, 0.01
        %v2376 = vmul.f32 %v2252, 0.01
        %v2377 = vmul.f32 %v2257, 0.01
        %v2378 = vmul.f32 %v2260, 0.01
        %v2379 = vmul.f32 %v2265, 0.01
        %v2380 = vmul.f32 %v2268, 0.01
        %v2381 = vmul.f32 %v2273, 0.01
        %v2382 = vmul.f32 %v2276, 0.01
        %v2383 = vmul.f32 %v2281, 0.01
        %v2384 = vmul.f32 %v2284, 0.01
        %v2385 = vmul.f32 %v2289, 0.01
        %v2386 = vmul.f32 %v2292, 0.01
        %v2387 = vmul.f32 %v2297, 0.01
        %v2388 = vmul.f32 %v2300, 0.01
        %v2389 = vmul.f32 %v2305, 0.01
        %v2390 = vmul.f32 %v2308, 0.01
        %v2391 = vmul.f32 %v2313, 0.01
        %v2392 = vmul.f32 %v2316, 0.01
        %v2393 = vmul.f32 %v2321, 0.01
        %v2394 = vmul.f32 %v2324, 0.01
        %v2395 = vmul.f32 %v2329, 0.01
        %v2396 = vmul.f32 %v2332, 0.01
        %v2397 = vmul.f32 %v2337, 0.01
        %v2398 = vmul.f32 %v2340, 0.01
        %v2399 = vmul.f32 %v2345, 0.01
        %v2400 = vmul.f32 %v2348, 0.01
        %v2401 = vmul.f32 %v2353, 0.01
        %v2402 = vmul.f32 %v2356, 0.01
        %v2403 = vmul.f32 %v2361, 0.01
        %v2404 = vmul.f32 %v2364, 0.01
        %v2405 = vmul.f32 %v2369, 0.01
        %v2406 = vmul.f32 %v2372, 0.01
        %v2407 = vmax.f32 %v2249, %v2375
        %v2408 = vmax.f32 %v2252, %v2376
        %v2409 = vmax.f32 %v2257, %v2377
        %v2410 = vmax.f32 %v2260, %v2378
        %v2411 = vmax.f32 %v2265, %v2379
        %v2412 = vmax.f32 %v2268, %v2380
        %v2413 = vmax.f32 %v2273, %v2381
        %v2414 = vmax.f32 %v2276, %v2382
        %v2415 = vmax.f32 %v2281, %v2383
        %v2416 = vmax.f32 %v2284, %v2384
        %v2417 = vmax.f32 %v2289, %v2385
        %v2418 = vmax.f32 %v2292, %v2386
        %v2419 = vmax.f32 %v2297, %v2387
        %v2420 = vmax.f32 %v2300, %v2388
        %v2421 = vmax.f32 %v2305, %v2389
        %v2422 = vmax.f32 %v2308, %v2390
        %v2423 = vmax.f32 %v2313, %v2391
        %v2424 = vmax.f32 %v2316, %v2392
        %v2425 = vmax.f32 %v2321, %v2393
        %v2426 = vmax.f32 %v2324, %v2394
        %v2427 = vmax.f32 %v2329, %v2395
        %v2428 = vmax.f32 %v2332, %v2396
        %v2429 = vmax.f32 %v2337, %v2397
        %v2430 = vmax.f32 %v2340, %v2398
        %v2431 = vmax.f32 %v2345, %v2399
        %v2432 = vmax.f32 %v2348, %v2400
        %v2433 = vmax.f32 %v2353, %v2401
        %v2434 = vmax.f32 %v2356, %v2402
        %v2435 = vmax.f32 %v2361, %v2403
        %v2436 = vmax.f32 %v2364, %v2404
        %v2437 = vmax.f32 %v2369, %v2405
        %v2438 = vmax.f32 %v2372, %v2406
        %v2439 = vld [vmem:[%s7] sm:$0xff]
        %v2440 = vld [vmem:[%s7 + $0x8] sm:$0xff]
        %v2441 = vld [vmem:[%s7 + $0x10] sm:$0xff]
        %v2442 = vld [vmem:[%s7 + $0x18] sm:$0xff]
        %v2443 = vld [vmem:[%s7 + $0x20] sm:$0xff]
        %v2444 = vld [vmem:[%s7 + $0x28] sm:$0xff]
        %v2445 = vld [vmem:[%s7 + $0x30] sm:$0xff]
        %v2446 = vld [vmem:[%s7 + $0x38] sm:$0xff]
        %v2447 = vpack.c.bf16 %v2408, %v2407
        %v2448 = vpack.c.bf16 %v2410, %v2409
        %v2449 = vpack.c.bf16 %v2412, %v2411
        %v2450 = vpack.c.bf16 %v2414, %v2413
        %v2451 = vpack.c.bf16 %v2416, %v2415
        %v2452 = vpack.c.bf16 %v2418, %v2417
        %v2453 = vpack.c.bf16 %v2420, %v2419
        %v2454 = vpack.c.bf16 %v2422, %v2421
        %v2455 = vpack.c.bf16 %v2424, %v2423
        %v2456 = vpack.c.bf16 %v2426, %v2425
        %v2457 = vpack.c.bf16 %v2428, %v2427
        %v2458 = vpack.c.bf16 %v2430, %v2429
        %v2459 = vpack.c.bf16 %v2432, %v2431
        %v2460 = vpack.c.bf16 %v2434, %v2433
        %v2461 = vpack.c.bf16 %v2436, %v2435
        %v2462 = vpack.c.bf16 %v2438, %v2437
        %v2463 = vld [vmem:[%s8] sm:$0x3]
        %v2465 = vlaneseq
        %v2466 = vshrl.u32 %v2465, 7
        %v2467 = vsub.s32 0, %v2466
        %v2468 = vrot.slane %v2463, %v2467
        %v2469 = vlaneseq
        %v2470 = vshrl.u32 %v2469, 7
        %v2471 = vsub.s32 1, %v2470
        %v2472 = vrot.slane %v2463, %v2471
        %v2483 = vunpack.c.l.b16 %v2439
        %v2484 = vunpack.c.h.b16 %v2439
        %v2485 = vunpack.c.l.b16 %v2440
        %v2486 = vunpack.c.h.b16 %v2440
        %v2487 = vunpack.c.l.b16 %v2441
        %v2488 = vunpack.c.h.b16 %v2441
        %v2489 = vunpack.c.l.b16 %v2442
        %v2490 = vunpack.c.h.b16 %v2442
        %v2491 = vunpack.c.l.b16 %v2443
        %v2492 = vunpack.c.h.b16 %v2443
        %v2493 = vunpack.c.l.b16 %v2444
        %v2494 = vunpack.c.h.b16 %v2444
        %v2495 = vunpack.c.l.b16 %v2445
        %v2496 = vunpack.c.h.b16 %v2445
        %v2497 = vunpack.c.l.b16 %v2446
        %v2498 = vunpack.c.h.b16 %v2446
        %v2499 = vpack.c.b16 %v2485, %v2483
        %v2500 = vpack.c.b16 %v2486, %v2484
        %v2501 = vpack.c.b16 %v2489, %v2487
        %v2502 = vpack.c.b16 %v2490, %v2488
        %v2503 = vpack.c.b16 %v2493, %v2491
        %v2504 = vpack.c.b16 %v2494, %v2492
        %v2505 = vpack.c.b16 %v2497, %v2495
        %v2506 = vpack.c.b16 %v2498, %v2496
        %vm2515 = vcmask 523264
        %v2517 = vsel %vm2515, %v2447, 0
        %v2520 = vsel %vm2515, %v2448, 0
        %v2523 = vsel %vm2515, %v2449, 0
        %v2526 = vsel %vm2515, %v2450, 0
        %v2529 = vsel %vm2515, %v2451, 0
        %v2532 = vsel %vm2515, %v2452, 0
        %v2535 = vsel %vm2515, %v2453, 0
        %v2538 = vsel %vm2515, %v2454, 0
        %v2541 = vsel %vm2515, %v2455, 0
        %v2544 = vsel %vm2515, %v2456, 0
        %v2547 = vsel %vm2515, %v2457, 0
        %v2550 = vsel %vm2515, %v2458, 0
        %v2553 = vsel %vm2515, %v2459, 0
        %v2556 = vsel %vm2515, %v2460, 0
        %v2559 = vsel %vm2515, %v2461, 0
        %v2562 = vsel %vm2515, %v2462, 0
        %2564 = vmatprep.subr.bf16.mxu0 %v2500
        %2565 = vmatpush1.bf16.msra.mxu0 %v2499
        %2566 = vmatprep.subr.bf16.mxu0 %v2502
        %2567 = vmatpush1.bf16.msra.mxu0 %v2501
        %2568 = vmatprep.subr.bf16.mxu0 %v2504
        %2569 = vmatpush1.bf16.msra.mxu0 %v2503
        %2570 = vmatprep.subr.bf16.mxu0 %v2506
        %2571 = vmatpush1.bf16.msra.mxu0 %v2505
        %2572 = vmatprep.subr.bf16.mxu0 0
        %2573 = vmatpush1.bf16.msra.mxu0 0
        %2574 = vmatprep.subr.bf16.mxu0 0
        %2575 = vmatpush1.bf16.msra.mxu0 0
        %2576 = vmatprep.subr.bf16.mxu0 0
        %2577 = vmatpush1.bf16.msra.mxu0 0
        %2578 = vmatprep.subr.bf16.mxu0 0
        %2579 = vmatpush1.bf16.msra.mxu0 0
        %2580 = vmatprep.subr.bf16.mxu0 0
        %2581 = vmatpush1.bf16.msra.mxu0 0
        %2582 = vmatprep.subr.bf16.mxu0 0
        %2583 = vmatpush1.bf16.msra.mxu0 0
        %2584 = vmatprep.subr.bf16.mxu0 0
        %2585 = vmatpush1.bf16.msra.mxu0 0
        %2586 = vmatprep.subr.bf16.mxu0 0
        %2587 = vmatpush1.bf16.msra.mxu0 0
        %2588 = vmatprep.subr.bf16.mxu0 0
        %2589 = vmatpush1.bf16.msra.mxu0 0
        %2590 = vmatprep.subr.bf16.mxu0 0
        %2591 = vmatpush1.bf16.msra.mxu0 0
        %2592 = vmatprep.subr.bf16.mxu0 0
        %2593 = vmatpush1.bf16.msra.mxu0 0
        %2594 = vmatprep.subr.bf16.mxu0 0
        %2595 = vmatpush1.bf16.msra.mxu0 0
        %2596 = vmatprep.mubr.bf16.mxu0 0
        %2597 = vmatmul.mubr.bf16.gmra.mrb[0].mxu0 %v2517
        %v2598 = vpop.f32.mrb[0].mxu0
        %v2599 = vadd.f32 %v2468, %v2598
        %v2600 = vpop.f32.mrb[0].mxu0
        %v2601 = vadd.f32 %v2472, %v2600
        %v2602 = vpop.f32.mrb[0].mxu0
        %v2603 = vadd.f32 %v2468, %v2602
        %v2604 = vpop.f32.mrb[0].mxu0
        %v2605 = vadd.f32 %v2472, %v2604
        %2606 = vmatprep.mubr.bf16.mxu0 0
        %2607 = vmatmul.mubr.bf16.gmra.mrb[0].mxu0 %v2520
        %v2608 = vpop.f32.mrb[0].mxu0
        %v2609 = vadd.f32 %v2468, %v2608
        %v2610 = vpop.f32.mrb[0].mxu0
        %v2611 = vadd.f32 %v2472, %v2610
        %v2612 = vpop.f32.mrb[0].mxu0
        %v2613 = vadd.f32 %v2468, %v2612
        %v2614 = vpop.f32.mrb[0].mxu0
        %v2615 = vadd.f32 %v2472, %v2614
        %2616 = vmatprep.mubr.bf16.mxu0 0
        %2617 = vmatmul.mubr.bf16.gmra.mrb[0].mxu0 %v2523
        %v2618 = vpop.f32.mrb[0].mxu0
        %v2619 = vadd.f32 %v2468, %v2618
        %v2620 = vpop.f32.mrb[0].mxu0
        %v2621 = vadd.f32 %v2472, %v2620
        %v2622 = vpop.f32.mrb[0].mxu0
        %v2623 = vadd.f32 %v2468, %v2622
        %v2624 = vpop.f32.mrb[0].mxu0
        %v2625 = vadd.f32 %v2472, %v2624
        %2626 = vmatprep.mubr.bf16.mxu0 0
        %2627 = vmatmul.mubr.bf16.gmra.mrb[0].mxu0 %v2526
        %v2628 = vpop.f32.mrb[0].mxu0
        %v2629 = vadd.f32 %v2468, %v2628
        %v2630 = vpop.f32.mrb[0].mxu0
        %v2631 = vadd.f32 %v2472, %v2630
        %v2632 = vpop.f32.mrb[0].mxu0
        %v2633 = vadd.f32 %v2468, %v2632
        %v2634 = vpop.f32.mrb[0].mxu0
        %v2635 = vadd.f32 %v2472, %v2634
        %2636 = vmatprep.mubr.bf16.mxu0 0
        %2637 = vmatmul.mubr.bf16.gmra.mrb[0].mxu0 %v2529
        %v2638 = vpop.f32.mrb[0].mxu0
        %v2639 = vadd.f32 %v2468, %v2638
        %v2640 = vpop.f32.mrb[0].mxu0
        %v2641 = vadd.f32 %v2472, %v2640
        %v2642 = vpop.f32.mrb[0].mxu0
        %v2643 = vadd.f32 %v2468, %v2642
        %v2644 = vpop.f32.mrb[0].mxu0
        %v2645 = vadd.f32 %v2472, %v2644
        %2646 = vmatprep.mubr.bf16.mxu0 0
        %2647 = vmatmul.mubr.bf16.gmra.mrb[0].mxu0 %v2532
        %v2648 = vpop.f32.mrb[0].mxu0
        %v2649 = vadd.f32 %v2468, %v2648
        %v2650 = vpop.f32.mrb[0].mxu0
        %v2651 = vadd.f32 %v2472, %v2650
        %v2652 = vpop.f32.mrb[0].mxu0
        %v2653 = vadd.f32 %v2468, %v2652
        %v2654 = vpop.f32.mrb[0].mxu0
        %v2655 = vadd.f32 %v2472, %v2654
        %2656 = vmatprep.mubr.bf16.mxu0 0
        %2657 = vmatmul.mubr.bf16.gmra.mrb[0].mxu0 %v2535
        %v2658 = vpop.f32.mrb[0].mxu0
        %v2659 = vadd.f32 %v2468, %v2658
        %v2660 = vpop.f32.mrb[0].mxu0
        %v2661 = vadd.f32 %v2472, %v2660
        %v2662 = vpop.f32.mrb[0].mxu0
        %v2663 = vadd.f32 %v2468, %v2662
        %v2664 = vpop.f32.mrb[0].mxu0
        %v2665 = vadd.f32 %v2472, %v2664
        %2666 = vmatprep.mubr.bf16.mxu0 0
        %2667 = vmatmul.mubr.bf16.gmra.mrb[0].mxu0 %v2538
        %v2668 = vpop.f32.mrb[0].mxu0
        %v2669 = vadd.f32 %v2468, %v2668
        %v2670 = vpop.f32.mrb[0].mxu0
        %v2671 = vadd.f32 %v2472, %v2670
        %v2672 = vpop.f32.mrb[0].mxu0
        %v2673 = vadd.f32 %v2468, %v2672
        %v2674 = vpop.f32.mrb[0].mxu0
        %v2675 = vadd.f32 %v2472, %v2674
        %2676 = vmatprep.mubr.bf16.mxu0 0
        %2677 = vmatmul.mubr.bf16.gmra.mrb[0].mxu0 %v2541
        %v2678 = vpop.f32.mrb[0].mxu0
        %v2679 = vadd.f32 %v2468, %v2678
        %v2680 = vpop.f32.mrb[0].mxu0
        %v2681 = vadd.f32 %v2472, %v2680
        %v2682 = vpop.f32.mrb[0].mxu0
        %v2683 = vadd.f32 %v2468, %v2682
        %v2684 = vpop.f32.mrb[0].mxu0
        %v2685 = vadd.f32 %v2472, %v2684
        %2686 = vmatprep.mubr.bf16.mxu0 0
        %2687 = vmatmul.mubr.bf16.gmra.mrb[0].mxu0 %v2544
        %v2688 = vpop.f32.mrb[0].mxu0
        %v2689 = vadd.f32 %v2468, %v2688
        %v2690 = vpop.f32.mrb[0].mxu0
        %v2691 = vadd.f32 %v2472, %v2690
        %v2692 = vpop.f32.mrb[0].mxu0
        %v2693 = vadd.f32 %v2468, %v2692
        %v2694 = vpop.f32.mrb[0].mxu0
        %v2695 = vadd.f32 %v2472, %v2694
        %2696 = vmatprep.mubr.bf16.mxu0 0
        %2697 = vmatmul.mubr.bf16.gmra.mrb[0].mxu0 %v2547
        %v2698 = vpop.f32.mrb[0].mxu0
        %v2699 = vadd.f32 %v2468, %v2698
        %v2700 = vpop.f32.mrb[0].mxu0
        %v2701 = vadd.f32 %v2472, %v2700
        %v2702 = vpop.f32.mrb[0].mxu0
        %v2703 = vadd.f32 %v2468, %v2702
        %v2704 = vpop.f32.mrb[0].mxu0
        %v2705 = vadd.f32 %v2472, %v2704
        %2706 = vmatprep.mubr.bf16.mxu0 0
        %2707 = vmatmul.mubr.bf16.gmra.mrb[0].mxu0 %v2550
        %v2708 = vpop.f32.mrb[0].mxu0
        %v2709 = vadd.f32 %v2468, %v2708
        %v2710 = vpop.f32.mrb[0].mxu0
        %v2711 = vadd.f32 %v2472, %v2710
        %v2712 = vpop.f32.mrb[0].mxu0
        %v2713 = vadd.f32 %v2468, %v2712
        %v2714 = vpop.f32.mrb[0].mxu0
        %v2715 = vadd.f32 %v2472, %v2714
        %2716 = vmatprep.mubr.bf16.mxu0 0
        %2717 = vmatmul.mubr.bf16.gmra.mrb[0].mxu0 %v2553
        %v2718 = vpop.f32.mrb[0].mxu0
        %v2719 = vadd.f32 %v2468, %v2718
        %v2720 = vpop.f32.mrb[0].mxu0
        %v2721 = vadd.f32 %v2472, %v2720
        %v2722 = vpop.f32.mrb[0].mxu0
        %v2723 = vadd.f32 %v2468, %v2722
        %v2724 = vpop.f32.mrb[0].mxu0
        %v2725 = vadd.f32 %v2472, %v2724
        %2726 = vmatprep.mubr.bf16.mxu0 0
        %2727 = vmatmul.mubr.bf16.gmra.mrb[0].mxu0 %v2556
        %v2728 = vpop.f32.mrb[0].mxu0
        %v2729 = vadd.f32 %v2468, %v2728
        %v2730 = vpop.f32.mrb[0].mxu0
        %v2731 = vadd.f32 %v2472, %v2730
        %v2732 = vpop.f32.mrb[0].mxu0
        %v2733 = vadd.f32 %v2468, %v2732
        %v2734 = vpop.f32.mrb[0].mxu0
        %v2735 = vadd.f32 %v2472, %v2734
        %2736 = vmatprep.mubr.bf16.mxu0 0
        %2737 = vmatmul.mubr.bf16.gmra.mrb[0].mxu0 %v2559
        %v2738 = vpop.f32.mrb[0].mxu0
        %v2739 = vadd.f32 %v2468, %v2738
        %v2740 = vpop.f32.mrb[0].mxu0
        %v2741 = vadd.f32 %v2472, %v2740
        %v2742 = vpop.f32.mrb[0].mxu0
        %v2743 = vadd.f32 %v2468, %v2742
        %v2744 = vpop.f32.mrb[0].mxu0
        %v2745 = vadd.f32 %v2472, %v2744
        %2746 = vmatprep.mubr.bf16.mxu0 0
        %2747 = vmatmul.mubr.bf16.gmra.mrb[0].mxu0 %v2562
        %v2748 = vpop.f32.mrb[0].mxu0
        %v2749 = vadd.f32 %v2468, %v2748
        %v2750 = vpop.f32.mrb[0].mxu0
        %v2751 = vadd.f32 %v2472, %v2750
        %v2752 = vpop.f32.mrb[0].mxu0
        %v2753 = vadd.f32 %v2468, %v2752
        %v2754 = vpop.f32.mrb[0].mxu0
        %v2755 = vadd.f32 %v2472, %v2754
        %2756 = vdwg.mxu0
        %v2757 = vmul.f32 %v2599, 0.01
        %v2758 = vmul.f32 %v2601, 0.01
        %v2759 = vmul.f32 %v2603, 0.01
        %v2760 = vmul.f32 %v2605, 0.01
        %v2761 = vmul.f32 %v2609, 0.01
        %v2762 = vmul.f32 %v2611, 0.01
        %v2763 = vmul.f32 %v2613, 0.01
        %v2764 = vmul.f32 %v2615, 0.01
        %v2765 = vmul.f32 %v2619, 0.01
        %v2766 = vmul.f32 %v2621, 0.01
        %v2767 = vmul.f32 %v2623, 0.01
        %v2768 = vmul.f32 %v2625, 0.01
        %v2769 = vmul.f32 %v2629, 0.01
        %v2770 = vmul.f32 %v2631, 0.01
        %v2771 = vmul.f32 %v2633, 0.01
        %v2772 = vmul.f32 %v2635, 0.01
        %v2773 = vmul.f32 %v2639, 0.01
        %v2774 = vmul.f32 %v2641, 0.01
        %v2775 = vmul.f32 %v2643, 0.01
        %v2776 = vmul.f32 %v2645, 0.01
        %v2777 = vmul.f32 %v2649, 0.01
        %v2778 = vmul.f32 %v2651, 0.01
        %v2779 = vmul.f32 %v2653, 0.01
        %v2780 = vmul.f32 %v2655, 0.01
        %v2781 = vmul.f32 %v2659, 0.01
        %v2782 = vmul.f32 %v2661, 0.01
        %v2783 = vmul.f32 %v2663, 0.01
        %v2784 = vmul.f32 %v2665, 0.01
        %v2785 = vmul.f32 %v2669, 0.01
        %v2786 = vmul.f32 %v2671, 0.01
        %v2787 = vmul.f32 %v2673, 0.01
        %v2788 = vmul.f32 %v2675, 0.01
        %v2789 = vmul.f32 %v2679, 0.01
        %v2790 = vmul.f32 %v2681, 0.01
        %v2791 = vmul.f32 %v2683, 0.01
        %v2792 = vmul.f32 %v2685, 0.01
        %v2793 = vmul.f32 %v2689, 0.01
        %v2794 = vmul.f32 %v2691, 0.01
        %v2795 = vmul.f32 %v2693, 0.01
        %v2796 = vmul.f32 %v2695, 0.01
        %v2797 = vmul.f32 %v2699, 0.01
        %v2798 = vmul.f32 %v2701, 0.01
        %v2799 = vmul.f32 %v2703, 0.01
        %v2800 = vmul.f32 %v2705, 0.01
        %v2801 = vmul.f32 %v2709, 0.01
        %v2802 = vmul.f32 %v2711, 0.01
        %v2803 = vmul.f32 %v2713, 0.01
        %v2804 = vmul.f32 %v2715, 0.01
        %v2805 = vmul.f32 %v2719, 0.01
        %v2806 = vmul.f32 %v2721, 0.01
        %v2807 = vmul.f32 %v2723, 0.01
        %v2808 = vmul.f32 %v2725, 0.01
        %v2809 = vmul.f32 %v2729, 0.01
        %v2810 = vmul.f32 %v2731, 0.01
        %v2811 = vmul.f32 %v2733, 0.01
        %v2812 = vmul.f32 %v2735, 0.01
        %v2813 = vmul.f32 %v2739, 0.01
        %v2814 = vmul.f32 %v2741, 0.01
        %v2815 = vmul.f32 %v2743, 0.01
        %v2816 = vmul.f32 %v2745, 0.01
        %v2817 = vmul.f32 %v2749, 0.01
        %v2818 = vmul.f32 %v2751, 0.01
        %v2819 = vmul.f32 %v2753, 0.01
        %v2820 = vmul.f32 %v2755, 0.01
        %v2821 = vmax.f32 %v2599, %v2757
        %v2822 = vmax.f32 %v2601, %v2758
        %v2823 = vmax.f32 %v2603, %v2759
        %v2824 = vmax.f32 %v2605, %v2760
        %v2825 = vmax.f32 %v2609, %v2761
        %v2826 = vmax.f32 %v2611, %v2762
        %v2827 = vmax.f32 %v2613, %v2763
        %v2828 = vmax.f32 %v2615, %v2764
        %v2829 = vmax.f32 %v2619, %v2765
        %v2830 = vmax.f32 %v2621, %v2766
        %v2831 = vmax.f32 %v2623, %v2767
        %v2832 = vmax.f32 %v2625, %v2768
        %v2833 = vmax.f32 %v2629, %v2769
        %v2834 = vmax.f32 %v2631, %v2770
        %v2835 = vmax.f32 %v2633, %v2771
        %v2836 = vmax.f32 %v2635, %v2772
        %v2837 = vmax.f32 %v2639, %v2773
        %v2838 = vmax.f32 %v2641, %v2774
        %v2839 = vmax.f32 %v2643, %v2775
        %v2840 = vmax.f32 %v2645, %v2776
        %v2841 = vmax.f32 %v2649, %v2777
        %v2842 = vmax.f32 %v2651, %v2778
        %v2843 = vmax.f32 %v2653, %v2779
        %v2844 = vmax.f32 %v2655, %v2780
        %v2845 = vmax.f32 %v2659, %v2781
        %v2846 = vmax.f32 %v2661, %v2782
        %v2847 = vmax.f32 %v2663, %v2783
        %v2848 = vmax.f32 %v2665, %v2784
        %v2849 = vmax.f32 %v2669, %v2785
        %v2850 = vmax.f32 %v2671, %v2786
        %v2851 = vmax.f32 %v2673, %v2787
        %v2852 = vmax.f32 %v2675, %v2788
        %v2853 = vmax.f32 %v2679, %v2789
        %v2854 = vmax.f32 %v2681, %v2790
        %v2855 = vmax.f32 %v2683, %v2791
        %v2856 = vmax.f32 %v2685, %v2792
        %v2857 = vmax.f32 %v2689, %v2793
        %v2858 = vmax.f32 %v2691, %v2794
        %v2859 = vmax.f32 %v2693, %v2795
        %v2860 = vmax.f32 %v2695, %v2796
        %v2861 = vmax.f32 %v2699, %v2797
        %v2862 = vmax.f32 %v2701, %v2798
        %v2863 = vmax.f32 %v2703, %v2799
        %v2864 = vmax.f32 %v2705, %v2800
        %v2865 = vmax.f32 %v2709, %v2801
        %v2866 = vmax.f32 %v2711, %v2802
        %v2867 = vmax.f32 %v2713, %v2803
        %v2868 = vmax.f32 %v2715, %v2804
        %v2869 = vmax.f32 %v2719, %v2805
        %v2870 = vmax.f32 %v2721, %v2806
        %v2871 = vmax.f32 %v2723, %v2807
        %v2872 = vmax.f32 %v2725, %v2808
        %v2873 = vmax.f32 %v2729, %v2809
        %v2874 = vmax.f32 %v2731, %v2810
        %v2875 = vmax.f32 %v2733, %v2811
        %v2876 = vmax.f32 %v2735, %v2812
        %v2877 = vmax.f32 %v2739, %v2813
        %v2878 = vmax.f32 %v2741, %v2814
        %v2879 = vmax.f32 %v2743, %v2815
        %v2880 = vmax.f32 %v2745, %v2816
        %v2881 = vmax.f32 %v2749, %v2817
        %v2882 = vmax.f32 %v2751, %v2818
        %v2883 = vmax.f32 %v2753, %v2819
        %v2884 = vmax.f32 %v2755, %v2820
        %v2885 = vadd.f32 %v2821, %v1634
        %v2886 = vadd.f32 %v2822, %v1636
        %v2887 = vadd.f32 %v2823, %v1638
        %v2888 = vadd.f32 %v2824, %v1640
        %v2889 = vadd.f32 %v2825, %v1644
        %v2890 = vadd.f32 %v2826, %v1646
        %v2891 = vadd.f32 %v2827, %v1648
        %v2892 = vadd.f32 %v2828, %v1650
        %v2893 = vadd.f32 %v2829, %v1654
        %v2894 = vadd.f32 %v2830, %v1656
        %v2895 = vadd.f32 %v2831, %v1658
        %v2896 = vadd.f32 %v2832, %v1660
        %v2897 = vadd.f32 %v2833, %v1664
        %v2898 = vadd.f32 %v2834, %v1666
        %v2899 = vadd.f32 %v2835, %v1668
        %v2900 = vadd.f32 %v2836, %v1670
        %v2901 = vadd.f32 %v2837, %v1674
        %v2902 = vadd.f32 %v2838, %v1676
        %v2903 = vadd.f32 %v2839, %v1678
        %v2904 = vadd.f32 %v2840, %v1680
        %v2905 = vadd.f32 %v2841, %v1684
        %v2906 = vadd.f32 %v2842, %v1686
        %v2907 = vadd.f32 %v2843, %v1688
        %v2908 = vadd.f32 %v2844, %v1690
        %v2909 = vadd.f32 %v2845, %v1694
        %v2910 = vadd.f32 %v2846, %v1696
        %v2911 = vadd.f32 %v2847, %v1698
        %v2912 = vadd.f32 %v2848, %v1700
        %v2913 = vadd.f32 %v2849, %v1704
        %v2914 = vadd.f32 %v2850, %v1706
        %v2915 = vadd.f32 %v2851, %v1708
        %v2916 = vadd.f32 %v2852, %v1710
        %v2917 = vadd.f32 %v2853, %v1714
        %v2918 = vadd.f32 %v2854, %v1716
        %v2919 = vadd.f32 %v2855, %v1718
        %v2920 = vadd.f32 %v2856, %v1720
        %v2921 = vadd.f32 %v2857, %v1724
        %v2922 = vadd.f32 %v2858, %v1726
        %v2923 = vadd.f32 %v2859, %v1728
        %v2924 = vadd.f32 %v2860, %v1730
        %v2925 = vadd.f32 %v2861, %v1734
        %v2926 = vadd.f32 %v2862, %v1736
        %v2927 = vadd.f32 %v2863, %v1738
        %v2928 = vadd.f32 %v2864, %v1740
        %v2929 = vadd.f32 %v2865, %v1744
        %v2930 = vadd.f32 %v2866, %v1746
        %v2931 = vadd.f32 %v2867, %v1748
        %v2932 = vadd.f32 %v2868, %v1750
        %v2933 = vadd.f32 %v2869, %v1754
        %v2934 = vadd.f32 %v2870, %v1756
        %v2935 = vadd.f32 %v2871, %v1758
        %v2936 = vadd.f32 %v2872, %v1760
        %v2937 = vadd.f32 %v2873, %v1764
        %v2938 = vadd.f32 %v2874, %v1766
        %v2939 = vadd.f32 %v2875, %v1768
        %v2940 = vadd.f32 %v2876, %v1770
        %v2941 = vadd.f32 %v2877, %v1774
        %v2942 = vadd.f32 %v2878, %v1776
        %v2943 = vadd.f32 %v2879, %v1778
        %v2944 = vadd.f32 %v2880, %v1780
        %v2945 = vadd.f32 %v2881, %v1784
        %v2946 = vadd.f32 %v2882, %v1786
        %v2947 = vadd.f32 %v2883, %v1788
        %v2948 = vadd.f32 %v2884, %v1790
        %v2949 = vld [vmem:[%s9] sm:$0xff]
        %v2950 = vld [vmem:[%s9 + $0x8] sm:$0xf]
        %v2951 = vld [vmem:[%s9 + $0xc] sm:$0xff]
        %v2952 = vld [vmem:[%s9 + $0x14] sm:$0xf]
        %v2953 = vld [vmem:[%s9 + $0x18] sm:$0xff]
        %v2954 = vld [vmem:[%s9 + $0x20] sm:$0xf]
        %v2955 = vld [vmem:[%s9 + $0x24] sm:$0xff]
        %v2956 = vld [vmem:[%s9 + $0x2c] sm:$0xf]
        %v2957 = vld [vmem:[%s9 + $0x30] sm:$0xff]
        %v2958 = vld [vmem:[%s9 + $0x38] sm:$0xf]
        %v2959 = vld [vmem:[%s9 + $0x3c] sm:$0xff]
        %v2960 = vld [vmem:[%s9 + $0x44] sm:$0xf]
        %v2961 = vld [vmem:[%s9 + $0x48] sm:$0xff]
        %v2962 = vld [vmem:[%s9 + $0x50] sm:$0xf]
        %v2963 = vld [vmem:[%s9 + $0x54] sm:$0xff]
        %v2964 = vld [vmem:[%s9 + $0x5c] sm:$0xf]
        %v2965 = vld [vmem:[%s9 + $0x60] sm:$0xff]
        %v2966 = vld [vmem:[%s9 + $0x68] sm:$0xf]
        %v2967 = vld [vmem:[%s9 + $0x6c] sm:$0xff]
        %v2968 = vld [vmem:[%s9 + $0x74] sm:$0xf]
        %v2969 = vld [vmem:[%s9 + $0x78] sm:$0xff]
        %v2970 = vld [vmem:[%s9 + $0x80] sm:$0xf]
        %v2971 = vld [vmem:[%s9 + $0x84] sm:$0xff]
        %v2972 = vld [vmem:[%s9 + $0x8c] sm:$0xf]
        %v2973 = vld [vmem:[%s9 + $0x90] sm:$0xff]
        %v2974 = vld [vmem:[%s9 + $0x98] sm:$0xf]
        %v2975 = vld [vmem:[%s9 + $0x9c] sm:$0xff]
        %v2976 = vld [vmem:[%s9 + $0xa4] sm:$0xf]
        %v2977 = vld [vmem:[%s9 + $0xa8] sm:$0xff]
        %v2978 = vld [vmem:[%s9 + $0xb0] sm:$0xf]
        %v2979 = vld [vmem:[%s9 + $0xb4] sm:$0xff]
        %v2980 = vld [vmem:[%s9 + $0xbc] sm:$0xf]
        %v2981 = vld [vmem:[%s9 + $0xc0] sm:$0xff]
        %v2982 = vld [vmem:[%s9 + $0xc8] sm:$0xf]
        %v2983 = vld [vmem:[%s9 + $0xcc] sm:$0xff]
        %v2984 = vld [vmem:[%s9 + $0xd4] sm:$0xf]
        %v2985 = vld [vmem:[%s9 + $0xd8] sm:$0xff]
        %v2986 = vld [vmem:[%s9 + $0xe0] sm:$0xf]
        %v2987 = vld [vmem:[%s9 + $0xe4] sm:$0xff]
        %v2988 = vld [vmem:[%s9 + $0xec] sm:$0xf]
        %v2989 = vld [vmem:[%s9 + $0xf0] sm:$0xff]
        %v2990 = vld [vmem:[%s9 + $0xf8] sm:$0xf]
        %v2991 = vld [vmem:[%s9 + $0xfc] sm:$0xff]
        %v2992 = vld [vmem:[%s9 + $0x104] sm:$0xf]
        %v2993 = vld [vmem:[%s9 + $0x108] sm:$0xff]
        %v2994 = vld [vmem:[%s9 + $0x110] sm:$0xf]
        %v2995 = vld [vmem:[%s9 + $0x114] sm:$0xff]
        %v2996 = vld [vmem:[%s9 + $0x11c] sm:$0xf]
        %v2997 = vld [vmem:[%s9 + $0x120] sm:$0xff]
        %v2998 = vld [vmem:[%s9 + $0x128] sm:$0xf]
        %v2999 = vld [vmem:[%s9 + $0x12c] sm:$0xff]
        %v3000 = vld [vmem:[%s9 + $0x134] sm:$0xf]
        %v3001 = vld [vmem:[%s9 + $0x138] sm:$0xff]
        %v3002 = vld [vmem:[%s9 + $0x140] sm:$0xf]
        %v3003 = vld [vmem:[%s9 + $0x144] sm:$0xff]
        %v3004 = vld [vmem:[%s9 + $0x14c] sm:$0xf]
        %v3005 = vld [vmem:[%s9 + $0x150] sm:$0xff]
        %v3006 = vld [vmem:[%s9 + $0x158] sm:$0xf]
        %v3007 = vld [vmem:[%s9 + $0x15c] sm:$0xff]
        %v3008 = vld [vmem:[%s9 + $0x164] sm:$0xf]
        %v3009 = vld [vmem:[%s9 + $0x168] sm:$0xff]
        %v3010 = vld [vmem:[%s9 + $0x170] sm:$0xf]
        %v3011 = vld [vmem:[%s9 + $0x174] sm:$0xff]
        %v3012 = vld [vmem:[%s9 + $0x17c] sm:$0xf]
        %v3013 = vpack.c.bf16 %v2887, %v2885
        %v3014 = vpack.c.bf16 %v2888, %v2886
        %v3015 = vpack.c.bf16 %v2891, %v2889
        %v3016 = vpack.c.bf16 %v2892, %v2890
        %v3017 = vpack.c.bf16 %v2895, %v2893
        %v3018 = vpack.c.bf16 %v2896, %v2894
        %v3019 = vpack.c.bf16 %v2899, %v2897
        %v3020 = vpack.c.bf16 %v2900, %v2898
        %v3021 = vpack.c.bf16 %v2903, %v2901
        %v3022 = vpack.c.bf16 %v2904, %v2902
        %v3023 = vpack.c.bf16 %v2907, %v2905
        %v3024 = vpack.c.bf16 %v2908, %v2906
        %v3025 = vpack.c.bf16 %v2911, %v2909
        %v3026 = vpack.c.bf16 %v2912, %v2910
        %v3027 = vpack.c.bf16 %v2915, %v2913
        %v3028 = vpack.c.bf16 %v2916, %v2914
        %v3029 = vpack.c.bf16 %v2919, %v2917
        %v3030 = vpack.c.bf16 %v2920, %v2918
        %v3031 = vpack.c.bf16 %v2923, %v2921
        %v3032 = vpack.c.bf16 %v2924, %v2922
        %v3033 = vpack.c.bf16 %v2927, %v2925
        %v3034 = vpack.c.bf16 %v2928, %v2926
        %v3035 = vpack.c.bf16 %v2931, %v2929
        %v3036 = vpack.c.bf16 %v2932, %v2930
        %v3037 = vpack.c.bf16 %v2935, %v2933
        %v3038 = vpack.c.bf16 %v2936, %v2934
        %v3039 = vpack.c.bf16 %v2939, %v2937
        %v3040 = vpack.c.bf16 %v2940, %v2938
        %v3041 = vpack.c.bf16 %v2943, %v2941
        %v3042 = vpack.c.bf16 %v2944, %v2942
        %v3043 = vpack.c.bf16 %v2947, %v2945
        %v3044 = vpack.c.bf16 %v2948, %v2946
        %v3109 = vunpack.c.l.b16 %v2949
        %v3110 = vunpack.c.h.b16 %v2949
        %v3111 = vunpack.c.l.b16 %v2950
        %v3112 = vunpack.c.l.b16 %v2951
        %v3113 = vunpack.c.h.b16 %v2951
        %v3114 = vunpack.c.l.b16 %v2952
        %v3115 = vunpack.c.l.b16 %v2953
        %v3116 = vunpack.c.h.b16 %v2953
        %v3117 = vunpack.c.l.b16 %v2954
        %v3118 = vunpack.c.l.b16 %v2955
        %v3119 = vunpack.c.h.b16 %v2955
        %v3120 = vunpack.c.l.b16 %v2956
        %v3121 = vunpack.c.l.b16 %v2957
        %v3122 = vunpack.c.h.b16 %v2957
        %v3123 = vunpack.c.l.b16 %v2958
        %v3124 = vunpack.c.l.b16 %v2959
        %v3125 = vunpack.c.h.b16 %v2959
        %v3126 = vunpack.c.l.b16 %v2960
        %v3127 = vunpack.c.l.b16 %v2961
        %v3128 = vunpack.c.h.b16 %v2961
        %v3129 = vunpack.c.l.b16 %v2962
        %v3130 = vunpack.c.l.b16 %v2963
        %v3131 = vunpack.c.h.b16 %v2963
        %v3132 = vunpack.c.l.b16 %v2964
        %v3133 = vunpack.c.l.b16 %v2965
        %v3134 = vunpack.c.h.b16 %v2965
        %v3135 = vunpack.c.l.b16 %v2966
        %v3136 = vunpack.c.l.b16 %v2967
        %v3137 = vunpack.c.h.b16 %v2967
        %v3138 = vunpack.c.l.b16 %v2968
        %v3139 = vunpack.c.l.b16 %v2969
        %v3140 = vunpack.c.h.b16 %v2969
        %v3141 = vunpack.c.l.b16 %v2970
        %v3142 = vunpack.c.l.b16 %v2971
        %v3143 = vunpack.c.h.b16 %v2971
        %v3144 = vunpack.c.l.b16 %v2972
        %v3145 = vunpack.c.l.b16 %v2973
        %v3146 = vunpack.c.h.b16 %v2973
        %v3147 = vunpack.c.l.b16 %v2974
        %v3148 = vunpack.c.l.b16 %v2975
        %v3149 = vunpack.c.h.b16 %v2975
        %v3150 = vunpack.c.l.b16 %v2976
        %v3151 = vunpack.c.l.b16 %v2977
        %v3152 = vunpack.c.h.b16 %v2977
        %v3153 = vunpack.c.l.b16 %v2978
        %v3154 = vunpack.c.l.b16 %v2979
        %v3155 = vunpack.c.h.b16 %v2979
        %v3156 = vunpack.c.l.b16 %v2980
        %v3157 = vunpack.c.l.b16 %v2981
        %v3158 = vunpack.c.h.b16 %v2981
        %v3159 = vunpack.c.l.b16 %v2982
        %v3160 = vunpack.c.l.b16 %v2983
        %v3161 = vunpack.c.h.b16 %v2983
        %v3162 = vunpack.c.l.b16 %v2984
        %v3163 = vunpack.c.l.b16 %v2985
        %v3164 = vunpack.c.h.b16 %v2985
        %v3165 = vunpack.c.l.b16 %v2986
        %v3166 = vunpack.c.l.b16 %v2987
        %v3167 = vunpack.c.h.b16 %v2987
        %v3168 = vunpack.c.l.b16 %v2988
        %v3169 = vunpack.c.l.b16 %v2989
        %v3170 = vunpack.c.h.b16 %v2989
        %v3171 = vunpack.c.l.b16 %v2990
        %v3172 = vunpack.c.l.b16 %v2991
        %v3173 = vunpack.c.h.b16 %v2991
        %v3174 = vunpack.c.l.b16 %v2992
        %v3175 = vunpack.c.l.b16 %v2993
        %v3176 = vunpack.c.h.b16 %v2993
        %v3177 = vunpack.c.l.b16 %v2994
        %v3178 = vunpack.c.l.b16 %v2995
        %v3179 = vunpack.c.h.b16 %v2995
        %v3180 = vunpack.c.l.b16 %v2996
        %v3181 = vunpack.c.l.b16 %v2997
        %v3182 = vunpack.c.h.b16 %v2997
        %v3183 = vunpack.c.l.b16 %v2998
        %v3184 = vunpack.c.l.b16 %v2999
        %v3185 = vunpack.c.h.b16 %v2999
        %v3186 = vunpack.c.l.b16 %v3000
        %v3187 = vunpack.c.l.b16 %v3001
        %v3188 = vunpack.c.h.b16 %v3001
        %v3189 = vunpack.c.l.b16 %v3002
        %v3190 = vunpack.c.l.b16 %v3003
        %v3191 = vunpack.c.h.b16 %v3003
        %v3192 = vunpack.c.l.b16 %v3004
        %v3193 = vunpack.c.l.b16 %v3005
        %v3194 = vunpack.c.h.b16 %v3005
        %v3195 = vunpack.c.l.b16 %v3006
        %v3196 = vunpack.c.l.b16 %v3007
        %v3197 = vunpack.c.h.b16 %v3007
        %v3198 = vunpack.c.l.b16 %v3008
        %v3199 = vunpack.c.l.b16 %v3009
        %v3200 = vunpack.c.h.b16 %v3009
        %v3201 = vunpack.c.l.b16 %v3010
        %v3202 = vunpack.c.l.b16 %v3011
        %v3203 = vunpack.c.h.b16 %v3011
        %v3204 = vunpack.c.l.b16 %v3012
        %v3205 = vpack.c.b16 %v3112, %v3109
        %v3206 = vpack.c.b16 %v3113, %v3110
        %v3207 = vpack.c.b16 %v3114, %v3111
        %v3208 = vpack.c.b16 %v3118, %v3115
        %v3209 = vpack.c.b16 %v3119, %v3116
        %v3210 = vpack.c.b16 %v3120, %v3117
        %v3211 = vpack.c.b16 %v3124, %v3121
        %v3212 = vpack.c.b16 %v3125, %v3122
        %v3213 = vpack.c.b16 %v3126, %v3123
        %v3214 = vpack.c.b16 %v3130, %v3127
        %v3215 = vpack.c.b16 %v3131, %v3128
        %v3216 = vpack.c.b16 %v3132, %v3129
        %v3217 = vpack.c.b16 %v3136, %v3133
        %v3218 = vpack.c.b16 %v3137, %v3134
        %v3219 = vpack.c.b16 %v3138, %v3135
        %v3220 = vpack.c.b16 %v3142, %v3139
        %v3221 = vpack.c.b16 %v3143, %v3140
        %v3222 = vpack.c.b16 %v3144, %v3141
        %v3223 = vpack.c.b16 %v3148, %v3145
        %v3224 = vpack.c.b16 %v3149, %v3146
        %v3225 = vpack.c.b16 %v3150, %v3147
        %v3226 = vpack.c.b16 %v3154, %v3151
        %v3227 = vpack.c.b16 %v3155, %v3152
        %v3228 = vpack.c.b16 %v3156, %v3153
        %v3229 = vpack.c.b16 %v3160, %v3157
        %v3230 = vpack.c.b16 %v3161, %v3158
        %v3231 = vpack.c.b16 %v3162, %v3159
        %v3232 = vpack.c.b16 %v3166, %v3163
        %v3233 = vpack.c.b16 %v3167, %v3164
        %v3234 = vpack.c.b16 %v3168, %v3165
        %v3235 = vpack.c.b16 %v3172, %v3169
        %v3236 = vpack.c.b16 %v3173, %v3170
        %v3237 = vpack.c.b16 %v3174, %v3171
        %v3238 = vpack.c.b16 %v3178, %v3175
        %v3239 = vpack.c.b16 %v3179, %v3176
        %v3240 = vpack.c.b16 %v3180, %v3177
        %v3241 = vpack.c.b16 %v3184, %v3181
        %v3242 = vpack.c.b16 %v3185, %v3182
        %v3243 = vpack.c.b16 %v3186, %v3183
        %v3244 = vpack.c.b16 %v3190, %v3187
        %v3245 = vpack.c.b16 %v3191, %v3188
        %v3246 = vpack.c.b16 %v3192, %v3189
        %v3247 = vpack.c.b16 %v3196, %v3193
        %v3248 = vpack.c.b16 %v3197, %v3194
        %v3249 = vpack.c.b16 %v3198, %v3195
        %v3250 = vpack.c.b16 %v3202, %v3199
        %v3251 = vpack.c.b16 %v3203, %v3200
        %v3252 = vpack.c.b16 %v3204, %v3201
        %3301 = vmatprep.subr.bf16.mxu0 %v3206
        %3302 = vmatpush1.bf16.msra.mxu0 %v3205
        %3303 = vmatprep.subr.bf16.mxu0 %v3209
        %3304 = vmatpush1.bf16.msra.mxu0 %v3208
        %3305 = vmatprep.subr.bf16.mxu0 %v3212
        %3306 = vmatpush1.bf16.msra.mxu0 %v3211
        %3307 = vmatprep.subr.bf16.mxu0 %v3215
        %3308 = vmatpush1.bf16.msra.mxu0 %v3214
        %3309 = vmatprep.subr.bf16.mxu0 %v3218
        %3310 = vmatpush1.bf16.msra.mxu0 %v3217
        %3311 = vmatprep.subr.bf16.mxu0 %v3221
        %3312 = vmatpush1.bf16.msra.mxu0 %v3220
        %3313 = vmatprep.subr.bf16.mxu0 %v3224
        %3314 = vmatpush1.bf16.msra.mxu0 %v3223
        %3315 = vmatprep.subr.bf16.mxu0 %v3227
        %3316 = vmatpush1.bf16.msra.mxu0 %v3226
        %3317 = vmatprep.subr.bf16.mxu0 %v3230
        %3318 = vmatpush1.bf16.msra.mxu0 %v3229
        %3319 = vmatprep.subr.bf16.mxu0 %v3233
        %3320 = vmatpush1.bf16.msra.mxu0 %v3232
        %3321 = vmatprep.subr.bf16.mxu0 %v3236
        %3322 = vmatpush1.bf16.msra.mxu0 %v3235
        %3323 = vmatprep.subr.bf16.mxu0 %v3239
        %3324 = vmatpush1.bf16.msra.mxu0 %v3238
        %3325 = vmatprep.subr.bf16.mxu0 %v3242
        %3326 = vmatpush1.bf16.msra.mxu0 %v3241
        %3327 = vmatprep.subr.bf16.mxu0 %v3245
        %3328 = vmatpush1.bf16.msra.mxu0 %v3244
        %3329 = vmatprep.subr.bf16.mxu0 %v3248
        %3330 = vmatpush1.bf16.msra.mxu0 %v3247
        %3331 = vmatprep.subr.bf16.mxu0 %v3251
        %3332 = vmatpush1.bf16.msra.mxu0 %v3250
        %3333 = vmatprep.mubr.bf16.mxu0 %v3014
        %3334 = vmatmul.mubr.bf16.gmra.mrb[0].mxu0 %v3013
        %v3335 = vpop.f32.mrb[0].mxu0
        %v3336 = vadd.f32 0.0, %v3335
        %v3337 = vpop.f32.mrb[0].mxu0
        %v3338 = vadd.f32 0.0, %v3337
        %v3339 = vpop.f32.mrb[0].mxu0
        %v3340 = vadd.f32 0.0, %v3339
        %v3341 = vpop.f32.mrb[0].mxu0
        %v3342 = vadd.f32 0.0, %v3341
        %3343 = vmatprep.mubr.bf16.mxu0 %v3016
        %3344 = vmatmul.mubr.bf16.gmra.mrb[0].mxu0 %v3015
        %v3345 = vpop.f32.mrb[0].mxu0
        %v3346 = vadd.f32 0.0, %v3345
        %v3347 = vpop.f32.mrb[0].mxu0
        %v3348 = vadd.f32 0.0, %v3347
        %v3349 = vpop.f32.mrb[0].mxu0
        %v3350 = vadd.f32 0.0, %v3349
        %v3351 = vpop.f32.mrb[0].mxu0
        %v3352 = vadd.f32 0.0, %v3351
        %3353 = vmatprep.mubr.bf16.mxu0 %v3018
        %3354 = vmatmul.mubr.bf16.gmra.mrb[0].mxu0 %v3017
        %v3355 = vpop.f32.mrb[0].mxu0
        %v3356 = vadd.f32 0.0, %v3355
        %v3357 = vpop.f32.mrb[0].mxu0
        %v3358 = vadd.f32 0.0, %v3357
        %v3359 = vpop.f32.mrb[0].mxu0
        %v3360 = vadd.f32 0.0, %v3359
        %v3361 = vpop.f32.mrb[0].mxu0
        %v3362 = vadd.f32 0.0, %v3361
        %3363 = vmatprep.mubr.bf16.mxu0 %v3020
        %3364 = vmatmul.mubr.bf16.gmra.mrb[0].mxu0 %v3019
        %v3365 = vpop.f32.mrb[0].mxu0
        %v3366 = vadd.f32 0.0, %v3365
        %v3367 = vpop.f32.mrb[0].mxu0
        %v3368 = vadd.f32 0.0, %v3367
        %v3369 = vpop.f32.mrb[0].mxu0
        %v3370 = vadd.f32 0.0, %v3369
        %v3371 = vpop.f32.mrb[0].mxu0
        %v3372 = vadd.f32 0.0, %v3371
        %3373 = vmatprep.mubr.bf16.mxu0 %v3022
        %3374 = vmatmul.mubr.bf16.gmra.mrb[0].mxu0 %v3021
        %v3375 = vpop.f32.mrb[0].mxu0
        %v3376 = vadd.f32 0.0, %v3375
        %v3377 = vpop.f32.mrb[0].mxu0
        %v3378 = vadd.f32 0.0, %v3377
        %v3379 = vpop.f32.mrb[0].mxu0
        %v3380 = vadd.f32 0.0, %v3379
        %v3381 = vpop.f32.mrb[0].mxu0
        %v3382 = vadd.f32 0.0, %v3381
        %3383 = vmatprep.mubr.bf16.mxu0 %v3024
        %3384 = vmatmul.mubr.bf16.gmra.mrb[0].mxu0 %v3023
        %v3385 = vpop.f32.mrb[0].mxu0
        %v3386 = vadd.f32 0.0, %v3385
        %v3387 = vpop.f32.mrb[0].mxu0
        %v3388 = vadd.f32 0.0, %v3387
        %v3389 = vpop.f32.mrb[0].mxu0
        %v3390 = vadd.f32 0.0, %v3389
        %v3391 = vpop.f32.mrb[0].mxu0
        %v3392 = vadd.f32 0.0, %v3391
        %3393 = vmatprep.mubr.bf16.mxu0 %v3026
        %3394 = vmatmul.mubr.bf16.gmra.mrb[0].mxu0 %v3025
        %v3395 = vpop.f32.mrb[0].mxu0
        %v3396 = vadd.f32 0.0, %v3395
        %v3397 = vpop.f32.mrb[0].mxu0
        %v3398 = vadd.f32 0.0, %v3397
        %v3399 = vpop.f32.mrb[0].mxu0
        %v3400 = vadd.f32 0.0, %v3399
        %v3401 = vpop.f32.mrb[0].mxu0
        %v3402 = vadd.f32 0.0, %v3401
        %3403 = vmatprep.mubr.bf16.mxu0 %v3028
        %3404 = vmatmul.mubr.bf16.gmra.mrb[0].mxu0 %v3027
        %v3405 = vpop.f32.mrb[0].mxu0
        %v3406 = vadd.f32 0.0, %v3405
        %v3407 = vpop.f32.mrb[0].mxu0
        %v3408 = vadd.f32 0.0, %v3407
        %v3409 = vpop.f32.mrb[0].mxu0
        %v3410 = vadd.f32 0.0, %v3409
        %v3411 = vpop.f32.mrb[0].mxu0
        %v3412 = vadd.f32 0.0, %v3411
        %3413 = vmatprep.mubr.bf16.mxu0 %v3030
        %3414 = vmatmul.mubr.bf16.gmra.mrb[0].mxu0 %v3029
        %v3415 = vpop.f32.mrb[0].mxu0
        %v3416 = vadd.f32 0.0, %v3415
        %v3417 = vpop.f32.mrb[0].mxu0
        %v3418 = vadd.f32 0.0, %v3417
        %v3419 = vpop.f32.mrb[0].mxu0
        %v3420 = vadd.f32 0.0, %v3419
        %v3421 = vpop.f32.mrb[0].mxu0
        %v3422 = vadd.f32 0.0, %v3421
        %3423 = vmatprep.mubr.bf16.mxu0 %v3032
        %3424 = vmatmul.mubr.bf16.gmra.mrb[0].mxu0 %v3031
        %v3425 = vpop.f32.mrb[0].mxu0
        %v3426 = vadd.f32 0.0, %v3425
        %v3427 = vpop.f32.mrb[0].mxu0
        %v3428 = vadd.f32 0.0, %v3427
        %v3429 = vpop.f32.mrb[0].mxu0
        %v3430 = vadd.f32 0.0, %v3429
        %v3431 = vpop.f32.mrb[0].mxu0
        %v3432 = vadd.f32 0.0, %v3431
        %3433 = vmatprep.mubr.bf16.mxu0 %v3034
        %3434 = vmatmul.mubr.bf16.gmra.mrb[0].mxu0 %v3033
        %v3435 = vpop.f32.mrb[0].mxu0
        %v3436 = vadd.f32 0.0, %v3435
        %v3437 = vpop.f32.mrb[0].mxu0
        %v3438 = vadd.f32 0.0, %v3437
        %v3439 = vpop.f32.mrb[0].mxu0
        %v3440 = vadd.f32 0.0, %v3439
        %v3441 = vpop.f32.mrb[0].mxu0
        %v3442 = vadd.f32 0.0, %v3441
        %3443 = vmatprep.mubr.bf16.mxu0 %v3036
        %3444 = vmatmul.mubr.bf16.gmra.mrb[0].mxu0 %v3035
        %v3445 = vpop.f32.mrb[0].mxu0
        %v3446 = vadd.f32 0.0, %v3445
        %v3447 = vpop.f32.mrb[0].mxu0
        %v3448 = vadd.f32 0.0, %v3447
        %v3449 = vpop.f32.mrb[0].mxu0
        %v3450 = vadd.f32 0.0, %v3449
        %v3451 = vpop.f32.mrb[0].mxu0
        %v3452 = vadd.f32 0.0, %v3451
        %3453 = vmatprep.mubr.bf16.mxu0 %v3038
        %3454 = vmatmul.mubr.bf16.gmra.mrb[0].mxu0 %v3037
        %v3455 = vpop.f32.mrb[0].mxu0
        %v3456 = vadd.f32 0.0, %v3455
        %v3457 = vpop.f32.mrb[0].mxu0
        %v3458 = vadd.f32 0.0, %v3457
        %v3459 = vpop.f32.mrb[0].mxu0
        %v3460 = vadd.f32 0.0, %v3459
        %v3461 = vpop.f32.mrb[0].mxu0
        %v3462 = vadd.f32 0.0, %v3461
        %3463 = vmatprep.mubr.bf16.mxu0 %v3040
        %3464 = vmatmul.mubr.bf16.gmra.mrb[0].mxu0 %v3039
        %v3465 = vpop.f32.mrb[0].mxu0
        %v3466 = vadd.f32 0.0, %v3465
        %v3467 = vpop.f32.mrb[0].mxu0
        %v3468 = vadd.f32 0.0, %v3467
        %v3469 = vpop.f32.mrb[0].mxu0
        %v3470 = vadd.f32 0.0, %v3469
        %v3471 = vpop.f32.mrb[0].mxu0
        %v3472 = vadd.f32 0.0, %v3471
        %3473 = vmatprep.mubr.bf16.mxu0 %v3042
        %3474 = vmatmul.mubr.bf16.gmra.mrb[0].mxu0 %v3041
        %v3475 = vpop.f32.mrb[0].mxu0
        %v3476 = vadd.f32 0.0, %v3475
        %v3477 = vpop.f32.mrb[0].mxu0
        %v3478 = vadd.f32 0.0, %v3477
        %v3479 = vpop.f32.mrb[0].mxu0
        %v3480 = vadd.f32 0.0, %v3479
        %v3481 = vpop.f32.mrb[0].mxu0
        %v3482 = vadd.f32 0.0, %v3481
        %3483 = vmatprep.mubr.bf16.mxu0 %v3044
        %3484 = vmatmul.mubr.bf16.gmra.mrb[0].mxu0 %v3043
        %v3485 = vpop.f32.mrb[0].mxu0
        %v3486 = vadd.f32 0.0, %v3485
        %v3487 = vpop.f32.mrb[0].mxu0
        %v3488 = vadd.f32 0.0, %v3487
        %v3489 = vpop.f32.mrb[0].mxu0
        %v3490 = vadd.f32 0.0, %v3489
        %v3491 = vpop.f32.mrb[0].mxu0
        %v3492 = vadd.f32 0.0, %v3491
        %3493 = vdwg.mxu0
        %3494 = vmatprep.subr.bf16.mxu0 0
        %3495 = vmatpush1.bf16.msra.mxu0 %v3207
        %3496 = vmatprep.subr.bf16.mxu0 0
        %3497 = vmatpush1.bf16.msra.mxu0 %v3210
        %3498 = vmatprep.subr.bf16.mxu0 0
        %3499 = vmatpush1.bf16.msra.mxu0 %v3213
        %3500 = vmatprep.subr.bf16.mxu0 0
        %3501 = vmatpush1.bf16.msra.mxu0 %v3216
        %3502 = vmatprep.subr.bf16.mxu0 0
        %3503 = vmatpush1.bf16.msra.mxu0 %v3219
        %3504 = vmatprep.subr.bf16.mxu0 0
        %3505 = vmatpush1.bf16.msra.mxu0 %v3222
        %3506 = vmatprep.subr.bf16.mxu0 0
        %3507 = vmatpush1.bf16.msra.mxu0 %v3225
        %3508 = vmatprep.subr.bf16.mxu0 0
        %3509 = vmatpush1.bf16.msra.mxu0 %v3228
        %3510 = vmatprep.subr.bf16.mxu0 0
        %3511 = vmatpush1.bf16.msra.mxu0 %v3231
        %3512 = vmatprep.subr.bf16.mxu0 0
        %3513 = vmatpush1.bf16.msra.mxu0 %v3234
        %3514 = vmatprep.subr.bf16.mxu0 0
        %3515 = vmatpush1.bf16.msra.mxu0 %v3237
        %3516 = vmatprep.subr.bf16.mxu0 0
        %3517 = vmatpush1.bf16.msra.mxu0 %v3240
        %3518 = vmatprep.subr.bf16.mxu0 0
        %3519 = vmatpush1.bf16.msra.mxu0 %v3243
        %3520 = vmatprep.subr.bf16.mxu0 0
        %3521 = vmatpush1.bf16.msra.mxu0 %v3246
        %3522 = vmatprep.subr.bf16.mxu0 0
        %3523 = vmatpush1.bf16.msra.mxu0 %v3249
        %3524 = vmatprep.subr.bf16.mxu0 0
        %3525 = vmatpush1.bf16.msra.mxu0 %v3252
        %3526 = vmatprep.mubr.bf16.mxu0 %v3014
        %3527 = vmatmul.mubr.bf16.gmra.mrb[0].mxu0 %v3013
        %v3528 = vpop.f32.mrb[0].mxu0
        %v3529 = vadd.f32 0.0, %v3528
        %v3530 = vpop.f32.mrb[0].mxu0
        %v3531 = vpop.f32.mrb[0].mxu0
        %v3532 = vadd.f32 0.0, %v3531
        %v3533 = vpop.f32.mrb[0].mxu0
        %3534 = vmatprep.mubr.bf16.mxu0 %v3016
        %3535 = vmatmul.mubr.bf16.gmra.mrb[0].mxu0 %v3015
        %v3536 = vpop.f32.mrb[0].mxu0
        %v3537 = vadd.f32 0.0, %v3536
        %v3538 = vpop.f32.mrb[0].mxu0
        %v3539 = vpop.f32.mrb[0].mxu0
        %v3540 = vadd.f32 0.0, %v3539
        %v3541 = vpop.f32.mrb[0].mxu0
        %3542 = vmatprep.mubr.bf16.mxu0 %v3018
        %3543 = vmatmul.mubr.bf16.gmra.mrb[0].mxu0 %v3017
        %v3544 = vpop.f32.mrb[0].mxu0
        %v3545 = vadd.f32 0.0, %v3544
        %v3546 = vpop.f32.mrb[0].mxu0
        %v3547 = vpop.f32.mrb[0].mxu0
        %v3548 = vadd.f32 0.0, %v3547
        %v3549 = vpop.f32.mrb[0].mxu0
        %3550 = vmatprep.mubr.bf16.mxu0 %v3020
        %3551 = vmatmul.mubr.bf16.gmra.mrb[0].mxu0 %v3019
        %v3552 = vpop.f32.mrb[0].mxu0
        %v3553 = vadd.f32 0.0, %v3552
        %v3554 = vpop.f32.mrb[0].mxu0
        %v3555 = vpop.f32.mrb[0].mxu0
        %v3556 = vadd.f32 0.0, %v3555
        %v3557 = vpop.f32.mrb[0].mxu0
        %3558 = vmatprep.mubr.bf16.mxu0 %v3022
        %3559 = vmatmul.mubr.bf16.gmra.mrb[0].mxu0 %v3021
        %v3560 = vpop.f32.mrb[0].mxu0
        %v3561 = vadd.f32 0.0, %v3560
        %v3562 = vpop.f32.mrb[0].mxu0
        %v3563 = vpop.f32.mrb[0].mxu0
        %v3564 = vadd.f32 0.0, %v3563
        %v3565 = vpop.f32.mrb[0].mxu0
        %3566 = vmatprep.mubr.bf16.mxu0 %v3024
        %3567 = vmatmul.mubr.bf16.gmra.mrb[0].mxu0 %v3023
        %v3568 = vpop.f32.mrb[0].mxu0
        %v3569 = vadd.f32 0.0, %v3568
        %v3570 = vpop.f32.mrb[0].mxu0
        %v3571 = vpop.f32.mrb[0].mxu0
        %v3572 = vadd.f32 0.0, %v3571
        %v3573 = vpop.f32.mrb[0].mxu0
        %3574 = vmatprep.mubr.bf16.mxu0 %v3026
        %3575 = vmatmul.mubr.bf16.gmra.mrb[0].mxu0 %v3025
        %v3576 = vpop.f32.mrb[0].mxu0
        %v3577 = vadd.f32 0.0, %v3576
        %v3578 = vpop.f32.mrb[0].mxu0
        %v3579 = vpop.f32.mrb[0].mxu0
        %v3580 = vadd.f32 0.0, %v3579
        %v3581 = vpop.f32.mrb[0].mxu0
        %3582 = vmatprep.mubr.bf16.mxu0 %v3028
        %3583 = vmatmul.mubr.bf16.gmra.mrb[0].mxu0 %v3027
        %v3584 = vpop.f32.mrb[0].mxu0
        %v3585 = vadd.f32 0.0, %v3584
        %v3586 = vpop.f32.mrb[0].mxu0
        %v3587 = vpop.f32.mrb[0].mxu0
        %v3588 = vadd.f32 0.0, %v3587
        %v3589 = vpop.f32.mrb[0].mxu0
        %3590 = vmatprep.mubr.bf16.mxu0 %v3030
        %3591 = vmatmul.mubr.bf16.gmra.mrb[0].mxu0 %v3029
        %v3592 = vpop.f32.mrb[0].mxu0
        %v3593 = vadd.f32 0.0, %v3592
        %v3594 = vpop.f32.mrb[0].mxu0
        %v3595 = vpop.f32.mrb[0].mxu0
        %v3596 = vadd.f32 0.0, %v3595
        %v3597 = vpop.f32.mrb[0].mxu0
        %3598 = vmatprep.mubr.bf16.mxu0 %v3032
        %3599 = vmatmul.mubr.bf16.gmra.mrb[0].mxu0 %v3031
        %v3600 = vpop.f32.mrb[0].mxu0
        %v3601 = vadd.f32 0.0, %v3600
        %v3602 = vpop.f32.mrb[0].mxu0
        %v3603 = vpop.f32.mrb[0].mxu0
        %v3604 = vadd.f32 0.0, %v3603
        %v3605 = vpop.f32.mrb[0].mxu0
        %3606 = vmatprep.mubr.bf16.mxu0 %v3034
        %3607 = vmatmul.mubr.bf16.gmra.mrb[0].mxu0 %v3033
        %v3608 = vpop.f32.mrb[0].mxu0
        %v3609 = vadd.f32 0.0, %v3608
        %v3610 = vpop.f32.mrb[0].mxu0
        %v3611 = vpop.f32.mrb[0].mxu0
        %v3612 = vadd.f32 0.0, %v3611
        %v3613 = vpop.f32.mrb[0].mxu0
        %3614 = vmatprep.mubr.bf16.mxu0 %v3036
        %3615 = vmatmul.mubr.bf16.gmra.mrb[0].mxu0 %v3035
        %v3616 = vpop.f32.mrb[0].mxu0
        %v3617 = vadd.f32 0.0, %v3616
        %v3618 = vpop.f32.mrb[0].mxu0
        %v3619 = vpop.f32.mrb[0].mxu0
        %v3620 = vadd.f32 0.0, %v3619
        %v3621 = vpop.f32.mrb[0].mxu0
        %3622 = vmatprep.mubr.bf16.mxu0 %v3038
        %3623 = vmatmul.mubr.bf16.gmra.mrb[0].mxu0 %v3037
        %v3624 = vpop.f32.mrb[0].mxu0
        %v3625 = vadd.f32 0.0, %v3624
        %v3626 = vpop.f32.mrb[0].mxu0
        %v3627 = vpop.f32.mrb[0].mxu0
        %v3628 = vadd.f32 0.0, %v3627
        %v3629 = vpop.f32.mrb[0].mxu0
        %3630 = vmatprep.mubr.bf16.mxu0 %v3040
        %3631 = vmatmul.mubr.bf16.gmra.mrb[0].mxu0 %v3039
        %v3632 = vpop.f32.mrb[0].mxu0
        %v3633 = vadd.f32 0.0, %v3632
        %v3634 = vpop.f32.mrb[0].mxu0
        %v3635 = vpop.f32.mrb[0].mxu0
        %v3636 = vadd.f32 0.0, %v3635
        %v3637 = vpop.f32.mrb[0].mxu0
        %3638 = vmatprep.mubr.bf16.mxu0 %v3042
        %3639 = vmatmul.mubr.bf16.gmra.mrb[0].mxu0 %v3041
        %v3640 = vpop.f32.mrb[0].mxu0
        %v3641 = vadd.f32 0.0, %v3640
        %v3642 = vpop.f32.mrb[0].mxu0
        %v3643 = vpop.f32.mrb[0].mxu0
        %v3644 = vadd.f32 0.0, %v3643
        %v3645 = vpop.f32.mrb[0].mxu0
        %3646 = vmatprep.mubr.bf16.mxu0 %v3044
        %3647 = vmatmul.mubr.bf16.gmra.mrb[0].mxu0 %v3043
        %v3648 = vpop.f32.mrb[0].mxu0
        %v3649 = vadd.f32 0.0, %v3648
        %v3650 = vpop.f32.mrb[0].mxu0
        %v3651 = vpop.f32.mrb[0].mxu0
        %v3652 = vadd.f32 0.0, %v3651
        %v3653 = vpop.f32.mrb[0].mxu0
        %3654 = vdwg.mxu0
        %v3655 = vld [vmem:[%s10] sm:$0xff]
        %v3656 = vld [vmem:[%s10 + $0x8] sm:$0xf]
        %v3657 = vld [vmem:[%s10 + $0xc] sm:$0xff]
        %v3658 = vld [vmem:[%s10 + $0x14] sm:$0xf]
        %v3659 = vld [vmem:[%s10 + $0x18] sm:$0xff]
        %v3660 = vld [vmem:[%s10 + $0x20] sm:$0xf]
        %v3661 = vld [vmem:[%s10 + $0x24] sm:$0xff]
        %v3662 = vld [vmem:[%s10 + $0x2c] sm:$0xf]
        %v3663 = vld [vmem:[%s10 + $0x30] sm:$0xff]
        %v3664 = vld [vmem:[%s10 + $0x38] sm:$0xf]
        %v3665 = vld [vmem:[%s10 + $0x3c] sm:$0xff]
        %v3666 = vld [vmem:[%s10 + $0x44] sm:$0xf]
        %v3667 = vld [vmem:[%s10 + $0x48] sm:$0xff]
        %v3668 = vld [vmem:[%s10 + $0x50] sm:$0xf]
        %v3669 = vld [vmem:[%s10 + $0x54] sm:$0xff]
        %v3670 = vld [vmem:[%s10 + $0x5c] sm:$0xf]
        %v3671 = vld [vmem:[%s10 + $0x60] sm:$0xff]
        %v3672 = vld [vmem:[%s10 + $0x68] sm:$0xf]
        %v3673 = vld [vmem:[%s10 + $0x6c] sm:$0xff]
        %v3674 = vld [vmem:[%s10 + $0x74] sm:$0xf]
        %v3675 = vld [vmem:[%s10 + $0x78] sm:$0xff]
        %v3676 = vld [vmem:[%s10 + $0x80] sm:$0xf]
        %v3677 = vld [vmem:[%s10 + $0x84] sm:$0xff]
        %v3678 = vld [vmem:[%s10 + $0x8c] sm:$0xf]
        %v3679 = vld [vmem:[%s10 + $0x90] sm:$0xff]
        %v3680 = vld [vmem:[%s10 + $0x98] sm:$0xf]
        %v3681 = vld [vmem:[%s10 + $0x9c] sm:$0xff]
        %v3682 = vld [vmem:[%s10 + $0xa4] sm:$0xf]
        %v3683 = vld [vmem:[%s10 + $0xa8] sm:$0xff]
        %v3684 = vld [vmem:[%s10 + $0xb0] sm:$0xf]
        %v3685 = vld [vmem:[%s10 + $0xb4] sm:$0xff]
        %v3686 = vld [vmem:[%s10 + $0xbc] sm:$0xf]
        %v3687 = vld [vmem:[%s10 + $0xc0] sm:$0xff]
        %v3688 = vld [vmem:[%s10 + $0xc8] sm:$0xf]
        %v3689 = vld [vmem:[%s10 + $0xcc] sm:$0xff]
        %v3690 = vld [vmem:[%s10 + $0xd4] sm:$0xf]
        %v3691 = vld [vmem:[%s10 + $0xd8] sm:$0xff]
        %v3692 = vld [vmem:[%s10 + $0xe0] sm:$0xf]
        %v3693 = vld [vmem:[%s10 + $0xe4] sm:$0xff]
        %v3694 = vld [vmem:[%s10 + $0xec] sm:$0xf]
        %v3695 = vld [vmem:[%s10 + $0xf0] sm:$0xff]
        %v3696 = vld [vmem:[%s10 + $0xf8] sm:$0xf]
        %v3697 = vld [vmem:[%s10 + $0xfc] sm:$0xff]
        %v3698 = vld [vmem:[%s10 + $0x104] sm:$0xf]
        %v3699 = vld [vmem:[%s10 + $0x108] sm:$0xff]
        %v3700 = vld [vmem:[%s10 + $0x110] sm:$0xf]
        %v3701 = vld [vmem:[%s10 + $0x114] sm:$0xff]
        %v3702 = vld [vmem:[%s10 + $0x11c] sm:$0xf]
        %v3703 = vld [vmem:[%s10 + $0x120] sm:$0xff]
        %v3704 = vld [vmem:[%s10 + $0x128] sm:$0xf]
        %v3705 = vld [vmem:[%s10 + $0x12c] sm:$0xff]
        %v3706 = vld [vmem:[%s10 + $0x134] sm:$0xf]
        %v3707 = vld [vmem:[%s10 + $0x138] sm:$0xff]
        %v3708 = vld [vmem:[%s10 + $0x140] sm:$0xf]
        %v3709 = vld [vmem:[%s10 + $0x144] sm:$0xff]
        %v3710 = vld [vmem:[%s10 + $0x14c] sm:$0xf]
        %v3711 = vld [vmem:[%s10 + $0x150] sm:$0xff]
        %v3712 = vld [vmem:[%s10 + $0x158] sm:$0xf]
        %v3713 = vld [vmem:[%s10 + $0x15c] sm:$0xff]
        %v3714 = vld [vmem:[%s10 + $0x164] sm:$0xf]
        %v3715 = vld [vmem:[%s10 + $0x168] sm:$0xff]
        %v3716 = vld [vmem:[%s10 + $0x170] sm:$0xf]
        %v3717 = vld [vmem:[%s10 + $0x174] sm:$0xff]
        %v3718 = vld [vmem:[%s10 + $0x17c] sm:$0xf]
        %v3783 = vunpack.c.l.b16 %v3655
        %v3784 = vunpack.c.h.b16 %v3655
        %v3785 = vunpack.c.l.b16 %v3656
        %v3786 = vunpack.c.l.b16 %v3657
        %v3787 = vunpack.c.h.b16 %v3657
        %v3788 = vunpack.c.l.b16 %v3658
        %v3789 = vunpack.c.l.b16 %v3659
        %v3790 = vunpack.c.h.b16 %v3659
        %v3791 = vunpack.c.l.b16 %v3660
        %v3792 = vunpack.c.l.b16 %v3661
        %v3793 = vunpack.c.h.b16 %v3661
        %v3794 = vunpack.c.l.b16 %v3662
        %v3795 = vunpack.c.l.b16 %v3663
        %v3796 = vunpack.c.h.b16 %v3663
        %v3797 = vunpack.c.l.b16 %v3664
        %v3798 = vunpack.c.l.b16 %v3665
        %v3799 = vunpack.c.h.b16 %v3665
        %v3800 = vunpack.c.l.b16 %v3666
        %v3801 = vunpack.c.l.b16 %v3667
        %v3802 = vunpack.c.h.b16 %v3667
        %v3803 = vunpack.c.l.b16 %v3668
        %v3804 = vunpack.c.l.b16 %v3669
        %v3805 = vunpack.c.h.b16 %v3669
        %v3806 = vunpack.c.l.b16 %v3670
        %v3807 = vunpack.c.l.b16 %v3671
        %v3808 = vunpack.c.h.b16 %v3671
        %v3809 = vunpack.c.l.b16 %v3672
        %v3810 = vunpack.c.l.b16 %v3673
        %v3811 = vunpack.c.h.b16 %v3673
        %v3812 = vunpack.c.l.b16 %v3674
        %v3813 = vunpack.c.l.b16 %v3675
        %v3814 = vunpack.c.h.b16 %v3675
        %v3815 = vunpack.c.l.b16 %v3676
        %v3816 = vunpack.c.l.b16 %v3677
        %v3817 = vunpack.c.h.b16 %v3677
        %v3818 = vunpack.c.l.b16 %v3678
        %v3819 = vunpack.c.l.b16 %v3679
        %v3820 = vunpack.c.h.b16 %v3679
        %v3821 = vunpack.c.l.b16 %v3680
        %v3822 = vunpack.c.l.b16 %v3681
        %v3823 = vunpack.c.h.b16 %v3681
        %v3824 = vunpack.c.l.b16 %v3682
        %v3825 = vunpack.c.l.b16 %v3683
        %v3826 = vunpack.c.h.b16 %v3683
        %v3827 = vunpack.c.l.b16 %v3684
        %v3828 = vunpack.c.l.b16 %v3685
        %v3829 = vunpack.c.h.b16 %v3685
        %v3830 = vunpack.c.l.b16 %v3686
        %v3831 = vunpack.c.l.b16 %v3687
        %v3832 = vunpack.c.h.b16 %v3687
        %v3833 = vunpack.c.l.b16 %v3688
        %v3834 = vunpack.c.l.b16 %v3689
        %v3835 = vunpack.c.h.b16 %v3689
        %v3836 = vunpack.c.l.b16 %v3690
        %v3837 = vunpack.c.l.b16 %v3691
        %v3838 = vunpack.c.h.b16 %v3691
        %v3839 = vunpack.c.l.b16 %v3692
        %v3840 = vunpack.c.l.b16 %v3693
        %v3841 = vunpack.c.h.b16 %v3693
        %v3842 = vunpack.c.l.b16 %v3694
        %v3843 = vunpack.c.l.b16 %v3695
        %v3844 = vunpack.c.h.b16 %v3695
        %v3845 = vunpack.c.l.b16 %v3696
        %v3846 = vunpack.c.l.b16 %v3697
        %v3847 = vunpack.c.h.b16 %v3697
        %v3848 = vunpack.c.l.b16 %v3698
        %v3849 = vunpack.c.l.b16 %v3699
        %v3850 = vunpack.c.h.b16 %v3699
        %v3851 = vunpack.c.l.b16 %v3700
        %v3852 = vunpack.c.l.b16 %v3701
        %v3853 = vunpack.c.h.b16 %v3701
        %v3854 = vunpack.c.l.b16 %v3702
        %v3855 = vunpack.c.l.b16 %v3703
        %v3856 = vunpack.c.h.b16 %v3703
        %v3857 = vunpack.c.l.b16 %v3704
        %v3858 = vunpack.c.l.b16 %v3705
        %v3859 = vunpack.c.h.b16 %v3705
        %v3860 = vunpack.c.l.b16 %v3706
        %v3861 = vunpack.c.l.b16 %v3707
        %v3862 = vunpack.c.h.b16 %v3707
        %v3863 = vunpack.c.l.b16 %v3708
        %v3864 = vunpack.c.l.b16 %v3709
        %v3865 = vunpack.c.h.b16 %v3709
        %v3866 = vunpack.c.l.b16 %v3710
        %v3867 = vunpack.c.l.b16 %v3711
        %v3868 = vunpack.c.h.b16 %v3711
        %v3869 = vunpack.c.l.b16 %v3712
        %v3870 = vunpack.c.l.b16 %v3713
        %v3871 = vunpack.c.h.b16 %v3713
        %v3872 = vunpack.c.l.b16 %v3714
        %v3873 = vunpack.c.l.b16 %v3715
        %v3874 = vunpack.c.h.b16 %v3715
        %v3875 = vunpack.c.l.b16 %v3716
        %v3876 = vunpack.c.l.b16 %v3717
        %v3877 = vunpack.c.h.b16 %v3717
        %v3878 = vunpack.c.l.b16 %v3718
        %v3879 = vpack.c.b16 %v3786, %v3783
        %v3880 = vpack.c.b16 %v3787, %v3784
        %v3881 = vpack.c.b16 %v3788, %v3785
        %v3882 = vpack.c.b16 %v3792, %v3789
        %v3883 = vpack.c.b16 %v3793, %v3790
        %v3884 = vpack.c.b16 %v3794, %v3791
        %v3885 = vpack.c.b16 %v3798, %v3795
        %v3886 = vpack.c.b16 %v3799, %v3796
        %v3887 = vpack.c.b16 %v3800, %v3797
        %v3888 = vpack.c.b16 %v3804, %v3801
        %v3889 = vpack.c.b16 %v3805, %v3802
        %v3890 = vpack.c.b16 %v3806, %v3803
        %v3891 = vpack.c.b16 %v3810, %v3807
        %v3892 = vpack.c.b16 %v3811, %v3808
        %v3893 = vpack.c.b16 %v3812, %v3809
        %v3894 = vpack.c.b16 %v3816, %v3813
        %v3895 = vpack.c.b16 %v3817, %v3814
        %v3896 = vpack.c.b16 %v3818, %v3815
        %v3897 = vpack.c.b16 %v3822, %v3819
        %v3898 = vpack.c.b16 %v3823, %v3820
        %v3899 = vpack.c.b16 %v3824, %v3821
        %v3900 = vpack.c.b16 %v3828, %v3825
        %v3901 = vpack.c.b16 %v3829, %v3826
        %v3902 = vpack.c.b16 %v3830, %v3827
        %v3903 = vpack.c.b16 %v3834, %v3831
        %v3904 = vpack.c.b16 %v3835, %v3832
        %v3905 = vpack.c.b16 %v3836, %v3833
        %v3906 = vpack.c.b16 %v3840, %v3837
        %v3907 = vpack.c.b16 %v3841, %v3838
        %v3908 = vpack.c.b16 %v3842, %v3839
        %v3909 = vpack.c.b16 %v3846, %v3843
        %v3910 = vpack.c.b16 %v3847, %v3844
        %v3911 = vpack.c.b16 %v3848, %v3845
        %v3912 = vpack.c.b16 %v3852, %v3849
        %v3913 = vpack.c.b16 %v3853, %v3850
        %v3914 = vpack.c.b16 %v3854, %v3851
        %v3915 = vpack.c.b16 %v3858, %v3855
        %v3916 = vpack.c.b16 %v3859, %v3856
        %v3917 = vpack.c.b16 %v3860, %v3857
        %v3918 = vpack.c.b16 %v3864, %v3861
        %v3919 = vpack.c.b16 %v3865, %v3862
        %v3920 = vpack.c.b16 %v3866, %v3863
        %v3921 = vpack.c.b16 %v3870, %v3867
        %v3922 = vpack.c.b16 %v3871, %v3868
        %v3923 = vpack.c.b16 %v3872, %v3869
        %v3924 = vpack.c.b16 %v3876, %v3873
        %v3925 = vpack.c.b16 %v3877, %v3874
        %v3926 = vpack.c.b16 %v3878, %v3875
        %3975 = vmatprep.subr.bf16.mxu0 %v3880
        %3976 = vmatpush1.bf16.msra.mxu0 %v3879
        %3977 = vmatprep.subr.bf16.mxu0 %v3883
        %3978 = vmatpush1.bf16.msra.mxu0 %v3882
        %3979 = vmatprep.subr.bf16.mxu0 %v3886
        %3980 = vmatpush1.bf16.msra.mxu0 %v3885
        %3981 = vmatprep.subr.bf16.mxu0 %v3889
        %3982 = vmatpush1.bf16.msra.mxu0 %v3888
        %3983 = vmatprep.subr.bf16.mxu0 %v3892
        %3984 = vmatpush1.bf16.msra.mxu0 %v3891
        %3985 = vmatprep.subr.bf16.mxu0 %v3895
        %3986 = vmatpush1.bf16.msra.mxu0 %v3894
        %3987 = vmatprep.subr.bf16.mxu0 %v3898
        %3988 = vmatpush1.bf16.msra.mxu0 %v3897
        %3989 = vmatprep.subr.bf16.mxu0 %v3901
        %3990 = vmatpush1.bf16.msra.mxu0 %v3900
        %3991 = vmatprep.subr.bf16.mxu0 %v3904
        %3992 = vmatpush1.bf16.msra.mxu0 %v3903
        %3993 = vmatprep.subr.bf16.mxu0 %v3907
        %3994 = vmatpush1.bf16.msra.mxu0 %v3906
        %3995 = vmatprep.subr.bf16.mxu0 %v3910
        %3996 = vmatpush1.bf16.msra.mxu0 %v3909
        %3997 = vmatprep.subr.bf16.mxu0 %v3913
        %3998 = vmatpush1.bf16.msra.mxu0 %v3912
        %3999 = vmatprep.subr.bf16.mxu0 %v3916
        %4000 = vmatpush1.bf16.msra.mxu0 %v3915
        %4001 = vmatprep.subr.bf16.mxu0 %v3919
        %4002 = vmatpush1.bf16.msra.mxu0 %v3918
        %4003 = vmatprep.subr.bf16.mxu0 %v3922
        %4004 = vmatpush1.bf16.msra.mxu0 %v3921
        %4005 = vmatprep.subr.bf16.mxu0 %v3925
        %4006 = vmatpush1.bf16.msra.mxu0 %v3924
        %4007 = vmatprep.mubr.bf16.mxu0 %v3014
        %4008 = vmatmul.mubr.bf16.gmra.mrb[0].mxu0 %v3013
        %v4009 = vpop.f32.mrb[0].mxu0
        %v4010 = vadd.f32 0.0, %v4009
        %v4011 = vpop.f32.mrb[0].mxu0
        %v4012 = vadd.f32 0.0, %v4011
        %v4013 = vpop.f32.mrb[0].mxu0
        %v4014 = vadd.f32 0.0, %v4013
        %v4015 = vpop.f32.mrb[0].mxu0
        %v4016 = vadd.f32 0.0, %v4015
        %4017 = vmatprep.mubr.bf16.mxu0 %v3016
        %4018 = vmatmul.mubr.bf16.gmra.mrb[0].mxu0 %v3015
        %v4019 = vpop.f32.mrb[0].mxu0
        %v4020 = vadd.f32 0.0, %v4019
        %v4021 = vpop.f32.mrb[0].mxu0
        %v4022 = vadd.f32 0.0, %v4021
        %v4023 = vpop.f32.mrb[0].mxu0
        %v4024 = vadd.f32 0.0, %v4023
        %v4025 = vpop.f32.mrb[0].mxu0
        %v4026 = vadd.f32 0.0, %v4025
        %4027 = vmatprep.mubr.bf16.mxu0 %v3018
        %4028 = vmatmul.mubr.bf16.gmra.mrb[0].mxu0 %v3017
        %v4029 = vpop.f32.mrb[0].mxu0
        %v4030 = vadd.f32 0.0, %v4029
        %v4031 = vpop.f32.mrb[0].mxu0
        %v4032 = vadd.f32 0.0, %v4031
        %v4033 = vpop.f32.mrb[0].mxu0
        %v4034 = vadd.f32 0.0, %v4033
        %v4035 = vpop.f32.mrb[0].mxu0
        %v4036 = vadd.f32 0.0, %v4035
        %4037 = vmatprep.mubr.bf16.mxu0 %v3020
        %4038 = vmatmul.mubr.bf16.gmra.mrb[0].mxu0 %v3019
        %v4039 = vpop.f32.mrb[0].mxu0
        %v4040 = vadd.f32 0.0, %v4039
        %v4041 = vpop.f32.mrb[0].mxu0
        %v4042 = vadd.f32 0.0, %v4041
        %v4043 = vpop.f32.mrb[0].mxu0
        %v4044 = vadd.f32 0.0, %v4043
        %v4045 = vpop.f32.mrb[0].mxu0
        %v4046 = vadd.f32 0.0, %v4045
        %4047 = vmatprep.mubr.bf16.mxu0 %v3022
        %4048 = vmatmul.mubr.bf16.gmra.mrb[0].mxu0 %v3021
        %v4049 = vpop.f32.mrb[0].mxu0
        %v4050 = vadd.f32 0.0, %v4049
        %v4051 = vpop.f32.mrb[0].mxu0
        %v4052 = vadd.f32 0.0, %v4051
        %v4053 = vpop.f32.mrb[0].mxu0
        %v4054 = vadd.f32 0.0, %v4053
        %v4055 = vpop.f32.mrb[0].mxu0
        %v4056 = vadd.f32 0.0, %v4055
        %4057 = vmatprep.mubr.bf16.mxu0 %v3024
        %4058 = vmatmul.mubr.bf16.gmra.mrb[0].mxu0 %v3023
        %v4059 = vpop.f32.mrb[0].mxu0
        %v4060 = vadd.f32 0.0, %v4059
        %v4061 = vpop.f32.mrb[0].mxu0
        %v4062 = vadd.f32 0.0, %v4061
        %v4063 = vpop.f32.mrb[0].mxu0
        %v4064 = vadd.f32 0.0, %v4063
        %v4065 = vpop.f32.mrb[0].mxu0
        %v4066 = vadd.f32 0.0, %v4065
        %4067 = vmatprep.mubr.bf16.mxu0 %v3026
        %4068 = vmatmul.mubr.bf16.gmra.mrb[0].mxu0 %v3025
        %v4069 = vpop.f32.mrb[0].mxu0
        %v4070 = vadd.f32 0.0, %v4069
        %v4071 = vpop.f32.mrb[0].mxu0
        %v4072 = vadd.f32 0.0, %v4071
        %v4073 = vpop.f32.mrb[0].mxu0
        %v4074 = vadd.f32 0.0, %v4073
        %v4075 = vpop.f32.mrb[0].mxu0
        %v4076 = vadd.f32 0.0, %v4075
        %4077 = vmatprep.mubr.bf16.mxu0 %v3028
        %4078 = vmatmul.mubr.bf16.gmra.mrb[0].mxu0 %v3027
        %v4079 = vpop.f32.mrb[0].mxu0
        %v4080 = vadd.f32 0.0, %v4079
        %v4081 = vpop.f32.mrb[0].mxu0
        %v4082 = vadd.f32 0.0, %v4081
        %v4083 = vpop.f32.mrb[0].mxu0
        %v4084 = vadd.f32 0.0, %v4083
        %v4085 = vpop.f32.mrb[0].mxu0
        %v4086 = vadd.f32 0.0, %v4085
        %4087 = vmatprep.mubr.bf16.mxu0 %v3030
        %4088 = vmatmul.mubr.bf16.gmra.mrb[0].mxu0 %v3029
        %v4089 = vpop.f32.mrb[0].mxu0
        %v4090 = vadd.f32 0.0, %v4089
        %v4091 = vpop.f32.mrb[0].mxu0
        %v4092 = vadd.f32 0.0, %v4091
        %v4093 = vpop.f32.mrb[0].mxu0
        %v4094 = vadd.f32 0.0, %v4093
        %v4095 = vpop.f32.mrb[0].mxu0
        %v4096 = vadd.f32 0.0, %v4095
        %4097 = vmatprep.mubr.bf16.mxu0 %v3032
        %4098 = vmatmul.mubr.bf16.gmra.mrb[0].mxu0 %v3031
        %v4099 = vpop.f32.mrb[0].mxu0
        %v4100 = vadd.f32 0.0, %v4099
        %v4101 = vpop.f32.mrb[0].mxu0
        %v4102 = vadd.f32 0.0, %v4101
        %v4103 = vpop.f32.mrb[0].mxu0
        %v4104 = vadd.f32 0.0, %v4103
        %v4105 = vpop.f32.mrb[0].mxu0
        %v4106 = vadd.f32 0.0, %v4105
        %4107 = vmatprep.mubr.bf16.mxu0 %v3034
        %4108 = vmatmul.mubr.bf16.gmra.mrb[0].mxu0 %v3033
        %v4109 = vpop.f32.mrb[0].mxu0
        %v4110 = vadd.f32 0.0, %v4109
        %v4111 = vpop.f32.mrb[0].mxu0
        %v4112 = vadd.f32 0.0, %v4111
        %v4113 = vpop.f32.mrb[0].mxu0
        %v4114 = vadd.f32 0.0, %v4113
        %v4115 = vpop.f32.mrb[0].mxu0
        %v4116 = vadd.f32 0.0, %v4115
        %4117 = vmatprep.mubr.bf16.mxu0 %v3036
        %4118 = vmatmul.mubr.bf16.gmra.mrb[0].mxu0 %v3035
        %v4119 = vpop.f32.mrb[0].mxu0
        %v4120 = vadd.f32 0.0, %v4119
        %v4121 = vpop.f32.mrb[0].mxu0
        %v4122 = vadd.f32 0.0, %v4121
        %v4123 = vpop.f32.mrb[0].mxu0
        %v4124 = vadd.f32 0.0, %v4123
        %v4125 = vpop.f32.mrb[0].mxu0
        %v4126 = vadd.f32 0.0, %v4125
        %4127 = vmatprep.mubr.bf16.mxu0 %v3038
        %4128 = vmatmul.mubr.bf16.gmra.mrb[0].mxu0 %v3037
        %v4129 = vpop.f32.mrb[0].mxu0
        %v4130 = vadd.f32 0.0, %v4129
        %v4131 = vpop.f32.mrb[0].mxu0
        %v4132 = vadd.f32 0.0, %v4131
        %v4133 = vpop.f32.mrb[0].mxu0
        %v4134 = vadd.f32 0.0, %v4133
        %v4135 = vpop.f32.mrb[0].mxu0
        %v4136 = vadd.f32 0.0, %v4135
        %4137 = vmatprep.mubr.bf16.mxu0 %v3040
        %4138 = vmatmul.mubr.bf16.gmra.mrb[0].mxu0 %v3039
        %v4139 = vpop.f32.mrb[0].mxu0
        %v4140 = vadd.f32 0.0, %v4139
        %v4141 = vpop.f32.mrb[0].mxu0
        %v4142 = vadd.f32 0.0, %v4141
        %v4143 = vpop.f32.mrb[0].mxu0
        %v4144 = vadd.f32 0.0, %v4143
        %v4145 = vpop.f32.mrb[0].mxu0
        %v4146 = vadd.f32 0.0, %v4145
        %4147 = vmatprep.mubr.bf16.mxu0 %v3042
        %4148 = vmatmul.mubr.bf16.gmra.mrb[0].mxu0 %v3041
        %v4149 = vpop.f32.mrb[0].mxu0
        %v4150 = vadd.f32 0.0, %v4149
        %v4151 = vpop.f32.mrb[0].mxu0
        %v4152 = vadd.f32 0.0, %v4151
        %v4153 = vpop.f32.mrb[0].mxu0
        %v4154 = vadd.f32 0.0, %v4153
        %v4155 = vpop.f32.mrb[0].mxu0
        %v4156 = vadd.f32 0.0, %v4155
        %4157 = vmatprep.mubr.bf16.mxu0 %v3044
        %4158 = vmatmul.mubr.bf16.gmra.mrb[0].mxu0 %v3043
        %v4159 = vpop.f32.mrb[0].mxu0
        %v4160 = vadd.f32 0.0, %v4159
        %v4161 = vpop.f32.mrb[0].mxu0
        %v4162 = vadd.f32 0.0, %v4161
        %v4163 = vpop.f32.mrb[0].mxu0
        %v4164 = vadd.f32 0.0, %v4163
        %v4165 = vpop.f32.mrb[0].mxu0
        %v4166 = vadd.f32 0.0, %v4165
        %4167 = vdwg.mxu0
        %4168 = vmatprep.subr.bf16.mxu0 0
        %4169 = vmatpush1.bf16.msra.mxu0 %v3881
        %4170 = vmatprep.subr.bf16.mxu0 0
        %4171 = vmatpush1.bf16.msra.mxu0 %v3884
        %4172 = vmatprep.subr.bf16.mxu0 0
        %4173 = vmatpush1.bf16.msra.mxu0 %v3887
        %4174 = vmatprep.subr.bf16.mxu0 0
        %4175 = vmatpush1.bf16.msra.mxu0 %v3890
        %4176 = vmatprep.subr.bf16.mxu0 0
        %4177 = vmatpush1.bf16.msra.mxu0 %v3893
        %4178 = vmatprep.subr.bf16.mxu0 0
        %4179 = vmatpush1.bf16.msra.mxu0 %v3896
        %4180 = vmatprep.subr.bf16.mxu0 0
        %4181 = vmatpush1.bf16.msra.mxu0 %v3899
        %4182 = vmatprep.subr.bf16.mxu0 0
        %4183 = vmatpush1.bf16.msra.mxu0 %v3902
        %4184 = vmatprep.subr.bf16.mxu0 0
        %4185 = vmatpush1.bf16.msra.mxu0 %v3905
        %4186 = vmatprep.subr.bf16.mxu0 0
        %4187 = vmatpush1.bf16.msra.mxu0 %v3908
        %4188 = vmatprep.subr.bf16.mxu0 0
        %4189 = vmatpush1.bf16.msra.mxu0 %v3911
        %4190 = vmatprep.subr.bf16.mxu0 0
        %4191 = vmatpush1.bf16.msra.mxu0 %v3914
        %4192 = vmatprep.subr.bf16.mxu0 0
        %4193 = vmatpush1.bf16.msra.mxu0 %v3917
        %4194 = vmatprep.subr.bf16.mxu0 0
        %4195 = vmatpush1.bf16.msra.mxu0 %v3920
        %4196 = vmatprep.subr.bf16.mxu0 0
        %4197 = vmatpush1.bf16.msra.mxu0 %v3923
        %4198 = vmatprep.subr.bf16.mxu0 0
        %4199 = vmatpush1.bf16.msra.mxu0 %v3926
        %4200 = vmatprep.mubr.bf16.mxu0 %v3014
        %4201 = vmatmul.mubr.bf16.gmra.mrb[0].mxu0 %v3013
        %v4202 = vpop.f32.mrb[0].mxu0
        %v4203 = vadd.f32 0.0, %v4202
        %v4204 = vpop.f32.mrb[0].mxu0
        %v4205 = vpop.f32.mrb[0].mxu0
        %v4206 = vadd.f32 0.0, %v4205
        %v4207 = vpop.f32.mrb[0].mxu0
        %4208 = vmatprep.mubr.bf16.mxu0 %v3016
        %4209 = vmatmul.mubr.bf16.gmra.mrb[0].mxu0 %v3015
        %v4210 = vpop.f32.mrb[0].mxu0
        %v4211 = vadd.f32 0.0, %v4210
        %v4212 = vpop.f32.mrb[0].mxu0
        %v4213 = vpop.f32.mrb[0].mxu0
        %v4214 = vadd.f32 0.0, %v4213
        %v4215 = vpop.f32.mrb[0].mxu0
        %4216 = vmatprep.mubr.bf16.mxu0 %v3018
        %4217 = vmatmul.mubr.bf16.gmra.mrb[0].mxu0 %v3017
        %v4218 = vpop.f32.mrb[0].mxu0
        %v4219 = vadd.f32 0.0, %v4218
        %v4220 = vpop.f32.mrb[0].mxu0
        %v4221 = vpop.f32.mrb[0].mxu0
        %v4222 = vadd.f32 0.0, %v4221
        %v4223 = vpop.f32.mrb[0].mxu0
        %4224 = vmatprep.mubr.bf16.mxu0 %v3020
        %4225 = vmatmul.mubr.bf16.gmra.mrb[0].mxu0 %v3019
        %v4226 = vpop.f32.mrb[0].mxu0
        %v4227 = vadd.f32 0.0, %v4226
        %v4228 = vpop.f32.mrb[0].mxu0
        %v4229 = vpop.f32.mrb[0].mxu0
        %v4230 = vadd.f32 0.0, %v4229
        %v4231 = vpop.f32.mrb[0].mxu0
        %4232 = vmatprep.mubr.bf16.mxu0 %v3022
        %4233 = vmatmul.mubr.bf16.gmra.mrb[0].mxu0 %v3021
        %v4234 = vpop.f32.mrb[0].mxu0
        %v4235 = vadd.f32 0.0, %v4234
        %v4236 = vpop.f32.mrb[0].mxu0
        %v4237 = vpop.f32.mrb[0].mxu0
        %v4238 = vadd.f32 0.0, %v4237
        %v4239 = vpop.f32.mrb[0].mxu0
        %4240 = vmatprep.mubr.bf16.mxu0 %v3024
        %4241 = vmatmul.mubr.bf16.gmra.mrb[0].mxu0 %v3023
        %v4242 = vpop.f32.mrb[0].mxu0
        %v4243 = vadd.f32 0.0, %v4242
        %v4244 = vpop.f32.mrb[0].mxu0
        %v4245 = vpop.f32.mrb[0].mxu0
        %v4246 = vadd.f32 0.0, %v4245
        %v4247 = vpop.f32.mrb[0].mxu0
        %4248 = vmatprep.mubr.bf16.mxu0 %v3026
        %4249 = vmatmul.mubr.bf16.gmra.mrb[0].mxu0 %v3025
        %v4250 = vpop.f32.mrb[0].mxu0
        %v4251 = vadd.f32 0.0, %v4250
        %v4252 = vpop.f32.mrb[0].mxu0
        %v4253 = vpop.f32.mrb[0].mxu0
        %v4254 = vadd.f32 0.0, %v4253
        %v4255 = vpop.f32.mrb[0].mxu0
        %4256 = vmatprep.mubr.bf16.mxu0 %v3028
        %4257 = vmatmul.mubr.bf16.gmra.mrb[0].mxu0 %v3027
        %v4258 = vpop.f32.mrb[0].mxu0
        %v4259 = vadd.f32 0.0, %v4258
        %v4260 = vpop.f32.mrb[0].mxu0
        %v4261 = vpop.f32.mrb[0].mxu0
        %v4262 = vadd.f32 0.0, %v4261
        %v4263 = vpop.f32.mrb[0].mxu0
        %4264 = vmatprep.mubr.bf16.mxu0 %v3030
        %4265 = vmatmul.mubr.bf16.gmra.mrb[0].mxu0 %v3029
        %v4266 = vpop.f32.mrb[0].mxu0
        %v4267 = vadd.f32 0.0, %v4266
        %v4268 = vpop.f32.mrb[0].mxu0
        %v4269 = vpop.f32.mrb[0].mxu0
        %v4270 = vadd.f32 0.0, %v4269
        %v4271 = vpop.f32.mrb[0].mxu0
        %4272 = vmatprep.mubr.bf16.mxu0 %v3032
        %4273 = vmatmul.mubr.bf16.gmra.mrb[0].mxu0 %v3031
        %v4274 = vpop.f32.mrb[0].mxu0
        %v4275 = vadd.f32 0.0, %v4274
        %v4276 = vpop.f32.mrb[0].mxu0
        %v4277 = vpop.f32.mrb[0].mxu0
        %v4278 = vadd.f32 0.0, %v4277
        %v4279 = vpop.f32.mrb[0].mxu0
        %4280 = vmatprep.mubr.bf16.mxu0 %v3034
        %4281 = vmatmul.mubr.bf16.gmra.mrb[0].mxu0 %v3033
        %v4282 = vpop.f32.mrb[0].mxu0
        %v4283 = vadd.f32 0.0, %v4282
        %v4284 = vpop.f32.mrb[0].mxu0
        %v4285 = vpop.f32.mrb[0].mxu0
        %v4286 = vadd.f32 0.0, %v4285
        %v4287 = vpop.f32.mrb[0].mxu0
        %4288 = vmatprep.mubr.bf16.mxu0 %v3036
        %4289 = vmatmul.mubr.bf16.gmra.mrb[0].mxu0 %v3035
        %v4290 = vpop.f32.mrb[0].mxu0
        %v4291 = vadd.f32 0.0, %v4290
        %v4292 = vpop.f32.mrb[0].mxu0
        %v4293 = vpop.f32.mrb[0].mxu0
        %v4294 = vadd.f32 0.0, %v4293
        %v4295 = vpop.f32.mrb[0].mxu0
        %4296 = vmatprep.mubr.bf16.mxu0 %v3038
        %4297 = vmatmul.mubr.bf16.gmra.mrb[0].mxu0 %v3037
        %v4298 = vpop.f32.mrb[0].mxu0
        %v4299 = vadd.f32 0.0, %v4298
        %v4300 = vpop.f32.mrb[0].mxu0
        %v4301 = vpop.f32.mrb[0].mxu0
        %v4302 = vadd.f32 0.0, %v4301
        %v4303 = vpop.f32.mrb[0].mxu0
        %4304 = vmatprep.mubr.bf16.mxu0 %v3040
        %4305 = vmatmul.mubr.bf16.gmra.mrb[0].mxu0 %v3039
        %v4306 = vpop.f32.mrb[0].mxu0
        %v4307 = vadd.f32 0.0, %v4306
        %v4308 = vpop.f32.mrb[0].mxu0
        %v4309 = vpop.f32.mrb[0].mxu0
        %v4310 = vadd.f32 0.0, %v4309
        %v4311 = vpop.f32.mrb[0].mxu0
        %4312 = vmatprep.mubr.bf16.mxu0 %v3042
        %4313 = vmatmul.mubr.bf16.gmra.mrb[0].mxu0 %v3041
        %v4314 = vpop.f32.mrb[0].mxu0
        %v4315 = vadd.f32 0.0, %v4314
        %v4316 = vpop.f32.mrb[0].mxu0
        %v4317 = vpop.f32.mrb[0].mxu0
        %v4318 = vadd.f32 0.0, %v4317
        %v4319 = vpop.f32.mrb[0].mxu0
        %4320 = vmatprep.mubr.bf16.mxu0 %v3044
        %4321 = vmatmul.mubr.bf16.gmra.mrb[0].mxu0 %v3043
        %v4322 = vpop.f32.mrb[0].mxu0
        %v4323 = vadd.f32 0.0, %v4322
        %v4324 = vpop.f32.mrb[0].mxu0
        %v4325 = vpop.f32.mrb[0].mxu0
        %v4326 = vadd.f32 0.0, %v4325
        %v4327 = vpop.f32.mrb[0].mxu0
        %4328 = vdwg.mxu0
        %v4329 = vmul.f32 %v3336, %v4010
        %v4330 = vmul.f32 %v3338, %v4012
        %v4331 = vmul.f32 %v3529, %v4203
        %v4332 = vmul.f32 %v3340, %v4014
        %v4333 = vmul.f32 %v3342, %v4016
        %v4334 = vmul.f32 %v3532, %v4206
        %v4335 = vmul.f32 %v3346, %v4020
        %v4336 = vmul.f32 %v3348, %v4022
        %v4337 = vmul.f32 %v3537, %v4211
        %v4338 = vmul.f32 %v3350, %v4024
        %v4339 = vmul.f32 %v3352, %v4026
        %v4340 = vmul.f32 %v3540, %v4214
        %v4341 = vmul.f32 %v3356, %v4030
        %v4342 = vmul.f32 %v3358, %v4032
        %v4343 = vmul.f32 %v3545, %v4219
        %v4344 = vmul.f32 %v3360, %v4034
        %v4345 = vmul.f32 %v3362, %v4036
        %v4346 = vmul.f32 %v3548, %v4222
        %v4347 = vmul.f32 %v3366, %v4040
        %v4348 = vmul.f32 %v3368, %v4042
        %v4349 = vmul.f32 %v3553, %v4227
        %v4350 = vmul.f32 %v3370, %v4044
        %v4351 = vmul.f32 %v3372, %v4046
        %v4352 = vmul.f32 %v3556, %v4230
        %v4353 = vmul.f32 %v3376, %v4050
        %v4354 = vmul.f32 %v3378, %v4052
        %v4355 = vmul.f32 %v3561, %v4235
        %v4356 = vmul.f32 %v3380, %v4054
        %v4357 = vmul.f32 %v3382, %v4056
        %v4358 = vmul.f32 %v3564, %v4238
        %v4359 = vmul.f32 %v3386, %v4060
        %v4360 = vmul.f32 %v3388, %v4062
        %v4361 = vmul.f32 %v3569, %v4243
        %v4362 = vmul.f32 %v3390, %v4064
        %v4363 = vmul.f32 %v3392, %v4066
        %v4364 = vmul.f32 %v3572, %v4246
        %v4365 = vmul.f32 %v3396, %v4070
        %v4366 = vmul.f32 %v3398, %v4072
        %v4367 = vmul.f32 %v3577, %v4251
        %v4368 = vmul.f32 %v3400, %v4074
        %v4369 = vmul.f32 %v3402, %v4076
        %v4370 = vmul.f32 %v3580, %v4254
        %v4371 = vmul.f32 %v3406, %v4080
        %v4372 = vmul.f32 %v3408, %v4082
        %v4373 = vmul.f32 %v3585, %v4259
        %v4374 = vmul.f32 %v3410, %v4084
        %v4375 = vmul.f32 %v3412, %v4086
        %v4376 = vmul.f32 %v3588, %v4262
        %v4377 = vmul.f32 %v3416, %v4090
        %v4378 = vmul.f32 %v3418, %v4092
        %v4379 = vmul.f32 %v3593, %v4267
        %v4380 = vmul.f32 %v3420, %v4094
        %v4381 = vmul.f32 %v3422, %v4096
        %v4382 = vmul.f32 %v3596, %v4270
        %v4383 = vmul.f32 %v3426, %v4100
        %v4384 = vmul.f32 %v3428, %v4102
        %v4385 = vmul.f32 %v3601, %v4275
        %v4386 = vmul.f32 %v3430, %v4104
        %v4387 = vmul.f32 %v3432, %v4106
        %v4388 = vmul.f32 %v3604, %v4278
        %v4389 = vmul.f32 %v3436, %v4110
        %v4390 = vmul.f32 %v3438, %v4112
        %v4391 = vmul.f32 %v3609, %v4283
        %v4392 = vmul.f32 %v3440, %v4114
        %v4393 = vmul.f32 %v3442, %v4116
        %v4394 = vmul.f32 %v3612, %v4286
        %v4395 = vmul.f32 %v3446, %v4120
        %v4396 = vmul.f32 %v3448, %v4122
        %v4397 = vmul.f32 %v3617, %v4291
        %v4398 = vmul.f32 %v3450, %v4124
        %v4399 = vmul.f32 %v3452, %v4126
        %v4400 = vmul.f32 %v3620, %v4294
        %v4401 = vmul.f32 %v3456, %v4130
        %v4402 = vmul.f32 %v3458, %v4132
        %v4403 = vmul.f32 %v3625, %v4299
        %v4404 = vmul.f32 %v3460, %v4134
        %v4405 = vmul.f32 %v3462, %v4136
        %v4406 = vmul.f32 %v3628, %v4302
        %v4407 = vmul.f32 %v3466, %v4140
        %v4408 = vmul.f32 %v3468, %v4142
        %v4409 = vmul.f32 %v3633, %v4307
        %v4410 = vmul.f32 %v3470, %v4144
        %v4411 = vmul.f32 %v3472, %v4146
        %v4412 = vmul.f32 %v3636, %v4310
        %v4413 = vmul.f32 %v3476, %v4150
        %v4414 = vmul.f32 %v3478, %v4152
        %v4415 = vmul.f32 %v3641, %v4315
        %v4416 = vmul.f32 %v3480, %v4154
        %v4417 = vmul.f32 %v3482, %v4156
        %v4418 = vmul.f32 %v3644, %v4318
        %v4419 = vmul.f32 %v3486, %v4160
        %v4420 = vmul.f32 %v3488, %v4162
        %v4421 = vmul.f32 %v3649, %v4323
        %v4422 = vmul.f32 %v3490, %v4164
        %v4423 = vmul.f32 %v3492, %v4166
        %v4424 = vmul.f32 %v3652, %v4326
        %v4425 = vld [vmem:[%s11] sm:$0xf]
        %v4426 = vld [vmem:[%s11 + $0x4] sm:$0xf]
        %v4427 = vld [vmem:[%s11 + $0x8] sm:$0xf]
        %v4428 = vld [vmem:[%s11 + $0xc] sm:$0xf]
        %v4429 = vld [vmem:[%s11 + $0x10] sm:$0xf]
        %v4430 = vld [vmem:[%s11 + $0x14] sm:$0xf]
        %v4431 = vld [vmem:[%s11 + $0x18] sm:$0xf]
        %v4432 = vld [vmem:[%s11 + $0x1c] sm:$0xf]
        %v4433 = vld [vmem:[%s11 + $0x20] sm:$0xf]
        %v4434 = vld [vmem:[%s11 + $0x24] sm:$0xf]
        %v4435 = vld [vmem:[%s11 + $0x28] sm:$0xf]
        %v4436 = vld [vmem:[%s11 + $0x2c] sm:$0xf]
        %v4437 = vld [vmem:[%s11 + $0x30] sm:$0xf]
        %v4438 = vld [vmem:[%s11 + $0x34] sm:$0xf]
        %v4439 = vld [vmem:[%s11 + $0x38] sm:$0xf]
        %v4440 = vld [vmem:[%s11 + $0x3c] sm:$0xf]
        %v4441 = vld [vmem:[%s11 + $0x40] sm:$0xf]
        %v4442 = vld [vmem:[%s11 + $0x44] sm:$0xf]
        %v4443 = vld [vmem:[%s11 + $0x48] sm:$0xf]
        %v4444 = vld [vmem:[%s11 + $0x4c] sm:$0xf]
        %v4445 = vld [vmem:[%s11 + $0x50] sm:$0xf]
        %v4446 = vld [vmem:[%s11 + $0x54] sm:$0xf]
        %v4447 = vld [vmem:[%s11 + $0x58] sm:$0xf]
        %v4448 = vld [vmem:[%s11 + $0x5c] sm:$0xf]
        %v4449 = vld [vmem:[%s11 + $0x60] sm:$0xf]
        %v4450 = vld [vmem:[%s11 + $0x64] sm:$0xf]
        %v4451 = vld [vmem:[%s11 + $0x68] sm:$0xf]
        %v4452 = vld [vmem:[%s11 + $0x6c] sm:$0xf]
        %v4453 = vld [vmem:[%s11 + $0x70] sm:$0xf]
        %v4454 = vld [vmem:[%s11 + $0x74] sm:$0xf]
        %v4455 = vld [vmem:[%s11 + $0x78] sm:$0xf]
        %v4456 = vld [vmem:[%s11 + $0x7c] sm:$0xf]
        %v4457 = vld [vmem:[%s12] sm:$0xf]
        %v4458 = vld [vmem:[%s12 + $0x4] sm:$0xf]
        %v4459 = vld [vmem:[%s12 + $0x8] sm:$0xf]
        %v4460 = vld [vmem:[%s12 + $0xc] sm:$0xf]
        %v4461 = vld [vmem:[%s12 + $0x10] sm:$0xf]
        %v4462 = vld [vmem:[%s12 + $0x14] sm:$0xf]
        %v4463 = vld [vmem:[%s12 + $0x18] sm:$0xf]
        %v4464 = vld [vmem:[%s12 + $0x1c] sm:$0xf]
        %v4465 = vld [vmem:[%s12 + $0x20] sm:$0xf]
        %v4466 = vld [vmem:[%s12 + $0x24] sm:$0xf]
        %v4467 = vld [vmem:[%s12 + $0x28] sm:$0xf]
        %v4468 = vld [vmem:[%s12 + $0x2c] sm:$0xf]
        %v4469 = vld [vmem:[%s12 + $0x30] sm:$0xf]
        %v4470 = vld [vmem:[%s12 + $0x34] sm:$0xf]
        %v4471 = vld [vmem:[%s12 + $0x38] sm:$0xf]
        %v4472 = vld [vmem:[%s12 + $0x3c] sm:$0xf]
        %v4473 = vld [vmem:[%s12 + $0x40] sm:$0xf]
        %v4474 = vld [vmem:[%s12 + $0x44] sm:$0xf]
        %v4475 = vld [vmem:[%s12 + $0x48] sm:$0xf]
        %v4476 = vld [vmem:[%s12 + $0x4c] sm:$0xf]
        %v4477 = vld [vmem:[%s12 + $0x50] sm:$0xf]
        %v4478 = vld [vmem:[%s12 + $0x54] sm:$0xf]
        %v4479 = vld [vmem:[%s12 + $0x58] sm:$0xf]
        %v4480 = vld [vmem:[%s12 + $0x5c] sm:$0xf]
        %v4481 = vld [vmem:[%s12 + $0x60] sm:$0xf]
        %v4482 = vld [vmem:[%s12 + $0x64] sm:$0xf]
        %v4483 = vld [vmem:[%s12 + $0x68] sm:$0xf]
        %v4484 = vld [vmem:[%s12 + $0x6c] sm:$0xf]
        %v4485 = vld [vmem:[%s12 + $0x70] sm:$0xf]
        %v4486 = vld [vmem:[%s12 + $0x74] sm:$0xf]
        %v4487 = vld [vmem:[%s12 + $0x78] sm:$0xf]
        %v4488 = vld [vmem:[%s12 + $0x7c] sm:$0xf]
        %v4489 = vld [vmem:[%s12 + $0x80] sm:$0xf]
        %v4490 = vld [vmem:[%s12 + $0x84] sm:$0xf]
        %v4491 = vld [vmem:[%s12 + $0x88] sm:$0xf]
        %v4492 = vld [vmem:[%s12 + $0x8c] sm:$0xf]
        %v4493 = vld [vmem:[%s12 + $0x90] sm:$0xf]
        %v4494 = vld [vmem:[%s12 + $0x94] sm:$0xf]
        %v4495 = vld [vmem:[%s12 + $0x98] sm:$0xf]
        %v4496 = vld [vmem:[%s12 + $0x9c] sm:$0xf]
        %v4497 = vpack.c.bf16 %v4332, %v4329
        %v4498 = vpack.c.bf16 %v4333, %v4330
        %v4499 = vpack.c.bf16 %v4334, %v4331
        %v4500 = vpack.c.bf16 %v4338, %v4335
        %v4501 = vpack.c.bf16 %v4339, %v4336
        %v4502 = vpack.c.bf16 %v4340, %v4337
        %v4503 = vpack.c.bf16 %v4344, %v4341
        %v4504 = vpack.c.bf16 %v4345, %v4342
        %v4505 = vpack.c.bf16 %v4346, %v4343
        %v4506 = vpack.c.bf16 %v4350, %v4347
        %v4507 = vpack.c.bf16 %v4351, %v4348
        %v4508 = vpack.c.bf16 %v4352, %v4349
        %v4509 = vpack.c.bf16 %v4356, %v4353
        %v4510 = vpack.c.bf16 %v4357, %v4354
        %v4511 = vpack.c.bf16 %v4358, %v4355
        %v4512 = vpack.c.bf16 %v4362, %v4359
        %v4513 = vpack.c.bf16 %v4363, %v4360
        %v4514 = vpack.c.bf16 %v4364, %v4361
        %v4515 = vpack.c.bf16 %v4368, %v4365
        %v4516 = vpack.c.bf16 %v4369, %v4366
        %v4517 = vpack.c.bf16 %v4370, %v4367
        %v4518 = vpack.c.bf16 %v4374, %v4371
        %v4519 = vpack.c.bf16 %v4375, %v4372
        %v4520 = vpack.c.bf16 %v4376, %v4373
        %v4521 = vpack.c.bf16 %v4380, %v4377
        %v4522 = vpack.c.bf16 %v4381, %v4378
        %v4523 = vpack.c.bf16 %v4382, %v4379
        %v4524 = vpack.c.bf16 %v4386, %v4383
        %v4525 = vpack.c.bf16 %v4387, %v4384
        %v4526 = vpack.c.bf16 %v4388, %v4385
        %v4527 = vpack.c.bf16 %v4392, %v4389
        %v4528 = vpack.c.bf16 %v4393, %v4390
        %v4529 = vpack.c.bf16 %v4394, %v4391
        %v4530 = vpack.c.bf16 %v4398, %v4395
        %v4531 = vpack.c.bf16 %v4399, %v4396
        %v4532 = vpack.c.bf16 %v4400, %v4397
        %v4533 = vpack.c.bf16 %v4404, %v4401
        %v4534 = vpack.c.bf16 %v4405, %v4402
        %v4535 = vpack.c.bf16 %v4406, %v4403
        %v4536 = vpack.c.bf16 %v4410, %v4407
        %v4537 = vpack.c.bf16 %v4411, %v4408
        %v4538 = vpack.c.bf16 %v4412, %v4409
        %v4539 = vpack.c.bf16 %v4416, %v4413
        %v4540 = vpack.c.bf16 %v4417, %v4414
        %v4541 = vpack.c.bf16 %v4418, %v4415
        %v4542 = vpack.c.bf16 %v4422, %v4419
        %v4543 = vpack.c.bf16 %v4423, %v4420
        %v4544 = vpack.c.bf16 %v4424, %v4421
        %v4585 = vunpack.c.l.b16 %v4457
        %v4586 = vunpack.c.l.b16 %v4458
        %v4587 = vunpack.c.l.b16 %v4459
        %v4588 = vunpack.c.l.b16 %v4460
        %v4589 = vunpack.c.l.b16 %v4461
        %v4590 = vunpack.c.l.b16 %v4462
        %v4591 = vunpack.c.l.b16 %v4463
        %v4592 = vunpack.c.l.b16 %v4464
        %v4593 = vunpack.c.l.b16 %v4465
        %v4594 = vunpack.c.l.b16 %v4466
        %v4595 = vunpack.c.l.b16 %v4467
        %v4596 = vunpack.c.l.b16 %v4468
        %v4597 = vunpack.c.l.b16 %v4469
        %v4598 = vunpack.c.l.b16 %v4470
        %v4599 = vunpack.c.l.b16 %v4471
        %v4600 = vunpack.c.l.b16 %v4472
        %v4601 = vunpack.c.l.b16 %v4473
        %v4602 = vunpack.c.l.b16 %v4474
        %v4603 = vunpack.c.l.b16 %v4475
        %v4604 = vunpack.c.l.b16 %v4476
        %v4605 = vunpack.c.l.b16 %v4477
        %v4606 = vunpack.c.l.b16 %v4478
        %v4607 = vunpack.c.l.b16 %v4479
        %v4608 = vunpack.c.l.b16 %v4480
        %v4609 = vunpack.c.l.b16 %v4481
        %v4610 = vunpack.c.l.b16 %v4482
        %v4611 = vunpack.c.l.b16 %v4483
        %v4612 = vunpack.c.l.b16 %v4484
        %v4613 = vunpack.c.l.b16 %v4485
        %v4614 = vunpack.c.l.b16 %v4486
        %v4615 = vunpack.c.l.b16 %v4487
        %v4616 = vunpack.c.l.b16 %v4488
        %v4617 = vunpack.c.l.b16 %v4489
        %v4618 = vunpack.c.l.b16 %v4490
        %v4619 = vunpack.c.l.b16 %v4491
        %v4620 = vunpack.c.l.b16 %v4492
        %v4621 = vunpack.c.l.b16 %v4493
        %v4622 = vunpack.c.l.b16 %v4494
        %v4623 = vunpack.c.l.b16 %v4495
        %v4624 = vunpack.c.l.b16 %v4496
        %v4625 = vpack.c.b16 %v4586, %v4585
        %v4626 = vpack.c.b16 %v4588, %v4587
        %v4627 = vpack.c.b16 %v4590, %v4589
        %v4628 = vpack.c.b16 %v4592, %v4591
        %v4629 = vpack.c.b16 %v4594, %v4593
        %v4630 = vpack.c.b16 %v4596, %v4595
        %v4631 = vpack.c.b16 %v4598, %v4597
        %v4632 = vpack.c.b16 %v4600, %v4599
        %v4633 = vpack.c.b16 %v4602, %v4601
        %v4634 = vpack.c.b16 %v4604, %v4603
        %v4635 = vpack.c.b16 %v4606, %v4605
        %v4636 = vpack.c.b16 %v4608, %v4607
        %v4637 = vpack.c.b16 %v4610, %v4609
        %v4638 = vpack.c.b16 %v4612, %v4611
        %v4639 = vpack.c.b16 %v4614, %v4613
        %v4640 = vpack.c.b16 %v4616, %v4615
        %v4641 = vpack.c.b16 %v4618, %v4617
        %v4642 = vpack.c.b16 %v4620, %v4619
        %v4643 = vpack.c.b16 %v4622, %v4621
        %v4644 = vpack.c.b16 %v4624, %v4623
        %v4666 = vsel %vm2515, %v4499, 0
        %v4669 = vsel %vm2515, %v4502, 0
        %v4672 = vsel %vm2515, %v4505, 0
        %v4675 = vsel %vm2515, %v4508, 0
        %v4678 = vsel %vm2515, %v4511, 0
        %v4681 = vsel %vm2515, %v4514, 0
        %v4684 = vsel %vm2515, %v4517, 0
        %v4687 = vsel %vm2515, %v4520, 0
        %v4690 = vsel %vm2515, %v4523, 0
        %v4693 = vsel %vm2515, %v4526, 0
        %v4696 = vsel %vm2515, %v4529, 0
        %v4699 = vsel %vm2515, %v4532, 0
        %v4702 = vsel %vm2515, %v4535, 0
        %v4705 = vsel %vm2515, %v4538, 0
        %v4708 = vsel %vm2515, %v4541, 0
        %v4711 = vsel %vm2515, %v4544, 0
        %4713 = vmatprep.subr.bf16.mxu0 0
        %4714 = vmatpush1.bf16.msra.mxu0 %v4625
        %4715 = vmatprep.subr.bf16.mxu0 0
        %4716 = vmatpush1.bf16.msra.mxu0 %v4626
        %4717 = vmatprep.subr.bf16.mxu0 0
        %4718 = vmatpush1.bf16.msra.mxu0 %v4627
        %4719 = vmatprep.subr.bf16.mxu0 0
        %4720 = vmatpush1.bf16.msra.mxu0 %v4628
        %4721 = vmatprep.subr.bf16.mxu0 0
        %4722 = vmatpush1.bf16.msra.mxu0 %v4629
        %4723 = vmatprep.subr.bf16.mxu0 0
        %4724 = vmatpush1.bf16.msra.mxu0 %v4630
        %4725 = vmatprep.subr.bf16.mxu0 0
        %4726 = vmatpush1.bf16.msra.mxu0 %v4631
        %4727 = vmatprep.subr.bf16.mxu0 0
        %4728 = vmatpush1.bf16.msra.mxu0 %v4632
        %4729 = vmatprep.subr.bf16.mxu0 0
        %4730 = vmatpush1.bf16.msra.mxu0 %v4633
        %4731 = vmatprep.subr.bf16.mxu0 0
        %4732 = vmatpush1.bf16.msra.mxu0 %v4634
        %4733 = vmatprep.subr.bf16.mxu0 0
        %4734 = vmatpush1.bf16.msra.mxu0 %v4635
        %4735 = vmatprep.subr.bf16.mxu0 0
        %4736 = vmatpush1.bf16.msra.mxu0 %v4636
        %4737 = vmatprep.subr.bf16.mxu0 0
        %4738 = vmatpush1.bf16.msra.mxu0 %v4637
        %4739 = vmatprep.subr.bf16.mxu0 0
        %4740 = vmatpush1.bf16.msra.mxu0 %v4638
        %4741 = vmatprep.subr.bf16.mxu0 0
        %4742 = vmatpush1.bf16.msra.mxu0 %v4639
        %4743 = vmatprep.subr.bf16.mxu0 0
        %4744 = vmatpush1.bf16.msra.mxu0 %v4640
        %4745 = vmatprep.mubr.bf16.mxu0 %v4498
        %4746 = vmatmul.mubr.bf16.gmra.mrb[0].mxu0 %v4497
        %v4747 = vpop.f32.mrb[0].mxu0
        %v4748 = vadd.f32 0.0, %v4747
        %v4749 = vpop.f32.mrb[0].mxu0
        %v4750 = vpop.f32.mrb[0].mxu0
        %v4751 = vadd.f32 0.0, %v4750
        %v4752 = vpop.f32.mrb[0].mxu0
        %4753 = vmatprep.mubr.bf16.mxu0 %v4501
        %4754 = vmatmul.mubr.bf16.gmra.mrb[0].mxu0 %v4500
        %v4755 = vpop.f32.mrb[0].mxu0
        %v4756 = vadd.f32 0.0, %v4755
        %v4757 = vpop.f32.mrb[0].mxu0
        %v4758 = vpop.f32.mrb[0].mxu0
        %v4759 = vadd.f32 0.0, %v4758
        %v4760 = vpop.f32.mrb[0].mxu0
        %4761 = vmatprep.mubr.bf16.mxu0 %v4504
        %4762 = vmatmul.mubr.bf16.gmra.mrb[0].mxu0 %v4503
        %v4763 = vpop.f32.mrb[0].mxu0
        %v4764 = vadd.f32 0.0, %v4763
        %v4765 = vpop.f32.mrb[0].mxu0
        %v4766 = vpop.f32.mrb[0].mxu0
        %v4767 = vadd.f32 0.0, %v4766
        %v4768 = vpop.f32.mrb[0].mxu0
        %4769 = vmatprep.mubr.bf16.mxu0 %v4507
        %4770 = vmatmul.mubr.bf16.gmra.mrb[0].mxu0 %v4506
        %v4771 = vpop.f32.mrb[0].mxu0
        %v4772 = vadd.f32 0.0, %v4771
        %v4773 = vpop.f32.mrb[0].mxu0
        %v4774 = vpop.f32.mrb[0].mxu0
        %v4775 = vadd.f32 0.0, %v4774
        %v4776 = vpop.f32.mrb[0].mxu0
        %4777 = vmatprep.mubr.bf16.mxu0 %v4510
        %4778 = vmatmul.mubr.bf16.gmra.mrb[0].mxu0 %v4509
        %v4779 = vpop.f32.mrb[0].mxu0
        %v4780 = vadd.f32 0.0, %v4779
        %v4781 = vpop.f32.mrb[0].mxu0
        %v4782 = vpop.f32.mrb[0].mxu0
        %v4783 = vadd.f32 0.0, %v4782
        %v4784 = vpop.f32.mrb[0].mxu0
        %4785 = vmatprep.mubr.bf16.mxu0 %v4513
        %4786 = vmatmul.mubr.bf16.gmra.mrb[0].mxu0 %v4512
        %v4787 = vpop.f32.mrb[0].mxu0
        %v4788 = vadd.f32 0.0, %v4787
        %v4789 = vpop.f32.mrb[0].mxu0
        %v4790 = vpop.f32.mrb[0].mxu0
        %v4791 = vadd.f32 0.0, %v4790
        %v4792 = vpop.f32.mrb[0].mxu0
        %4793 = vmatprep.mubr.bf16.mxu0 %v4516
        %4794 = vmatmul.mubr.bf16.gmra.mrb[0].mxu0 %v4515
        %v4795 = vpop.f32.mrb[0].mxu0
        %v4796 = vadd.f32 0.0, %v4795
        %v4797 = vpop.f32.mrb[0].mxu0
        %v4798 = vpop.f32.mrb[0].mxu0
        %v4799 = vadd.f32 0.0, %v4798
        %v4800 = vpop.f32.mrb[0].mxu0
        %4801 = vmatprep.mubr.bf16.mxu0 %v4519
        %4802 = vmatmul.mubr.bf16.gmra.mrb[0].mxu0 %v4518
        %v4803 = vpop.f32.mrb[0].mxu0
        %v4804 = vadd.f32 0.0, %v4803
        %v4805 = vpop.f32.mrb[0].mxu0
        %v4806 = vpop.f32.mrb[0].mxu0
        %v4807 = vadd.f32 0.0, %v4806
        %v4808 = vpop.f32.mrb[0].mxu0
        %4809 = vmatprep.mubr.bf16.mxu0 %v4522
        %4810 = vmatmul.mubr.bf16.gmra.mrb[0].mxu0 %v4521
        %v4811 = vpop.f32.mrb[0].mxu0
        %v4812 = vadd.f32 0.0, %v4811
        %v4813 = vpop.f32.mrb[0].mxu0
        %v4814 = vpop.f32.mrb[0].mxu0
        %v4815 = vadd.f32 0.0, %v4814
        %v4816 = vpop.f32.mrb[0].mxu0
        %4817 = vmatprep.mubr.bf16.mxu0 %v4525
        %4818 = vmatmul.mubr.bf16.gmra.mrb[0].mxu0 %v4524
        %v4819 = vpop.f32.mrb[0].mxu0
        %v4820 = vadd.f32 0.0, %v4819
        %v4821 = vpop.f32.mrb[0].mxu0
        %v4822 = vpop.f32.mrb[0].mxu0
        %v4823 = vadd.f32 0.0, %v4822
        %v4824 = vpop.f32.mrb[0].mxu0
        %4825 = vmatprep.mubr.bf16.mxu0 %v4528
        %4826 = vmatmul.mubr.bf16.gmra.mrb[0].mxu0 %v4527
        %v4827 = vpop.f32.mrb[0].mxu0
        %v4828 = vadd.f32 0.0, %v4827
        %v4829 = vpop.f32.mrb[0].mxu0
        %v4830 = vpop.f32.mrb[0].mxu0
        %v4831 = vadd.f32 0.0, %v4830
        %v4832 = vpop.f32.mrb[0].mxu0
        %4833 = vmatprep.mubr.bf16.mxu0 %v4531
        %4834 = vmatmul.mubr.bf16.gmra.mrb[0].mxu0 %v4530
        %v4835 = vpop.f32.mrb[0].mxu0
        %v4836 = vadd.f32 0.0, %v4835
        %v4837 = vpop.f32.mrb[0].mxu0
        %v4838 = vpop.f32.mrb[0].mxu0
        %v4839 = vadd.f32 0.0, %v4838
        %v4840 = vpop.f32.mrb[0].mxu0
        %4841 = vmatprep.mubr.bf16.mxu0 %v4534
        %4842 = vmatmul.mubr.bf16.gmra.mrb[0].mxu0 %v4533
        %v4843 = vpop.f32.mrb[0].mxu0
        %v4844 = vadd.f32 0.0, %v4843
        %v4845 = vpop.f32.mrb[0].mxu0
        %v4846 = vpop.f32.mrb[0].mxu0
        %v4847 = vadd.f32 0.0, %v4846
        %v4848 = vpop.f32.mrb[0].mxu0
        %4849 = vmatprep.mubr.bf16.mxu0 %v4537
        %4850 = vmatmul.mubr.bf16.gmra.mrb[0].mxu0 %v4536
        %v4851 = vpop.f32.mrb[0].mxu0
        %v4852 = vadd.f32 0.0, %v4851
        %v4853 = vpop.f32.mrb[0].mxu0
        %v4854 = vpop.f32.mrb[0].mxu0
        %v4855 = vadd.f32 0.0, %v4854
        %v4856 = vpop.f32.mrb[0].mxu0
        %4857 = vmatprep.mubr.bf16.mxu0 %v4540
        %4858 = vmatmul.mubr.bf16.gmra.mrb[0].mxu0 %v4539
        %v4859 = vpop.f32.mrb[0].mxu0
        %v4860 = vadd.f32 0.0, %v4859
        %v4861 = vpop.f32.mrb[0].mxu0
        %v4862 = vpop.f32.mrb[0].mxu0
        %v4863 = vadd.f32 0.0, %v4862
        %v4864 = vpop.f32.mrb[0].mxu0
        %4865 = vmatprep.mubr.bf16.mxu0 %v4543
        %4866 = vmatmul.mubr.bf16.gmra.mrb[0].mxu0 %v4542
        %v4867 = vpop.f32.mrb[0].mxu0
        %v4868 = vadd.f32 0.0, %v4867
        %v4869 = vpop.f32.mrb[0].mxu0
        %v4870 = vpop.f32.mrb[0].mxu0
        %v4871 = vadd.f32 0.0, %v4870
        %v4872 = vpop.f32.mrb[0].mxu0
        %4873 = vdwg.mxu0
        %4874 = vmatprep.subr.bf16.mxu0 0
        %4875 = vmatpush1.bf16.msra.mxu0 %v4641
        %4876 = vmatprep.subr.bf16.mxu0 0
        %4877 = vmatpush1.bf16.msra.mxu0 %v4642
        %4878 = vmatprep.subr.bf16.mxu0 0
        %4879 = vmatpush1.bf16.msra.mxu0 %v4643
        %4880 = vmatprep.subr.bf16.mxu0 0
        %4881 = vmatpush1.bf16.msra.mxu0 %v4644
        %4882 = vmatprep.subr.bf16.mxu0 0
        %4883 = vmatpush1.bf16.msra.mxu0 0
        %4884 = vmatprep.subr.bf16.mxu0 0
        %4885 = vmatpush1.bf16.msra.mxu0 0
        %4886 = vmatprep.subr.bf16.mxu0 0
        %4887 = vmatpush1.bf16.msra.mxu0 0
        %4888 = vmatprep.subr.bf16.mxu0 0
        %4889 = vmatpush1.bf16.msra.mxu0 0
        %4890 = vmatprep.subr.bf16.mxu0 0
        %4891 = vmatpush1.bf16.msra.mxu0 0
        %4892 = vmatprep.subr.bf16.mxu0 0
        %4893 = vmatpush1.bf16.msra.mxu0 0
        %4894 = vmatprep.subr.bf16.mxu0 0
        %4895 = vmatpush1.bf16.msra.mxu0 0
        %4896 = vmatprep.subr.bf16.mxu0 0
        %4897 = vmatpush1.bf16.msra.mxu0 0
        %4898 = vmatprep.subr.bf16.mxu0 0
        %4899 = vmatpush1.bf16.msra.mxu0 0
        %4900 = vmatprep.subr.bf16.mxu0 0
        %4901 = vmatpush1.bf16.msra.mxu0 0
        %4902 = vmatprep.subr.bf16.mxu0 0
        %4903 = vmatpush1.bf16.msra.mxu0 0
        %4904 = vmatprep.subr.bf16.mxu0 0
        %4905 = vmatpush1.bf16.msra.mxu0 0
        %4906 = vmatprep.mubr.bf16.mxu0 0
        %4907 = vmatmul.mubr.bf16.gmra.mrb[0].mxu0 %v4666
        %v4908 = vpop.f32.mrb[0].mxu0
        %v4909 = vadd.f32 %v4748, %v4908
        %v4910 = vpop.f32.mrb[0].mxu0
        %v4911 = vpop.f32.mrb[0].mxu0
        %v4912 = vadd.f32 %v4751, %v4911
        %v4913 = vpop.f32.mrb[0].mxu0
        %4914 = vmatprep.mubr.bf16.mxu0 0
        %4915 = vmatmul.mubr.bf16.gmra.mrb[0].mxu0 %v4669
        %v4916 = vpop.f32.mrb[0].mxu0
        %v4917 = vadd.f32 %v4756, %v4916
        %v4918 = vpop.f32.mrb[0].mxu0
        %v4919 = vpop.f32.mrb[0].mxu0
        %v4920 = vadd.f32 %v4759, %v4919
        %v4921 = vpop.f32.mrb[0].mxu0
        %4922 = vmatprep.mubr.bf16.mxu0 0
        %4923 = vmatmul.mubr.bf16.gmra.mrb[0].mxu0 %v4672
        %v4924 = vpop.f32.mrb[0].mxu0
        %v4925 = vadd.f32 %v4764, %v4924
        %v4926 = vpop.f32.mrb[0].mxu0
        %v4927 = vpop.f32.mrb[0].mxu0
        %v4928 = vadd.f32 %v4767, %v4927
        %v4929 = vpop.f32.mrb[0].mxu0
        %4930 = vmatprep.mubr.bf16.mxu0 0
        %4931 = vmatmul.mubr.bf16.gmra.mrb[0].mxu0 %v4675
        %v4932 = vpop.f32.mrb[0].mxu0
        %v4933 = vadd.f32 %v4772, %v4932
        %v4934 = vpop.f32.mrb[0].mxu0
        %v4935 = vpop.f32.mrb[0].mxu0
        %v4936 = vadd.f32 %v4775, %v4935
        %v4937 = vpop.f32.mrb[0].mxu0
        %4938 = vmatprep.mubr.bf16.mxu0 0
        %4939 = vmatmul.mubr.bf16.gmra.mrb[0].mxu0 %v4678
        %v4940 = vpop.f32.mrb[0].mxu0
        %v4941 = vadd.f32 %v4780, %v4940
        %v4942 = vpop.f32.mrb[0].mxu0
        %v4943 = vpop.f32.mrb[0].mxu0
        %v4944 = vadd.f32 %v4783, %v4943
        %v4945 = vpop.f32.mrb[0].mxu0
        %4946 = vmatprep.mubr.bf16.mxu0 0
        %4947 = vmatmul.mubr.bf16.gmra.mrb[0].mxu0 %v4681
        %v4948 = vpop.f32.mrb[0].mxu0
        %v4949 = vadd.f32 %v4788, %v4948
        %v4950 = vpop.f32.mrb[0].mxu0
        %v4951 = vpop.f32.mrb[0].mxu0
        %v4952 = vadd.f32 %v4791, %v4951
        %v4953 = vpop.f32.mrb[0].mxu0
        %4954 = vmatprep.mubr.bf16.mxu0 0
        %4955 = vmatmul.mubr.bf16.gmra.mrb[0].mxu0 %v4684
        %v4956 = vpop.f32.mrb[0].mxu0
        %v4957 = vadd.f32 %v4796, %v4956
        %v4958 = vpop.f32.mrb[0].mxu0
        %v4959 = vpop.f32.mrb[0].mxu0
        %v4960 = vadd.f32 %v4799, %v4959
        %v4961 = vpop.f32.mrb[0].mxu0
        %4962 = vmatprep.mubr.bf16.mxu0 0
        %4963 = vmatmul.mubr.bf16.gmra.mrb[0].mxu0 %v4687
        %v4964 = vpop.f32.mrb[0].mxu0
        %v4965 = vadd.f32 %v4804, %v4964
        %v4966 = vpop.f32.mrb[0].mxu0
        %v4967 = vpop.f32.mrb[0].mxu0
        %v4968 = vadd.f32 %v4807, %v4967
        %v4969 = vpop.f32.mrb[0].mxu0
        %4970 = vmatprep.mubr.bf16.mxu0 0
        %4971 = vmatmul.mubr.bf16.gmra.mrb[0].mxu0 %v4690
        %v4972 = vpop.f32.mrb[0].mxu0
        %v4973 = vadd.f32 %v4812, %v4972
        %v4974 = vpop.f32.mrb[0].mxu0
        %v4975 = vpop.f32.mrb[0].mxu0
        %v4976 = vadd.f32 %v4815, %v4975
        %v4977 = vpop.f32.mrb[0].mxu0
        %4978 = vmatprep.mubr.bf16.mxu0 0
        %4979 = vmatmul.mubr.bf16.gmra.mrb[0].mxu0 %v4693
        %v4980 = vpop.f32.mrb[0].mxu0
        %v4981 = vadd.f32 %v4820, %v4980
        %v4982 = vpop.f32.mrb[0].mxu0
        %v4983 = vpop.f32.mrb[0].mxu0
        %v4984 = vadd.f32 %v4823, %v4983
        %v4985 = vpop.f32.mrb[0].mxu0
        %4986 = vmatprep.mubr.bf16.mxu0 0
        %4987 = vmatmul.mubr.bf16.gmra.mrb[0].mxu0 %v4696
        %v4988 = vpop.f32.mrb[0].mxu0
        %v4989 = vadd.f32 %v4828, %v4988
        %v4990 = vpop.f32.mrb[0].mxu0
        %v4991 = vpop.f32.mrb[0].mxu0
        %v4992 = vadd.f32 %v4831, %v4991
        %v4993 = vpop.f32.mrb[0].mxu0
        %4994 = vmatprep.mubr.bf16.mxu0 0
        %4995 = vmatmul.mubr.bf16.gmra.mrb[0].mxu0 %v4699
        %v4996 = vpop.f32.mrb[0].mxu0
        %v4997 = vadd.f32 %v4836, %v4996
        %v4998 = vpop.f32.mrb[0].mxu0
        %v4999 = vpop.f32.mrb[0].mxu0
        %v5000 = vadd.f32 %v4839, %v4999
        %v5001 = vpop.f32.mrb[0].mxu0
        %5002 = vmatprep.mubr.bf16.mxu0 0
        %5003 = vmatmul.mubr.bf16.gmra.mrb[0].mxu0 %v4702
        %v5004 = vpop.f32.mrb[0].mxu0
        %v5005 = vadd.f32 %v4844, %v5004
        %v5006 = vpop.f32.mrb[0].mxu0
        %v5007 = vpop.f32.mrb[0].mxu0
        %v5008 = vadd.f32 %v4847, %v5007
        %v5009 = vpop.f32.mrb[0].mxu0
        %5010 = vmatprep.mubr.bf16.mxu0 0
        %5011 = vmatmul.mubr.bf16.gmra.mrb[0].mxu0 %v4705
        %v5012 = vpop.f32.mrb[0].mxu0
        %v5013 = vadd.f32 %v4852, %v5012
        %v5014 = vpop.f32.mrb[0].mxu0
        %v5015 = vpop.f32.mrb[0].mxu0
        %v5016 = vadd.f32 %v4855, %v5015
        %v5017 = vpop.f32.mrb[0].mxu0
        %5018 = vmatprep.mubr.bf16.mxu0 0
        %5019 = vmatmul.mubr.bf16.gmra.mrb[0].mxu0 %v4708
        %v5020 = vpop.f32.mrb[0].mxu0
        %v5021 = vadd.f32 %v4860, %v5020
        %v5022 = vpop.f32.mrb[0].mxu0
        %v5023 = vpop.f32.mrb[0].mxu0
        %v5024 = vadd.f32 %v4863, %v5023
        %v5025 = vpop.f32.mrb[0].mxu0
        %5026 = vmatprep.mubr.bf16.mxu0 0
        %5027 = vmatmul.mubr.bf16.gmra.mrb[0].mxu0 %v4711
        %v5028 = vpop.f32.mrb[0].mxu0
        %v5029 = vadd.f32 %v4868, %v5028
        %v5030 = vpop.f32.mrb[0].mxu0
        %v5031 = vpop.f32.mrb[0].mxu0
        %v5032 = vadd.f32 %v4871, %v5031
        %v5033 = vpop.f32.mrb[0].mxu0
        %5034 = vdwg.mxu0
        %v5067 = vunpack.c.l.b16 %v4425
        %v5068 = vunpack.c.l.b16 %v4426
        %v5069 = vunpack.c.l.b16 %v4427
        %v5070 = vunpack.c.l.b16 %v4428
        %v5071 = vunpack.c.l.b16 %v4429
        %v5072 = vunpack.c.l.b16 %v4430
        %v5073 = vunpack.c.l.b16 %v4431
        %v5074 = vunpack.c.l.b16 %v4432
        %v5075 = vunpack.c.l.b16 %v4433
        %v5076 = vunpack.c.l.b16 %v4434
        %v5077 = vunpack.c.l.b16 %v4435
        %v5078 = vunpack.c.l.b16 %v4436
        %v5079 = vunpack.c.l.b16 %v4437
        %v5080 = vunpack.c.l.b16 %v4438
        %v5081 = vunpack.c.l.b16 %v4439
        %v5082 = vunpack.c.l.b16 %v4440
        %v5083 = vunpack.c.l.b16 %v4441
        %v5084 = vunpack.c.l.b16 %v4442
        %v5085 = vunpack.c.l.b16 %v4443
        %v5086 = vunpack.c.l.b16 %v4444
        %v5087 = vunpack.c.l.b16 %v4445
        %v5088 = vunpack.c.l.b16 %v4446
        %v5089 = vunpack.c.l.b16 %v4447
        %v5090 = vunpack.c.l.b16 %v4448
        %v5091 = vunpack.c.l.b16 %v4449
        %v5092 = vunpack.c.l.b16 %v4450
        %v5093 = vunpack.c.l.b16 %v4451
        %v5094 = vunpack.c.l.b16 %v4452
        %v5095 = vunpack.c.l.b16 %v4453
        %v5096 = vunpack.c.l.b16 %v4454
        %v5097 = vunpack.c.l.b16 %v4455
        %v5098 = vunpack.c.l.b16 %v4456
        %v5099 = vpack.c.b16 %v5068, %v5067
        %v5100 = vpack.c.b16 %v5070, %v5069
        %v5101 = vpack.c.b16 %v5072, %v5071
        %v5102 = vpack.c.b16 %v5074, %v5073
        %v5103 = vpack.c.b16 %v5076, %v5075
        %v5104 = vpack.c.b16 %v5078, %v5077
        %v5105 = vpack.c.b16 %v5080, %v5079
        %v5106 = vpack.c.b16 %v5082, %v5081
        %v5107 = vpack.c.b16 %v5084, %v5083
        %v5108 = vpack.c.b16 %v5086, %v5085
        %v5109 = vpack.c.b16 %v5088, %v5087
        %v5110 = vpack.c.b16 %v5090, %v5089
        %v5111 = vpack.c.b16 %v5092, %v5091
        %v5112 = vpack.c.b16 %v5094, %v5093
        %v5113 = vpack.c.b16 %v5096, %v5095
        %v5114 = vpack.c.b16 %v5098, %v5097
        %5131 = vmatprep.subr.bf16.mxu0 0
        %5132 = vmatpush1.bf16.msra.mxu0 %v5099
        %5133 = vmatprep.subr.bf16.mxu0 0
        %5134 = vmatpush1.bf16.msra.mxu0 %v5100
        %5135 = vmatprep.subr.bf16.mxu0 0
        %5136 = vmatpush1.bf16.msra.mxu0 %v5101
        %5137 = vmatprep.subr.bf16.mxu0 0
        %5138 = vmatpush1.bf16.msra.mxu0 %v5102
        %5139 = vmatprep.subr.bf16.mxu0 0
        %5140 = vmatpush1.bf16.msra.mxu0 %v5103
        %5141 = vmatprep.subr.bf16.mxu0 0
        %5142 = vmatpush1.bf16.msra.mxu0 %v5104
        %5143 = vmatprep.subr.bf16.mxu0 0
        %5144 = vmatpush1.bf16.msra.mxu0 %v5105
        %5145 = vmatprep.subr.bf16.mxu0 0
        %5146 = vmatpush1.bf16.msra.mxu0 %v5106
        %5147 = vmatprep.subr.bf16.mxu0 0
        %5148 = vmatpush1.bf16.msra.mxu0 %v5107
        %5149 = vmatprep.subr.bf16.mxu0 0
        %5150 = vmatpush1.bf16.msra.mxu0 %v5108
        %5151 = vmatprep.subr.bf16.mxu0 0
        %5152 = vmatpush1.bf16.msra.mxu0 %v5109
        %5153 = vmatprep.subr.bf16.mxu0 0
        %5154 = vmatpush1.bf16.msra.mxu0 %v5110
        %5155 = vmatprep.subr.bf16.mxu0 0
        %5156 = vmatpush1.bf16.msra.mxu0 %v5111
        %5157 = vmatprep.subr.bf16.mxu0 0
        %5158 = vmatpush1.bf16.msra.mxu0 %v5112
        %5159 = vmatprep.subr.bf16.mxu0 0
        %5160 = vmatpush1.bf16.msra.mxu0 %v5113
        %5161 = vmatprep.subr.bf16.mxu0 0
        %5162 = vmatpush1.bf16.msra.mxu0 %v5114
        %5163 = vmatprep.mubr.bf16.mxu0 %v3014
        %5164 = vmatmul.mubr.bf16.gmra.mrb[0].mxu0 %v3013
        %v5165 = vpop.f32.mrb[0].mxu0
        %v5166 = vadd.f32 %v4909, %v5165
        %v5167 = vpop.f32.mrb[0].mxu0
        %v5168 = vpop.f32.mrb[0].mxu0
        %v5169 = vadd.f32 %v4912, %v5168
        %v5170 = vpop.f32.mrb[0].mxu0
        %5171 = vmatprep.mubr.bf16.mxu0 %v3016
        %5172 = vmatmul.mubr.bf16.gmra.mrb[0].mxu0 %v3015
        %v5173 = vpop.f32.mrb[0].mxu0
        %v5174 = vadd.f32 %v4917, %v5173
        %v5175 = vpop.f32.mrb[0].mxu0
        %v5176 = vpop.f32.mrb[0].mxu0
        %v5177 = vadd.f32 %v4920, %v5176
        %v5178 = vpop.f32.mrb[0].mxu0
        %5179 = vmatprep.mubr.bf16.mxu0 %v3018
        %5180 = vmatmul.mubr.bf16.gmra.mrb[0].mxu0 %v3017
        %v5181 = vpop.f32.mrb[0].mxu0
        %v5182 = vadd.f32 %v4925, %v5181
        %v5183 = vpop.f32.mrb[0].mxu0
        %v5184 = vpop.f32.mrb[0].mxu0
        %v5185 = vadd.f32 %v4928, %v5184
        %v5186 = vpop.f32.mrb[0].mxu0
        %5187 = vmatprep.mubr.bf16.mxu0 %v3020
        %5188 = vmatmul.mubr.bf16.gmra.mrb[0].mxu0 %v3019
        %v5189 = vpop.f32.mrb[0].mxu0
        %v5190 = vadd.f32 %v4933, %v5189
        %v5191 = vpop.f32.mrb[0].mxu0
        %v5192 = vpop.f32.mrb[0].mxu0
        %v5193 = vadd.f32 %v4936, %v5192
        %v5194 = vpop.f32.mrb[0].mxu0
        %5195 = vmatprep.mubr.bf16.mxu0 %v3022
        %5196 = vmatmul.mubr.bf16.gmra.mrb[0].mxu0 %v3021
        %v5197 = vpop.f32.mrb[0].mxu0
        %v5198 = vadd.f32 %v4941, %v5197
        %v5199 = vpop.f32.mrb[0].mxu0
        %v5200 = vpop.f32.mrb[0].mxu0
        %v5201 = vadd.f32 %v4944, %v5200
        %v5202 = vpop.f32.mrb[0].mxu0
        %5203 = vmatprep.mubr.bf16.mxu0 %v3024
        %5204 = vmatmul.mubr.bf16.gmra.mrb[0].mxu0 %v3023
        %v5205 = vpop.f32.mrb[0].mxu0
        %v5206 = vadd.f32 %v4949, %v5205
        %v5207 = vpop.f32.mrb[0].mxu0
        %v5208 = vpop.f32.mrb[0].mxu0
        %v5209 = vadd.f32 %v4952, %v5208
        %v5210 = vpop.f32.mrb[0].mxu0
        %5211 = vmatprep.mubr.bf16.mxu0 %v3026
        %5212 = vmatmul.mubr.bf16.gmra.mrb[0].mxu0 %v3025
        %v5213 = vpop.f32.mrb[0].mxu0
        %v5214 = vadd.f32 %v4957, %v5213
        %v5215 = vpop.f32.mrb[0].mxu0
        %v5216 = vpop.f32.mrb[0].mxu0
        %v5217 = vadd.f32 %v4960, %v5216
        %v5218 = vpop.f32.mrb[0].mxu0
        %5219 = vmatprep.mubr.bf16.mxu0 %v3028
        %5220 = vmatmul.mubr.bf16.gmra.mrb[0].mxu0 %v3027
        %v5221 = vpop.f32.mrb[0].mxu0
        %v5222 = vadd.f32 %v4965, %v5221
        %v5223 = vpop.f32.mrb[0].mxu0
        %v5224 = vpop.f32.mrb[0].mxu0
        %v5225 = vadd.f32 %v4968, %v5224
        %v5226 = vpop.f32.mrb[0].mxu0
        %5227 = vmatprep.mubr.bf16.mxu0 %v3030
        %5228 = vmatmul.mubr.bf16.gmra.mrb[0].mxu0 %v3029
        %v5229 = vpop.f32.mrb[0].mxu0
        %v5230 = vadd.f32 %v4973, %v5229
        %v5231 = vpop.f32.mrb[0].mxu0
        %v5232 = vpop.f32.mrb[0].mxu0
        %v5233 = vadd.f32 %v4976, %v5232
        %v5234 = vpop.f32.mrb[0].mxu0
        %5235 = vmatprep.mubr.bf16.mxu0 %v3032
        %5236 = vmatmul.mubr.bf16.gmra.mrb[0].mxu0 %v3031
        %v5237 = vpop.f32.mrb[0].mxu0
        %v5238 = vadd.f32 %v4981, %v5237
        %v5239 = vpop.f32.mrb[0].mxu0
        %v5240 = vpop.f32.mrb[0].mxu0
        %v5241 = vadd.f32 %v4984, %v5240
        %v5242 = vpop.f32.mrb[0].mxu0
        %5243 = vmatprep.mubr.bf16.mxu0 %v3034
        %5244 = vmatmul.mubr.bf16.gmra.mrb[0].mxu0 %v3033
        %v5245 = vpop.f32.mrb[0].mxu0
        %v5246 = vadd.f32 %v4989, %v5245
        %v5247 = vpop.f32.mrb[0].mxu0
        %v5248 = vpop.f32.mrb[0].mxu0
        %v5249 = vadd.f32 %v4992, %v5248
        %v5250 = vpop.f32.mrb[0].mxu0
        %5251 = vmatprep.mubr.bf16.mxu0 %v3036
        %5252 = vmatmul.mubr.bf16.gmra.mrb[0].mxu0 %v3035
        %v5253 = vpop.f32.mrb[0].mxu0
        %v5254 = vadd.f32 %v4997, %v5253
        %v5255 = vpop.f32.mrb[0].mxu0
        %v5256 = vpop.f32.mrb[0].mxu0
        %v5257 = vadd.f32 %v5000, %v5256
        %v5258 = vpop.f32.mrb[0].mxu0
        %5259 = vmatprep.mubr.bf16.mxu0 %v3038
        %5260 = vmatmul.mubr.bf16.gmra.mrb[0].mxu0 %v3037
        %v5261 = vpop.f32.mrb[0].mxu0
        %v5262 = vadd.f32 %v5005, %v5261
        %v5263 = vpop.f32.mrb[0].mxu0
        %v5264 = vpop.f32.mrb[0].mxu0
        %v5265 = vadd.f32 %v5008, %v5264
        %v5266 = vpop.f32.mrb[0].mxu0
        %5267 = vmatprep.mubr.bf16.mxu0 %v3040
        %5268 = vmatmul.mubr.bf16.gmra.mrb[0].mxu0 %v3039
        %v5269 = vpop.f32.mrb[0].mxu0
        %v5270 = vadd.f32 %v5013, %v5269
        %v5271 = vpop.f32.mrb[0].mxu0
        %v5272 = vpop.f32.mrb[0].mxu0
        %v5273 = vadd.f32 %v5016, %v5272
        %v5274 = vpop.f32.mrb[0].mxu0
        %5275 = vmatprep.mubr.bf16.mxu0 %v3042
        %5276 = vmatmul.mubr.bf16.gmra.mrb[0].mxu0 %v3041
        %v5277 = vpop.f32.mrb[0].mxu0
        %v5278 = vadd.f32 %v5021, %v5277
        %v5279 = vpop.f32.mrb[0].mxu0
        %v5280 = vpop.f32.mrb[0].mxu0
        %v5281 = vadd.f32 %v5024, %v5280
        %v5282 = vpop.f32.mrb[0].mxu0
        %5283 = vmatprep.mubr.bf16.mxu0 %v3044
        %5284 = vmatmul.mubr.bf16.gmra.mrb[0].mxu0 %v3043
        %v5285 = vpop.f32.mrb[0].mxu0
        %v5286 = vadd.f32 %v5029, %v5285
        %v5287 = vpop.f32.mrb[0].mxu0
        %v5288 = vpop.f32.mrb[0].mxu0
        %v5289 = vadd.f32 %v5032, %v5288
        %v5290 = vpop.f32.mrb[0].mxu0
        %5291 = vdwg.mxu0
        %v5292 = vld [vmem:[%s13] sm:$0x1]
        %v5294 = vlaneseq
        %v5295 = vshrl.u32 %v5294, 7
        %v5296 = vsub.s32 0, %v5295
        %v5297 = vrot.slane %v5292, %v5296
        %v5299 = vadd.f32 %v5166, %v5297
        %v5300 = vadd.f32 %v5169, %v5297
        %v5301 = vadd.f32 %v5174, %v5297
        %v5302 = vadd.f32 %v5177, %v5297
        %v5303 = vadd.f32 %v5182, %v5297
        %v5304 = vadd.f32 %v5185, %v5297
        %v5305 = vadd.f32 %v5190, %v5297
        %v5306 = vadd.f32 %v5193, %v5297
        %v5307 = vadd.f32 %v5198, %v5297
        %v5308 = vadd.f32 %v5201, %v5297
        %v5309 = vadd.f32 %v5206, %v5297
        %v5310 = vadd.f32 %v5209, %v5297
        %v5311 = vadd.f32 %v5214, %v5297
        %v5312 = vadd.f32 %v5217, %v5297
        %v5313 = vadd.f32 %v5222, %v5297
        %v5314 = vadd.f32 %v5225, %v5297
        %v5315 = vadd.f32 %v5230, %v5297
        %v5316 = vadd.f32 %v5233, %v5297
        %v5317 = vadd.f32 %v5238, %v5297
        %v5318 = vadd.f32 %v5241, %v5297
        %v5319 = vadd.f32 %v5246, %v5297
        %v5320 = vadd.f32 %v5249, %v5297
        %v5321 = vadd.f32 %v5254, %v5297
        %v5322 = vadd.f32 %v5257, %v5297
        %v5323 = vadd.f32 %v5262, %v5297
        %v5324 = vadd.f32 %v5265, %v5297
        %v5325 = vadd.f32 %v5270, %v5297
        %v5326 = vadd.f32 %v5273, %v5297
        %v5327 = vadd.f32 %v5278, %v5297
        %v5328 = vadd.f32 %v5281, %v5297
        %v5329 = vadd.f32 %v5286, %v5297
        %v5330 = vadd.f32 %v5289, %v5297
        %v5331 = vmul.f32 %v5299, 0.01
        %v5332 = vmul.f32 %v5300, 0.01
        %v5333 = vmul.f32 %v5301, 0.01
        %v5334 = vmul.f32 %v5302, 0.01
        %v5335 = vmul.f32 %v5303, 0.01
        %v5336 = vmul.f32 %v5304, 0.01
        %v5337 = vmul.f32 %v5305, 0.01
        %v5338 = vmul.f32 %v5306, 0.01
        %v5339 = vmul.f32 %v5307, 0.01
        %v5340 = vmul.f32 %v5308, 0.01
        %v5341 = vmul.f32 %v5309, 0.01
        %v5342 = vmul.f32 %v5310, 0.01
        %v5343 = vmul.f32 %v5311, 0.01
        %v5344 = vmul.f32 %v5312, 0.01
        %v5345 = vmul.f32 %v5313, 0.01
        %v5346 = vmul.f32 %v5314, 0.01
        %v5347 = vmul.f32 %v5315, 0.01
        %v5348 = vmul.f32 %v5316, 0.01
        %v5349 = vmul.f32 %v5317, 0.01
        %v5350 = vmul.f32 %v5318, 0.01
        %v5351 = vmul.f32 %v5319, 0.01
        %v5352 = vmul.f32 %v5320, 0.01
        %v5353 = vmul.f32 %v5321, 0.01
        %v5354 = vmul.f32 %v5322, 0.01
        %v5355 = vmul.f32 %v5323, 0.01
        %v5356 = vmul.f32 %v5324, 0.01
        %v5357 = vmul.f32 %v5325, 0.01
        %v5358 = vmul.f32 %v5326, 0.01
        %v5359 = vmul.f32 %v5327, 0.01
        %v5360 = vmul.f32 %v5328, 0.01
        %v5361 = vmul.f32 %v5329, 0.01
        %v5362 = vmul.f32 %v5330, 0.01
        %v5363 = vmax.f32 %v5299, %v5331
        %v5364 = vmax.f32 %v5300, %v5332
        %v5365 = vmax.f32 %v5301, %v5333
        %v5366 = vmax.f32 %v5302, %v5334
        %v5367 = vmax.f32 %v5303, %v5335
        %v5368 = vmax.f32 %v5304, %v5336
        %v5369 = vmax.f32 %v5305, %v5337
        %v5370 = vmax.f32 %v5306, %v5338
        %v5371 = vmax.f32 %v5307, %v5339
        %v5372 = vmax.f32 %v5308, %v5340
        %v5373 = vmax.f32 %v5309, %v5341
        %v5374 = vmax.f32 %v5310, %v5342
        %v5375 = vmax.f32 %v5311, %v5343
        %v5376 = vmax.f32 %v5312, %v5344
        %v5377 = vmax.f32 %v5313, %v5345
        %v5378 = vmax.f32 %v5314, %v5346
        %v5379 = vmax.f32 %v5315, %v5347
        %v5380 = vmax.f32 %v5316, %v5348
        %v5381 = vmax.f32 %v5317, %v5349
        %v5382 = vmax.f32 %v5318, %v5350
        %v5383 = vmax.f32 %v5319, %v5351
        %v5384 = vmax.f32 %v5320, %v5352
        %v5385 = vmax.f32 %v5321, %v5353
        %v5386 = vmax.f32 %v5322, %v5354
        %v5387 = vmax.f32 %v5323, %v5355
        %v5388 = vmax.f32 %v5324, %v5356
        %v5389 = vmax.f32 %v5325, %v5357
        %v5390 = vmax.f32 %v5326, %v5358
        %v5391 = vmax.f32 %v5327, %v5359
        %v5392 = vmax.f32 %v5328, %v5360
        %v5393 = vmax.f32 %v5329, %v5361
        %v5394 = vmax.f32 %v5330, %v5362
        %v5395 = vld [vmem:[%s14] sm:$0xf]
        %v5396 = vld [vmem:[%s14 + $0x4] sm:$0xf]
        %v5397 = vld [vmem:[%s14 + $0x8] sm:$0xf]
        %v5398 = vld [vmem:[%s14 + $0xc] sm:$0xf]
        %v5399 = vld [vmem:[%s14 + $0x10] sm:$0xf]
        %v5400 = vld [vmem:[%s14 + $0x14] sm:$0xf]
        %v5401 = vld [vmem:[%s14 + $0x18] sm:$0xf]
        %v5402 = vld [vmem:[%s14 + $0x1c] sm:$0xf]
        %v5403 = vpack.c.bf16 %v5364, %v5363
        %v5404 = vpack.c.bf16 %v5366, %v5365
        %v5405 = vpack.c.bf16 %v5368, %v5367
        %v5406 = vpack.c.bf16 %v5370, %v5369
        %v5407 = vpack.c.bf16 %v5372, %v5371
        %v5408 = vpack.c.bf16 %v5374, %v5373
        %v5409 = vpack.c.bf16 %v5376, %v5375
        %v5410 = vpack.c.bf16 %v5378, %v5377
        %v5411 = vpack.c.bf16 %v5380, %v5379
        %v5412 = vpack.c.bf16 %v5382, %v5381
        %v5413 = vpack.c.bf16 %v5384, %v5383
        %v5414 = vpack.c.bf16 %v5386, %v5385
        %v5415 = vpack.c.bf16 %v5388, %v5387
        %v5416 = vpack.c.bf16 %v5390, %v5389
        %v5417 = vpack.c.bf16 %v5392, %v5391
        %v5418 = vpack.c.bf16 %v5394, %v5393
        %v5419 = vld [vmem:[%s15] sm:$0x1]
        %v5421 = vlaneseq
        %v5422 = vshrl.u32 %v5421, 7
        %v5423 = vsub.s32 0, %v5422
        %v5424 = vrot.slane %v5419, %v5423
        %v5434 = vunpack.c.l.b16 %v5395
        %v5435 = vunpack.c.l.b16 %v5396
        %v5436 = vunpack.c.l.b16 %v5397
        %v5437 = vunpack.c.l.b16 %v5398
        %v5438 = vunpack.c.l.b16 %v5399
        %v5439 = vunpack.c.l.b16 %v5400
        %v5440 = vunpack.c.l.b16 %v5401
        %v5441 = vunpack.c.l.b16 %v5402
        %v5442 = vpack.c.b16 %v5435, %v5434
        %v5443 = vpack.c.b16 %v5437, %v5436
        %v5444 = vpack.c.b16 %v5439, %v5438
        %v5445 = vpack.c.b16 %v5441, %v5440
        %v5451 = vsel %vm2515, %v5403, 0
        %v5454 = vsel %vm2515, %v5404, 0
        %v5457 = vsel %vm2515, %v5405, 0
        %v5460 = vsel %vm2515, %v5406, 0
        %v5463 = vsel %vm2515, %v5407, 0
        %v5466 = vsel %vm2515, %v5408, 0
        %v5469 = vsel %vm2515, %v5409, 0
        %v5472 = vsel %vm2515, %v5410, 0
        %v5475 = vsel %vm2515, %v5411, 0
        %v5478 = vsel %vm2515, %v5412, 0
        %v5481 = vsel %vm2515, %v5413, 0
        %v5484 = vsel %vm2515, %v5414, 0
        %v5487 = vsel %vm2515, %v5415, 0
        %v5490 = vsel %vm2515, %v5416, 0
        %v5493 = vsel %vm2515, %v5417, 0
        %v5496 = vsel %vm2515, %v5418, 0
        %5498 = vmatprep.subr.bf16.mxu0 0
        %5499 = vmatpush1.bf16.msra.mxu0 %v5442
        %5500 = vmatprep.subr.bf16.mxu0 0
        %5501 = vmatpush1.bf16.msra.mxu0 %v5443
        %5502 = vmatprep.subr.bf16.mxu0 0
        %5503 = vmatpush1.bf16.msra.mxu0 %v5444
        %5504 = vmatprep.subr.bf16.mxu0 0
        %5505 = vmatpush1.bf16.msra.mxu0 %v5445
        %5506 = vmatprep.subr.bf16.mxu0 0
        %5507 = vmatpush1.bf16.msra.mxu0 0
        %5508 = vmatprep.subr.bf16.mxu0 0
        %5509 = vmatpush1.bf16.msra.mxu0 0
        %5510 = vmatprep.subr.bf16.mxu0 0
        %5511 = vmatpush1.bf16.msra.mxu0 0
        %5512 = vmatprep.subr.bf16.mxu0 0
        %5513 = vmatpush1.bf16.msra.mxu0 0
        %5514 = vmatprep.subr.bf16.mxu0 0
        %5515 = vmatpush1.bf16.msra.mxu0 0
        %5516 = vmatprep.subr.bf16.mxu0 0
        %5517 = vmatpush1.bf16.msra.mxu0 0
        %5518 = vmatprep.subr.bf16.mxu0 0
        %5519 = vmatpush1.bf16.msra.mxu0 0
        %5520 = vmatprep.subr.bf16.mxu0 0
        %5521 = vmatpush1.bf16.msra.mxu0 0
        %5522 = vmatprep.subr.bf16.mxu0 0
        %5523 = vmatpush1.bf16.msra.mxu0 0
        %5524 = vmatprep.subr.bf16.mxu0 0
        %5525 = vmatpush1.bf16.msra.mxu0 0
        %5526 = vmatprep.subr.bf16.mxu0 0
        %5527 = vmatpush1.bf16.msra.mxu0 0
        %5528 = vmatprep.subr.bf16.mxu0 0
        %5529 = vmatpush1.bf16.msra.mxu0 0
        %5530 = vmatprep.mubr.bf16.mxu0 0
        %5531 = vmatmul.mubr.bf16.gmra.mrb[0].mxu0 %v5451
        %v5532 = vpop.f32.mrb[0].mxu0
        %v5533 = vadd.f32 %v5424, %v5532
        %v5534 = vpop.f32.mrb[0].mxu0
        %v5535 = vpop.f32.mrb[0].mxu0
        %v5536 = vadd.f32 %v5424, %v5535
        %v5537 = vpop.f32.mrb[0].mxu0
        %5538 = vmatprep.mubr.bf16.mxu0 0
        %5539 = vmatmul.mubr.bf16.gmra.mrb[0].mxu0 %v5454
        %v5540 = vpop.f32.mrb[0].mxu0
        %v5541 = vadd.f32 %v5424, %v5540
        %v5542 = vpop.f32.mrb[0].mxu0
        %v5543 = vpop.f32.mrb[0].mxu0
        %v5544 = vadd.f32 %v5424, %v5543
        %v5545 = vpop.f32.mrb[0].mxu0
        %5546 = vmatprep.mubr.bf16.mxu0 0
        %5547 = vmatmul.mubr.bf16.gmra.mrb[0].mxu0 %v5457
        %v5548 = vpop.f32.mrb[0].mxu0
        %v5549 = vadd.f32 %v5424, %v5548
        %v5550 = vpop.f32.mrb[0].mxu0
        %v5551 = vpop.f32.mrb[0].mxu0
        %v5552 = vadd.f32 %v5424, %v5551
        %v5553 = vpop.f32.mrb[0].mxu0
        %5554 = vmatprep.mubr.bf16.mxu0 0
        %5555 = vmatmul.mubr.bf16.gmra.mrb[0].mxu0 %v5460
        %v5556 = vpop.f32.mrb[0].mxu0
        %v5557 = vadd.f32 %v5424, %v5556
        %v5558 = vpop.f32.mrb[0].mxu0
        %v5559 = vpop.f32.mrb[0].mxu0
        %v5560 = vadd.f32 %v5424, %v5559
        %v5561 = vpop.f32.mrb[0].mxu0
        %5562 = vmatprep.mubr.bf16.mxu0 0
        %5563 = vmatmul.mubr.bf16.gmra.mrb[0].mxu0 %v5463
        %v5564 = vpop.f32.mrb[0].mxu0
        %v5565 = vadd.f32 %v5424, %v5564
        %v5566 = vpop.f32.mrb[0].mxu0
        %v5567 = vpop.f32.mrb[0].mxu0
        %v5568 = vadd.f32 %v5424, %v5567
        %v5569 = vpop.f32.mrb[0].mxu0
        %5570 = vmatprep.mubr.bf16.mxu0 0
        %5571 = vmatmul.mubr.bf16.gmra.mrb[0].mxu0 %v5466
        %v5572 = vpop.f32.mrb[0].mxu0
        %v5573 = vadd.f32 %v5424, %v5572
        %v5574 = vpop.f32.mrb[0].mxu0
        %v5575 = vpop.f32.mrb[0].mxu0
        %v5576 = vadd.f32 %v5424, %v5575
        %v5577 = vpop.f32.mrb[0].mxu0
        %5578 = vmatprep.mubr.bf16.mxu0 0
        %5579 = vmatmul.mubr.bf16.gmra.mrb[0].mxu0 %v5469
        %v5580 = vpop.f32.mrb[0].mxu0
        %v5581 = vadd.f32 %v5424, %v5580
        %v5582 = vpop.f32.mrb[0].mxu0
        %v5583 = vpop.f32.mrb[0].mxu0
        %v5584 = vadd.f32 %v5424, %v5583
        %v5585 = vpop.f32.mrb[0].mxu0
        %5586 = vmatprep.mubr.bf16.mxu0 0
        %5587 = vmatmul.mubr.bf16.gmra.mrb[0].mxu0 %v5472
        %v5588 = vpop.f32.mrb[0].mxu0
        %v5589 = vadd.f32 %v5424, %v5588
        %v5590 = vpop.f32.mrb[0].mxu0
        %v5591 = vpop.f32.mrb[0].mxu0
        %v5592 = vadd.f32 %v5424, %v5591
        %v5593 = vpop.f32.mrb[0].mxu0
        %5594 = vmatprep.mubr.bf16.mxu0 0
        %5595 = vmatmul.mubr.bf16.gmra.mrb[0].mxu0 %v5475
        %v5596 = vpop.f32.mrb[0].mxu0
        %v5597 = vadd.f32 %v5424, %v5596
        %v5598 = vpop.f32.mrb[0].mxu0
        %v5599 = vpop.f32.mrb[0].mxu0
        %v5600 = vadd.f32 %v5424, %v5599
        %v5601 = vpop.f32.mrb[0].mxu0
        %5602 = vmatprep.mubr.bf16.mxu0 0
        %5603 = vmatmul.mubr.bf16.gmra.mrb[0].mxu0 %v5478
        %v5604 = vpop.f32.mrb[0].mxu0
        %v5605 = vadd.f32 %v5424, %v5604
        %v5606 = vpop.f32.mrb[0].mxu0
        %v5607 = vpop.f32.mrb[0].mxu0
        %v5608 = vadd.f32 %v5424, %v5607
        %v5609 = vpop.f32.mrb[0].mxu0
        %5610 = vmatprep.mubr.bf16.mxu0 0
        %5611 = vmatmul.mubr.bf16.gmra.mrb[0].mxu0 %v5481
        %v5612 = vpop.f32.mrb[0].mxu0
        %v5613 = vadd.f32 %v5424, %v5612
        %v5614 = vpop.f32.mrb[0].mxu0
        %v5615 = vpop.f32.mrb[0].mxu0
        %v5616 = vadd.f32 %v5424, %v5615
        %v5617 = vpop.f32.mrb[0].mxu0
        %5618 = vmatprep.mubr.bf16.mxu0 0
        %5619 = vmatmul.mubr.bf16.gmra.mrb[0].mxu0 %v5484
        %v5620 = vpop.f32.mrb[0].mxu0
        %v5621 = vadd.f32 %v5424, %v5620
        %v5622 = vpop.f32.mrb[0].mxu0
        %v5623 = vpop.f32.mrb[0].mxu0
        %v5624 = vadd.f32 %v5424, %v5623
        %v5625 = vpop.f32.mrb[0].mxu0
        %5626 = vmatprep.mubr.bf16.mxu0 0
        %5627 = vmatmul.mubr.bf16.gmra.mrb[0].mxu0 %v5487
        %v5628 = vpop.f32.mrb[0].mxu0
        %v5629 = vadd.f32 %v5424, %v5628
        %v5630 = vpop.f32.mrb[0].mxu0
        %v5631 = vpop.f32.mrb[0].mxu0
        %v5632 = vadd.f32 %v5424, %v5631
        %v5633 = vpop.f32.mrb[0].mxu0
        %5634 = vmatprep.mubr.bf16.mxu0 0
        %5635 = vmatmul.mubr.bf16.gmra.mrb[0].mxu0 %v5490
        %v5636 = vpop.f32.mrb[0].mxu0
        %v5637 = vadd.f32 %v5424, %v5636
        %v5638 = vpop.f32.mrb[0].mxu0
        %v5639 = vpop.f32.mrb[0].mxu0
        %v5640 = vadd.f32 %v5424, %v5639
        %v5641 = vpop.f32.mrb[0].mxu0
        %5642 = vmatprep.mubr.bf16.mxu0 0
        %5643 = vmatmul.mubr.bf16.gmra.mrb[0].mxu0 %v5493
        %v5644 = vpop.f32.mrb[0].mxu0
        %v5645 = vadd.f32 %v5424, %v5644
        %v5646 = vpop.f32.mrb[0].mxu0
        %v5647 = vpop.f32.mrb[0].mxu0
        %v5648 = vadd.f32 %v5424, %v5647
        %v5649 = vpop.f32.mrb[0].mxu0
        %5650 = vmatprep.mubr.bf16.mxu0 0
        %5651 = vmatmul.mubr.bf16.gmra.mrb[0].mxu0 %v5496
        %v5652 = vpop.f32.mrb[0].mxu0
        %v5653 = vadd.f32 %v5424, %v5652
        %v5654 = vpop.f32.mrb[0].mxu0
        %v5655 = vpop.f32.mrb[0].mxu0
        %v5656 = vadd.f32 %v5424, %v5655
        %v5657 = vpop.f32.mrb[0].mxu0
        %5658 = vdwg.mxu0
        %v5659 = vmul.f32 %v5533, 0.01
        %v5660 = vmul.f32 %v5536, 0.01
        %v5661 = vmul.f32 %v5541, 0.01
        %v5662 = vmul.f32 %v5544, 0.01
        %v5663 = vmul.f32 %v5549, 0.01
        %v5664 = vmul.f32 %v5552, 0.01
        %v5665 = vmul.f32 %v5557, 0.01
        %v5666 = vmul.f32 %v5560, 0.01
        %v5667 = vmul.f32 %v5565, 0.01
        %v5668 = vmul.f32 %v5568, 0.01
        %v5669 = vmul.f32 %v5573, 0.01
        %v5670 = vmul.f32 %v5576, 0.01
        %v5671 = vmul.f32 %v5581, 0.01
        %v5672 = vmul.f32 %v5584, 0.01
        %v5673 = vmul.f32 %v5589, 0.01
        %v5674 = vmul.f32 %v5592, 0.01
        %v5675 = vmul.f32 %v5597, 0.01
        %v5676 = vmul.f32 %v5600, 0.01
        %v5677 = vmul.f32 %v5605, 0.01
        %v5678 = vmul.f32 %v5608, 0.01
        %v5679 = vmul.f32 %v5613, 0.01
        %v5680 = vmul.f32 %v5616, 0.01
        %v5681 = vmul.f32 %v5621, 0.01
        %v5682 = vmul.f32 %v5624, 0.01
        %v5683 = vmul.f32 %v5629, 0.01
        %v5684 = vmul.f32 %v5632, 0.01
        %v5685 = vmul.f32 %v5637, 0.01
        %v5686 = vmul.f32 %v5640, 0.01
        %v5687 = vmul.f32 %v5645, 0.01
        %v5688 = vmul.f32 %v5648, 0.01
        %v5689 = vmul.f32 %v5653, 0.01
        %v5690 = vmul.f32 %v5656, 0.01
        %v5691 = vmax.f32 %v5533, %v5659
        %v5692 = vmax.f32 %v5536, %v5660
        %v5693 = vmax.f32 %v5541, %v5661
        %v5694 = vmax.f32 %v5544, %v5662
        %v5695 = vmax.f32 %v5549, %v5663
        %v5696 = vmax.f32 %v5552, %v5664
        %v5697 = vmax.f32 %v5557, %v5665
        %v5698 = vmax.f32 %v5560, %v5666
        %v5699 = vmax.f32 %v5565, %v5667
        %v5700 = vmax.f32 %v5568, %v5668
        %v5701 = vmax.f32 %v5573, %v5669
        %v5702 = vmax.f32 %v5576, %v5670
        %v5703 = vmax.f32 %v5581, %v5671
        %v5704 = vmax.f32 %v5584, %v5672
        %v5705 = vmax.f32 %v5589, %v5673
        %v5706 = vmax.f32 %v5592, %v5674
        %v5707 = vmax.f32 %v5597, %v5675
        %v5708 = vmax.f32 %v5600, %v5676
        %v5709 = vmax.f32 %v5605, %v5677
        %v5710 = vmax.f32 %v5608, %v5678
        %v5711 = vmax.f32 %v5613, %v5679
        %v5712 = vmax.f32 %v5616, %v5680
        %v5713 = vmax.f32 %v5621, %v5681
        %v5714 = vmax.f32 %v5624, %v5682
        %v5715 = vmax.f32 %v5629, %v5683
        %v5716 = vmax.f32 %v5632, %v5684
        %v5717 = vmax.f32 %v5637, %v5685
        %v5718 = vmax.f32 %v5640, %v5686
        %v5719 = vmax.f32 %v5645, %v5687
        %v5720 = vmax.f32 %v5648, %v5688
        %v5721 = vmax.f32 %v5653, %v5689
        %v5722 = vmax.f32 %v5656, %v5690
        %v5723 = vld [vmem:[%s16] sm:$0x1]
        %v5724 = vpack.c.bf16 %v5692, %v5691
        %v5725 = vpack.c.bf16 %v5694, %v5693
        %v5726 = vpack.c.bf16 %v5696, %v5695
        %v5727 = vpack.c.bf16 %v5698, %v5697
        %v5728 = vpack.c.bf16 %v5700, %v5699
        %v5729 = vpack.c.bf16 %v5702, %v5701
        %v5730 = vpack.c.bf16 %v5704, %v5703
        %v5731 = vpack.c.bf16 %v5706, %v5705
        %v5732 = vpack.c.bf16 %v5708, %v5707
        %v5733 = vpack.c.bf16 %v5710, %v5709
        %v5734 = vpack.c.bf16 %v5712, %v5711
        %v5735 = vpack.c.bf16 %v5714, %v5713
        %v5736 = vpack.c.bf16 %v5716, %v5715
        %v5737 = vpack.c.bf16 %v5718, %v5717
        %v5738 = vpack.c.bf16 %v5720, %v5719
        %v5739 = vpack.c.bf16 %v5722, %v5721
        %v5740 = vld [vmem:[#allocation2] sm:$0x1]
        %5742 = vset.pattern.permute.xlu0 0
        %5743 = vperm.xlu0 %5742, %v5740
        %v5744 = vpop.permute.xlu0 %5743
        %v5746 = vlaneseq
        %v5747 = vshrl.u32 %v5746, 7
        %v5748 = vsub.s32 0, %v5747
        %v5749 = vrot.slane %v5744, %v5748
        %v5751 = vsel %vm2165, %v5723, 0
        %v5754 = vsel %vm2165, %v5724, 0
        %v5757 = vsel %vm2165, %v5725, 0
        %v5760 = vsel %vm2165, %v5726, 0
        %v5763 = vsel %vm2165, %v5727, 0
        %v5766 = vsel %vm2165, %v5728, 0
        %v5769 = vsel %vm2165, %v5729, 0
        %v5772 = vsel %vm2165, %v5730, 0
        %v5775 = vsel %vm2165, %v5731, 0
        %v5778 = vsel %vm2165, %v5732, 0
        %v5781 = vsel %vm2165, %v5733, 0
        %v5784 = vsel %vm2165, %v5734, 0
        %v5787 = vsel %vm2165, %v5735, 0
        %v5790 = vsel %vm2165, %v5736, 0
        %v5793 = vsel %vm2165, %v5737, 0
        %v5796 = vsel %vm2165, %v5738, 0
        %v5799 = vsel %vm2165, %v5739, 0
        %5801 = vmatprep.subr.bf16.mxu0 0
        %5802 = vmatpush1.bf16.xpose.msra.mxu0 %v5754
        %5803 = vmatprep.subr.bf16.mxu0 0
        %5804 = vmatpush1.bf16.xpose.msra.mxu0 %v5757
        %5805 = vmatprep.subr.bf16.mxu0 0
        %5806 = vmatpush1.bf16.xpose.msra.mxu0 %v5760
        %5807 = vmatprep.subr.bf16.mxu0 0
        %5808 = vmatpush1.bf16.xpose.msra.mxu0 %v5763
        %5809 = vmatprep.subr.bf16.mxu0 0
        %5810 = vmatpush1.bf16.xpose.msra.mxu0 %v5766
        %5811 = vmatprep.subr.bf16.mxu0 0
        %5812 = vmatpush1.bf16.xpose.msra.mxu0 %v5769
        %5813 = vmatprep.subr.bf16.mxu0 0
        %5814 = vmatpush1.bf16.xpose.msra.mxu0 %v5772
        %5815 = vmatprep.subr.bf16.mxu0 0
        %5816 = vmatpush1.bf16.xpose.msra.mxu0 %v5775
        %5817 = vmatprep.subr.bf16.mxu0 0
        %5818 = vmatpush1.bf16.xpose.msra.mxu0 %v5778
        %5819 = vmatprep.subr.bf16.mxu0 0
        %5820 = vmatpush1.bf16.xpose.msra.mxu0 %v5781
        %5821 = vmatprep.subr.bf16.mxu0 0
        %5822 = vmatpush1.bf16.xpose.msra.mxu0 %v5784
        %5823 = vmatprep.subr.bf16.mxu0 0
        %5824 = vmatpush1.bf16.xpose.msra.mxu0 %v5787
        %5825 = vmatprep.subr.bf16.mxu0 0
        %5826 = vmatpush1.bf16.xpose.msra.mxu0 %v5790
        %5827 = vmatprep.subr.bf16.mxu0 0
        %5828 = vmatpush1.bf16.xpose.msra.mxu0 %v5793
        %5829 = vmatprep.subr.bf16.mxu0 0
        %5830 = vmatpush1.bf16.xpose.msra.mxu0 %v5796
        %5831 = vmatprep.subr.bf16.mxu0 0
        %5832 = vmatpush1.bf16.xpose.msra.mxu0 %v5799
        %5833 = vmatprep.mubr.bf16.mxu0 0
        %5834 = vmatmul.mubr.bf16.gmra.mrb[0].mxu0 %v5751
        %v5835 = vpop.f32.mrb[0].mxu0
        %v5836 = vadd.f32 %v5749, %v5835
        %v5837 = vpop.f32.mrb[0].mxu0
        %v5838 = vadd.f32 %v5749, %v5837
        %v5839 = vpop.f32.mrb[0].mxu0
        %v5840 = vpop.f32.mrb[0].mxu0
        %5841 = vdwg.mxu0
        %v5842 = vxor.u32 %v5836, 2147483648
        %v5843 = vxor.u32 %v5838, 2147483648
        %v5844 = vmul.f32 %v5842, 1.442695
        %v5845 = vpow.pop %v5844
        %v5846 = vmul.f32 %v5843, 1.442695
        %v5847 = vpow.pop %v5846
        %v5848 = vadd.f32 %v5845, 1.0
        %v5849 = vadd.f32 %v5847, 1.0
        %v5850 = vrcp.pop %v5848
        %v5851 = vmul.f32 1.0, %v5850
        %v5852 = vrcp.pop %v5849
        %v5853 = vmul.f32 1.0, %v5852
        %v5856 = vcombine.low %v5851, %v5853
        %v5858 = vunpack.c.l.s4 1966171168
        %v5859 = vunpack.c.0.s8 %v5858
        %v5860 = vlaneseq
        %v5861 = vshrl.u32 %v5860, 7
        %v5862 = vsub.s32 %v5859, %v5861
        %v5863 = vrot.slane %v5856, %v5862
        %v5865 = vunpack.c.l.s4 1966171168
        %v5866 = vunpack.c.0.s8 %v5865
        %v5867 = vlaneseq
        %v5868 = vshrl.u32 %v5867, 7
        %v5869 = vsub.s32 %v5866, %v5868
        %v5870 = vrot.slane %v5863, %v5869
        %v5872 = vlaneseq
        %vm5873 = vcmp.ge.s32.totalorder %v5872, 0
        %vm5874 = vcmp.lt.s32.totalorder %v5872, 256
        %vm5875 = vmand %vm5873, %vm5874
        %5876 = vst.msk [vmem:[%s587] sm:$0x3] %vm5875, %v5870
        %s5877 = sand.u32 %s430, 1
        %s5878 = scalar_lea.sflag [#allocation4], %s5877
        %s5879 = sand.u32 %s430, 1
        %s5880 = smul.addr %s5879, 2
        %s5881 = scalar_lea.vmem [#allocation3], %s5880
        // Predicated region
        $region93: #{tpu_custom_call.1} parent=91 // pred_check
          %p5882 = pneg %p440
        $region94: #{tpu_custom_call.1} parent=91 // pred_check_branch
          %5884 = sbr.rel (%p5882) target = $region96
        $region95: #{tpu_custom_call.1} parent=91 // pred_region
          %s5885 = smul.u32 2, %s34
          %s5887 = ssub.s32 32, 32
          %5888 = vsyncadd %s5878, %s5887
          %s5889 = smul.addr %s5885, 16
          %s5890 = scalar_lea.hbm %s18, %s5889
          %s5892 = sshll.u32 %s5881, 4
          %s5893 = int_to_ptr.vmem [resolvable:$true] %s5892
          %5895 = dma.vmem_to_hbm [thread:$0]  %s5893, 32, %s5890, %s5878
        $region96: #{tpu_custom_call.1} parent=91 // pred_fallthru
          _
      $region92: #{tpu_custom_call.1} parent=5 // pred_fallthru
        _
      %p5896 = scmp.le.s32.totalorder 2, %s29
      // Predicated region
      $region97: #{tpu_custom_call.1} parent=5 // pred_check
        %p5897 = pneg %p5896
      $region98: #{tpu_custom_call.1} parent=5 // pred_check_branch
        %5899 = sbr.rel (%p5897) target = $region100
      $region99: #{tpu_custom_call.1} parent=5 // pred_region
        %s5900 = ssub.s32 %s29, 2
        // Predicated region
        $region101: #{tpu_custom_call.1} parent=99 // pred_check
          %p5901 = pneg %p446
        $region102: #{tpu_custom_call.1} parent=99 // pred_check_branch
          %5903 = sbr.rel (%p5901) target = $region104
        $region103: #{tpu_custom_call.1} parent=99 // pred_region
          %s5904 = sand.u32 %s431, 1
          %s5905 = scalar_lea.sflag [#allocation4], %s5904
          %s5906 = sand.u32 %s431, 1
          %s5907 = smul.addr %s5906, 2
          %s5908 = scalar_lea.vmem [#allocation3], %s5907
          %5909 = dma.done %s5905, 32
        $region104: #{tpu_custom_call.1} parent=99 // pred_fallthru
          _
      $region100: #{tpu_custom_call.1} parent=5 // pred_fallthru
        _
    $region6: #{tpu_custom_call.1} parent=1 // loop_footer
      %s33 = sadd.s32 1, %s29
    $region7: #{tpu_custom_call.1} parent=1 // loop_footer_branch
      %28 = sbr.rel target = $region3
    $region8: #{tpu_custom_call.1} parent=1 // loop_exit
      _
    %5910 = vsyncpa [#allocation4], 1
    %s5911 = scalar_lea.sflag [#allocation4], 1
    %5912 = vsyncpa %s5911, 1

</llo_original>
